<compile_context>
chip_gen: v6e
topology: v6e:2x2x1
jax: 0.10.0
libtpu: 0.0.40
codegen_flags: <defaults>
</compile_context>

<pallas_src>
import functools
import math

import jax
import jax.numpy as jnp
from jax.experimental import pallas as pl
from jax.experimental.pallas import tpu as pltpu

# ---------------- model config (tiny, Mistral-shaped) ----------------
VOCAB = 256
HIDDEN = 128
N_LAYERS = 2
N_HEADS = 4
N_KV_HEADS = 2                      # GQA, like Mistral (8 KV heads of 32)
HEAD_DIM = HIDDEN // N_HEADS        # 32
GROUP = N_HEADS // N_KV_HEADS       # 2 query heads per KV head
KVD = N_KV_HEADS * HEAD_DIM         # 64
QKV_N = HIDDEN + 2 * KVD            # 256: fused [q | k | v] projection width
INTER = 256                         # SwiGLU intermediate
ROPE_THETA = 10000.0
RMS_EPS = 1e-5
SEQ_MAX = 16                        # static KV-cache length (sliding window >> seq)
PROMPT_LEN = 8
NEW_TOKENS = 4                      # stands in for max_new_tokens=300


# ---------------- Pallas kernels ----------------
def _norm_qkv_rope_kernel(x_ref, nw_ref, wqkv_ref, cos_ref, sin_ref,
                          q_ref, kv_ref, *, eps):
    """RMSNorm(x) @ [Wq|Wk|Wv] with vectorized rotate-half RoPE.

    cos/sin tables are full-width (M, QKV_N): cos=1 / sin=0 over the V columns and
    the sign of sin is pre-folded, so RoPE is one VPU pass + two XLU rolls.
    Outputs: q (M, HIDDEN) and combined kv = [k | v] (M, 2*KVD), both 128-lane dense.
    """
    x = x_ref[...].astype(jnp.float32)
    var = jnp.mean(x * x, axis=-1, keepdims=True)
    xn = (x * jax.lax.rsqrt(var + eps) * nw_ref[...]).astype(jnp.bfloat16)
    qkv = jnp.dot(xn, wqkv_ref[...],
                  preferred_element_type=jnp.float32)            # (M, QKV_N) f32

    half = HEAD_DIM // 2
    # rotate-half within each HEAD_DIM lane group: rot = [t2, t1] (sign lives in sin)
    rolled_p = pltpu.roll(qkv, shift=half, axis=1)               # in[i - half]
    rolled_m = pltpu.roll(qkv, shift=QKV_N - half, axis=1)       # in[i + half]
    lane = jax.lax.broadcasted_iota(jnp.int32, qkv.shape, 1)
    rot = jnp.where(lane % HEAD_DIM < half, rolled_m, rolled_p)
    out = qkv * cos_ref[...] + rot * sin_ref[...]                # (M, QKV_N) f32

    q_ref[...] = out[:, :HIDDEN].astype(q_ref.dtype)
    kv_ref[...] = out[:, HIDDEN:].astype(kv_ref.dtype)


def norm_qkv_rope(x, nw, wqkv, cos_full, sin_full):
    M = x.shape[0]
    tm = 8 if M % 8 == 0 else M                                  # sublane-aligned M tiles
    return pl.pallas_call(
        functools.partial(_norm_qkv_rope_kernel, eps=RMS_EPS),
        out_shape=(jax.ShapeDtypeStruct((M, HIDDEN), jnp.bfloat16),
                   jax.ShapeDtypeStruct((M, 2 * KVD), jnp.bfloat16)),
        grid=(M // tm,),
        in_specs=[pl.BlockSpec((tm, HIDDEN), lambda i: (i, 0)),
                  pl.BlockSpec((1, HIDDEN), lambda i: (0, 0)),
                  pl.BlockSpec((HIDDEN, QKV_N), lambda i: (0, 0)),
                  pl.BlockSpec((tm, QKV_N), lambda i: (i, 0)),
                  pl.BlockSpec((tm, QKV_N), lambda i: (i, 0))],
        out_specs=(pl.BlockSpec((tm, HIDDEN), lambda i: (i, 0)),
                   pl.BlockSpec((tm, 2 * KVD), lambda i: (i, 0))),
        compiler_params=pltpu.CompilerParams(dimension_semantics=("parallel",)),
    )(x, nw.reshape(1, HIDDEN), wqkv, cos_full, sin_full)


def _attn_kernel(qstart_ref, q_ref, kv_ref, wo_ref, res_ref, o_ref, *, scale):
    """All heads of one batch element: GQA attention + Wo projection + residual.

    q: (1, Sq, HIDDEN) rope'd bf16; kv: (1, Sk, 2*KVD) rope'd bf16 ([k|v] combined).
    Causal mask generated in-kernel from iota + scalar-prefetched query start.
    bf16 MXU operands, f32 accumulation / softmax, exact normalization.
    """
    Sq = q_ref.shape[1]
    Sk = kv_ref.shape[1]
    q = q_ref[...].reshape(Sq, HIDDEN)                           # bf16
    kv = kv_ref[...].reshape(Sk, 2 * KVD)                        # bf16

    qh = jnp.transpose(q.reshape(Sq, N_HEADS, HEAD_DIM), (1, 0, 2))          # (H,Sq,D)
    kvh = jnp.transpose(kv.reshape(Sk, 2 * N_KV_HEADS, HEAD_DIM), (1, 0, 2))  # (2KV,Sk,D)
    kh = jnp.repeat(kvh[:N_KV_HEADS], GROUP, axis=0)             # (H, Sk, D) GQA expand
    vh = jnp.repeat(kvh[N_KV_HEADS:], GROUP, axis=0)

    s = jnp.einsum('hqd,hkd->hqk', qh, kh,
                   preferred_element_type=jnp.float32) * scale   # (H,Sq,Sk) f32
    row = jax.lax.broadcasted_iota(jnp.int32, (Sq, Sk), 0) + qstart_ref[0]
    col = jax.lax.broadcasted_iota(jnp.int32, (Sq, Sk), 1)
    s = jnp.where(col <= row, s, -1e30)                          # in-kernel causal mask

    m = jnp.max(s, axis=-1, keepdims=True)
    p = jnp.exp(s - m)
    l = jnp.sum(p, axis=-1, keepdims=True)
    o = jnp.einsum('hqk,hkd->hqd', p.astype(jnp.bfloat16), vh,
                   preferred_element_type=jnp.float32)
    o = o / l                                                    # exact normalization

    attn = jnp.transpose(o, (1, 0, 2)).reshape(Sq, HIDDEN)       # (Sq, HIDDEN) f32
    proj = jnp.dot(attn.astype(jnp.bfloat16), wo_ref[...],
                   preferred_element_type=jnp.float32)
    res = res_ref[...].reshape(Sq, HIDDEN).astype(jnp.float32)
    o_ref[...] = (res + proj).astype(o_ref.dtype).reshape(1, Sq, HIDDEN)


def attention(qstart, q, kv, wo, res):
    """qstart: absolute position of the first query row (0 for prefill, pos for decode)."""
    B, Sq, _ = q.shape
    Sk = kv.shape[1]
    scale = 1.0 / math.sqrt(HEAD_DIM)
    qstart_arr = jnp.reshape(jnp.asarray(qstart, jnp.int32), (1,))
    return pl.pallas_call(
        functools.partial(_attn_kernel, scale=scale),
        out_shape=jax.ShapeDtypeStruct((B, Sq, HIDDEN), jnp.bfloat16),
        grid_spec=pltpu.PrefetchScalarGridSpec(
            num_scalar_prefetch=1, grid=(B,),
            in_specs=[pl.BlockSpec((1, Sq, HIDDEN), lambda b, qs: (b, 0, 0)),
                      pl.BlockSpec((1, Sk, 2 * KVD), lambda b, qs: (b, 0, 0)),
                      pl.BlockSpec((HIDDEN, HIDDEN), lambda b, qs: (0, 0)),
                      pl.BlockSpec((1, Sq, HIDDEN), lambda b, qs: (b, 0, 0))],
            out_specs=pl.BlockSpec((1, Sq, HIDDEN), lambda b, qs: (b, 0, 0))),
        compiler_params=pltpu.CompilerParams(dimension_semantics=("parallel",)),
    )(qstart_arr, q, kv, wo, res)


def _mlp_kernel(x_ref, nw_ref, wg_ref, wu_ref, wd_ref, o_ref, *, eps):
    """x + Wd @ (SiLU(RMSNorm(x) @ Wg) * (RMSNorm(x) @ Wu)); intermediate stays in VMEM."""
    x = x_ref[...].astype(jnp.float32)
    var = jnp.mean(x * x, axis=-1, keepdims=True)
    xn = (x * jax.lax.rsqrt(var + eps) * nw_ref[...]).astype(jnp.bfloat16)
    g = jnp.dot(xn, wg_ref[...], preferred_element_type=jnp.float32)
    u = jnp.dot(xn, wu_ref[...], preferred_element_type=jnp.float32)
    act = (g * jax.nn.sigmoid(g) * u).astype(jnp.bfloat16)       # SiLU(gate) * up
    down = jnp.dot(act, wd_ref[...], preferred_element_type=jnp.float32)
    o_ref[...] = (x + down).astype(o_ref.dtype)


def mlp_block(x, nw, wg, wu, wd):
    M = x.shape[0]
    tm = 8 if M % 8 == 0 else M
    return pl.pallas_call(
        functools.partial(_mlp_kernel, eps=RMS_EPS),
        out_shape=jax.ShapeDtypeStruct((M, HIDDEN), jnp.bfloat16),
        grid=(M // tm,),
        in_specs=[pl.BlockSpec((tm, HIDDEN), lambda i: (i, 0)),
                  pl.BlockSpec((1, HIDDEN), lambda i: (0, 0)),
                  pl.BlockSpec((HIDDEN, INTER), lambda i: (0, 0)),
                  pl.BlockSpec((HIDDEN, INTER), lambda i: (0, 0)),
                  pl.BlockSpec((INTER, HIDDEN), lambda i: (0, 0))],
        out_specs=pl.BlockSpec((tm, HIDDEN), lambda i: (i, 0)),
        compiler_params=pltpu.CompilerParams(dimension_semantics=("parallel",)),
    )(x, nw.reshape(1, HIDDEN), wg, wu, wd)


def _norm_head_kernel(x_ref, nw_ref, wl_ref, o_ref, *, eps):
    """Final RMSNorm fused with the LM head projection (>=256-wide vocab tiles)."""
    x = x_ref[...].astype(jnp.float32)
    var = jnp.mean(x * x, axis=-1, keepdims=True)
    xn = (x * jax.lax.rsqrt(var + eps) * nw_ref[...]).astype(jnp.bfloat16)
    o_ref[...] = jnp.dot(xn, wl_ref[...],
                         preferred_element_type=jnp.float32).astype(o_ref.dtype)


def norm_lm_head(x, nw, wl):
    # TODO(synk): at real vocab (32000) tile N in >=512 chunks and stash the norm'd
    # activation in a VMEM scratch on the first tile instead of recomputing it.
    M = x.shape[0]
    tn = min(256, VOCAB)                                         # full vocab at toy shape
    return pl.pallas_call(
        functools.partial(_norm_head_kernel, eps=RMS_EPS),
        out_shape=jax.ShapeDtypeStruct((M, VOCAB), jnp.float32),
        grid=(VOCAB // tn,),
        in_specs=[pl.BlockSpec((M, HIDDEN), lambda j: (0, 0)),
                  pl.BlockSpec((1, HIDDEN), lambda j: (0, 0)),
                  pl.BlockSpec((HIDDEN, tn), lambda j: (0, j))],
        out_specs=pl.BlockSpec((M, tn), lambda j: (0, j)),
        compiler_params=pltpu.CompilerParams(dimension_semantics=("parallel",)),
    )(x, nw.reshape(1, HIDDEN), wl)


# ---------------- plain-JAX glue ----------------
def rope_tables_full(S, theta=ROPE_THETA):
    """Full-width (S, QKV_N) cos / signed-sin RoPE tables.

    q and k columns carry rotate-half cos/sin per HEAD_DIM group (sign folded into
    sin); v columns get cos=1 / sin=0 so they pass through untouched.
    """
    half = HEAD_DIM // 2
    inv_freq = 1.0 / (theta ** (jnp.arange(0, HEAD_DIM, 2, dtype=jnp.float32) / HEAD_DIM))
    pos = jnp.arange(S, dtype=jnp.float32)
    ang = pos[:, None] * inv_freq[None, :]                       # (S, D/2)
    cos_h = jnp.concatenate([jnp.cos(ang), jnp.cos(ang)], axis=-1)    # (S, D)
    sin_h = jnp.concatenate([-jnp.sin(ang), jnp.sin(ang)], axis=-1)   # signed (S, D)
    n_rope = N_HEADS + N_KV_HEADS                                # q + k head groups
    cos_full = jnp.concatenate([jnp.tile(cos_h, (1, n_rope)),
                                jnp.ones((S, KVD), jnp.float32)], axis=-1)   # (S, QKV_N)
    sin_full = jnp.concatenate([jnp.tile(sin_h, (1, n_rope)),
                                jnp.zeros((S, KVD), jnp.float32)], axis=-1)
    return cos_full, sin_full


def init_params(key):
    def w(k, shape):
        return (jax.random.normal(k, shape, dtype=jnp.float32) * 0.02).astype(jnp.bfloat16)

    keys = jax.random.split(key, 2 + N_LAYERS)
    params = {
        "embed": w(keys[0], (VOCAB, HIDDEN)),
        "lm_head": w(keys[1], (HIDDEN, VOCAB)),
        "final_norm": jnp.ones((HIDDEN,), jnp.float32),
        "layers": [],
    }
    for l in range(N_LAYERS):
        lk = jax.random.split(keys[2 + l], 7)
        wq = w(lk[0], (HIDDEN, N_HEADS * HEAD_DIM))
        wk = w(lk[1], (HIDDEN, KVD))
        wv = w(lk[2], (HIDDEN, KVD))
        params["layers"].append({
            "attn_norm": jnp.ones((HIDDEN,), jnp.float32),
            "mlp_norm": jnp.ones((HIDDEN,), jnp.float32),
            "wqkv": jnp.concatenate([wq, wk, wv], axis=1),       # fused (HIDDEN, QKV_N)
            "wo": w(lk[3], (HIDDEN, HIDDEN)),
            "w_gate": w(lk[4], (HIDDEN, INTER)),
            "w_up": w(lk[5], (HIDDEN, INTER)),
            "w_down": w(lk[6], (INTER, HIDDEN)),
        })
    return params


@functools.partial(jax.jit, static_argnums=(2,))
def greedy_generate(params, prompt, new_tokens):
    """Mirror of model.generate(max_new_tokens=...): jitted prefill + KV-cache decode."""
    B, P = prompt.shape
    cos_all, sin_all = rope_tables_full(SEQ_MAX)                 # (SEQ_MAX, QKV_N) f32

    # ---- prefill over the prompt, filling the combined [k|v] KV cache ----
    buf = jnp.zeros((B, SEQ_MAX), jnp.int32).at[:, :P].set(prompt)
    caches_kv = jnp.zeros((N_LAYERS, B, SEQ_MAX, 2 * KVD), jnp.bfloat16)
    h = params["embed"][prompt]                                  # (B, P, HIDDEN) bf16

    cos_p = jnp.tile(cos_all[:P], (B, 1))                        # (B*P, QKV_N)
    sin_p = jnp.tile(sin_all[:P], (B, 1))

    for l, layer in enumerate(params["layers"]):
        q, kv = norm_qkv_rope(h.reshape(B * P, HIDDEN), layer["attn_norm"],
                              layer["wqkv"], cos_p, sin_p)
        q = q.reshape(B, P, HIDDEN)
        kv = kv.reshape(B, P, 2 * KVD)
        caches_kv = caches_kv.at[l, :, :P, :].set(kv)
        h = attention(0, q, kv, layer["wo"], h)                  # causal mask in-kernel
        h = mlp_block(h.reshape(B * P, HIDDEN), layer["mlp_norm"],
                      layer["w_gate"], layer["w_up"],
                      layer["w_down"]).reshape(B, P, HIDDEN)

    logits = norm_lm_head(h[:, P - 1, :], params["final_norm"], params["lm_head"])
    first = jnp.argmax(logits, axis=-1).astype(jnp.int32)        # (B,)
    buf = buf.at[:, P].set(first)

    # ---- single-token decode steps with KV cache (inside jit, no host sync) ----
    def decode_step(i, carry):
        buf, caches_kv = carry
        pos = P + i                                              # position being processed
        tok = jax.lax.dynamic_slice_in_dim(buf, pos, 1, axis=1)[:, 0]      # (B,)
        h = params["embed"][tok]                                 # (B, HIDDEN)
        cos_d = jnp.broadcast_to(
            jax.lax.dynamic_slice_in_dim(cos_all, pos, 1, axis=0), (B, QKV_N))
        sin_d = jnp.broadcast_to(
            jax.lax.dynamic_slice_in_dim(sin_all, pos, 1, axis=0), (B, QKV_N))

        for l, layer in enumerate(params["layers"]):
            q, kv_new = norm_qkv_rope(h, layer["attn_norm"], layer["wqkv"],
                                      cos_d, sin_d)              # (B,128), (B,128)
            # TODO(synk): fold this cache write into the kernel via input_output_aliases
            # + scalar-prefetched pos in the output index_map to drop the XLA copy.
            caches_kv = jax.lax.dynamic_update_slice(
                caches_kv, kv_new.reshape(1, B, 1, 2 * KVD), (l, 0, pos, 0))
            h3 = attention(pos, q.reshape(B, 1, HIDDEN), caches_kv[l],
                           layer["wo"], h.reshape(B, 1, HIDDEN))
            h = mlp_block(h3.reshape(B, HIDDEN), layer["mlp_norm"],
                          layer["w_gate"], layer["w_up"], layer["w_down"])

        logits = norm_lm_head(h, params["final_norm"], params["lm_head"])   # (B, VOCAB)
        nxt = jnp.argmax(logits, axis=-1).astype(jnp.int32)
        buf = jax.lax.dynamic_update_slice(buf, nxt[:, None], (0, pos + 1))
        return buf, caches_kv

    buf, _ = jax.lax.fori_loop(0, new_tokens - 1, decode_step, (buf, caches_kv))
    return buf[:, :P + new_tokens]


if __name__ == "__main__":
    key = jax.random.PRNGKey(0)
    pkey, tkey = jax.random.split(key)
    params = init_params(pkey)
    prompt = jax.random.randint(tkey, (2, PROMPT_LEN), 1, VOCAB, dtype=jnp.int32)

    generated = greedy_generate(params, prompt, NEW_TOKENS)
    generated = jax.block_until_ready(generated)
    assert generated.shape == (2, PROMPT_LEN + NEW_TOKENS)
    print("KERNEL_OK")
</pallas_src>

<mosaic_0001>
module attributes {stable_mosaic.version = 11 : i64} {
  func.func @_norm_qkv_rope_kernel(%arg0: i32, %arg1: memref<8x128xbf16, #tpu.memory_space<vmem>>, %arg2: memref<1x128xf32, #tpu.memory_space<vmem>>, %arg3: memref<128x256xbf16, #tpu.memory_space<vmem>>, %arg4: memref<8x256xf32, #tpu.memory_space<vmem>>, %arg5: memref<8x256xf32, #tpu.memory_space<vmem>>, %arg6: memref<8x128xbf16, #tpu.memory_space<vmem>>, %arg7: memref<8x128xbf16, #tpu.memory_space<vmem>>) attributes {dimension_semantics = [#tpu.dimension_semantics<parallel>], iteration_bounds = array<i64: 2>, scalar_prefetch = 0 : i64, scratch_operands = 0 : i64, tpu.core_type = #tpu.core_type<tc>, window_params = [{transform_indices = @transform_0, window_bounds = array<i64: 8, 128>}, {pipeline_mode = #tpu.pipeline_mode<synchronous>, transform_indices = @transform_1, window_bounds = array<i64: 1, 128>}, {pipeline_mode = #tpu.pipeline_mode<synchronous>, transform_indices = @transform_2, window_bounds = array<i64: 128, 256>}, {transform_indices = @transform_3, window_bounds = array<i64: 8, 256>}, {transform_indices = @transform_4, window_bounds = array<i64: 8, 256>}, {transform_indices = @transform_5, window_bounds = array<i64: 8, 128>}, {transform_indices = @transform_6, window_bounds = array<i64: 8, 128>}]} {
    %c0 = arith.constant 0 : index
    %c0_0 = arith.constant 0 : index
    %0 = vector.load %arg1[%c0, %c0_0] : memref<8x128xbf16, #tpu.memory_space<vmem>>, vector<8x128xbf16>
    %1 = arith.extf %0 : vector<8x128xbf16> to vector<8x128xf32>
    %2 = arith.mulf %1, %1 : vector<8x128xf32>
    %cst = arith.constant dense<0.000000e+00> : vector<8xf32>
    %3 = vector.multi_reduction <add>, %2, %cst [1] : vector<8x128xf32> to vector<8xf32>
    %4 = vector.shape_cast %3 : vector<8xf32> to vector<8x1xf32>
    %cst_1 = arith.constant 1.280000e+02 : f32
    %5 = vector.broadcast %cst_1 : f32 to vector<8x1xf32>
    %6 = arith.divf %4, %5 : vector<8x1xf32>
    %cst_2 = arith.constant 9.99999974E-6 : f32
    %7 = vector.broadcast %cst_2 : f32 to vector<8x1xf32>
    %8 = arith.addf %6, %7 : vector<8x1xf32>
    %9 = math.rsqrt %8 : vector<8x1xf32>
    %10 = vector.broadcast %9 : vector<8x1xf32> to vector<8x128xf32>
    %11 = arith.mulf %1, %10 : vector<8x128xf32>
    %c0_3 = arith.constant 0 : index
    %c0_4 = arith.constant 0 : index
    %12 = vector.load %arg2[%c0_3, %c0_4] : memref<1x128xf32, #tpu.memory_space<vmem>>, vector<1x128xf32>
    %13 = vector.broadcast %12 : vector<1x128xf32> to vector<8x128xf32>
    %14 = arith.mulf %11, %13 : vector<8x128xf32>
    %15 = arith.truncf %14 : vector<8x128xf32> to vector<8x128xbf16>
    %c0_5 = arith.constant 0 : index
    %c0_6 = arith.constant 0 : index
    %16 = vector.load %arg3[%c0_5, %c0_6] : memref<128x256xbf16, #tpu.memory_space<vmem>>, vector<128x256xbf16>
    %cst_7 = arith.constant dense<0.000000e+00> : vector<8x256xf32>
    %17 = tpu.matmul %15, %16, %cst_7 {dimension_numbers = #tpu.dot_dimension_numbers<[1], [0], [0], [1], [0, 0, 1, 1], [], []>} : vector<8x128xbf16>, vector<128x256xbf16>, vector<8x256xf32> -> vector<8x256xf32>
    %c16_i32 = arith.constant 16 : i32
    %18 = tpu.dynamic_rotate %17 by %c16_i32 dim 1 : vector<8x256xf32>, i32 -> vector<8x256xf32>
    %c240_i32 = arith.constant 240 : i32
    %19 = tpu.dynamic_rotate %17 by %c240_i32 dim 1 : vector<8x256xf32>, i32 -> vector<8x256xf32>
    %20 = tpu.iota {dimensions = array<i32: 1>} : vector<8x256xi32>
    %c32_i32 = arith.constant 32 : i32
    %c0_i32 = arith.constant 0 : i32
    %21 = arith.cmpi eq, %c32_i32, %c0_i32 : i32
    %c1_i32 = arith.constant 1 : i32
    %22 = arith.select %21, %c1_i32, %c32_i32 : i32
    %23 = vector.broadcast %22 : i32 to vector<8x256xi32>
    %24 = arith.remsi %20, %23 : vector<8x256xi32>
    %c0_i32_8 = arith.constant 0 : i32
    %25 = vector.broadcast %c0_i32_8 : i32 to vector<8x256xi32>
    %26 = arith.cmpi ne, %24, %25 : vector<8x256xi32>
    %c0_i32_9 = arith.constant 0 : i32
    %27 = vector.broadcast %c0_i32_9 : i32 to vector<8x256xi32>
    %28 = arith.cmpi slt, %24, %27 : vector<8x256xi32>
    %c0_i32_10 = arith.constant 0 : i32
    %29 = arith.cmpi slt, %22, %c0_i32_10 : i32
    %30 = vector.broadcast %29 : i1 to vector<8x256xi1>
    %31 = vector.broadcast %30 : vector<8x256xi1> to vector<8x256xi1>
    %32 = arith.xori %28, %31 : vector<8x256xi1>
    %33 = arith.andi %32, %26 : vector<8x256xi1>
    %34 = vector.broadcast %22 : i32 to vector<8x256xi32>
    %35 = arith.addi %24, %34 : vector<8x256xi32>
    %36 = arith.select %33, %35, %24 : vector<8x256xi1>, vector<8x256xi32>
    %c16_i32_11 = arith.constant 16 : i32
    %37 = vector.broadcast %c16_i32_11 : i32 to vector<8x256xi32>
    %38 = arith.cmpi slt, %36, %37 : vector<8x256xi32>
    %39 = arith.select %38, %19, %18 : vector<8x256xi1>, vector<8x256xf32>
    %c0_12 = arith.constant 0 : index
    %c0_13 = arith.constant 0 : index
    %40 = vector.load %arg4[%c0_12, %c0_13] : memref<8x256xf32, #tpu.memory_space<vmem>>, vector<8x256xf32>
    %41 = arith.mulf %17, %40 : vector<8x256xf32>
    %c0_14 = arith.constant 0 : index
    %c0_15 = arith.constant 0 : index
    %42 = vector.load %arg5[%c0_14, %c0_15] : memref<8x256xf32, #tpu.memory_space<vmem>>, vector<8x256xf32>
    %43 = arith.mulf %39, %42 : vector<8x256xf32>
    %44 = arith.addf %41, %43 : vector<8x256xf32>
    %45 = vector.extract_strided_slice %44 {offsets = [0, 0], sizes = [8, 128], strides = [1, 1]} : vector<8x256xf32> to vector<8x128xf32>
    %46 = arith.truncf %45 : vector<8x128xf32> to vector<8x128xbf16>
    %c0_16 = arith.constant 0 : index
    %c0_17 = arith.constant 0 : index
    %47 = vector.load %arg6[%c0_16, %c0_17] : memref<8x128xbf16, #tpu.memory_space<vmem>>, vector<8x128xbf16>
    tpu.vector_store %arg6[%c0_16, %c0_17], %46 {strides = array<i32>} : memref<8x128xbf16, #tpu.memory_space<vmem>>, vector<8x128xbf16>,
    %48 = vector.extract_strided_slice %44 {offsets = [0, 128], sizes = [8, 128], strides = [1, 1]} : vector<8x256xf32> to vector<8x128xf32>
    %49 = arith.truncf %48 : vector<8x128xf32> to vector<8x128xbf16>
    %c0_18 = arith.constant 0 : index
    %c0_19 = arith.constant 0 : index
    %50 = vector.load %arg7[%c0_18, %c0_19] : memref<8x128xbf16, #tpu.memory_space<vmem>>, vector<8x128xbf16>
    tpu.vector_store %arg7[%c0_18, %c0_19], %49 {strides = array<i32>} : memref<8x128xbf16, #tpu.memory_space<vmem>>, vector<8x128xbf16>,
    return
  }
  func.func @transform_0(%arg0: i32) -> (i32, i32) {
    %c0_i32 = arith.constant 0 : i32
    %c0_i32_0 = arith.constant 0 : i32
    return %arg0, %c0_i32 : i32, i32
  }
  func.func @transform_1(%arg0: i32) -> (i32, i32) {
    %c0_i32 = arith.constant 0 : i32
    %c0_i32_0 = arith.constant 0 : i32
    %c0_i32_1 = arith.constant 0 : i32
    return %c0_i32, %c0_i32_0 : i32, i32
  }
  func.func @transform_2(%arg0: i32) -> (i32, i32) {
    %c0_i32 = arith.constant 0 : i32
    %c0_i32_0 = arith.constant 0 : i32
    %c0_i32_1 = arith.constant 0 : i32
    return %c0_i32, %c0_i32_0 : i32, i32
  }
  func.func @transform_3(%arg0: i32) -> (i32, i32) {
    %c0_i32 = arith.constant 0 : i32
    %c0_i32_0 = arith.constant 0 : i32
    return %arg0, %c0_i32 : i32, i32
  }
  func.func @transform_4(%arg0: i32) -> (i32, i32) {
    %c0_i32 = arith.constant 0 : i32
    %c0_i32_0 = arith.constant 0 : i32
    return %arg0, %c0_i32 : i32, i32
  }
  func.func @transform_5(%arg0: i32) -> (i32, i32) {
    %c0_i32 = arith.constant 0 : i32
    %c0_i32_0 = arith.constant 0 : i32
    return %arg0, %c0_i32 : i32, i32
  }
  func.func @transform_6(%arg0: i32) -> (i32, i32) {
    %c0_i32 = arith.constant 0 : i32
    %c0_i32_0 = arith.constant 0 : i32
    return %arg0, %c0_i32 : i32, i32
  }
}

module attributes {stable_mosaic.version = 11 : i64} {
  func.func @_attn_kernel(%arg0: i32, %arg1: memref<1xi32, #tpu.memory_space<smem>>, %arg2: memref<1x8x128xbf16, #tpu.memory_space<vmem>>, %arg3: memref<1x8x128xbf16, #tpu.memory_space<vmem>>, %arg4: memref<128x128xbf16, #tpu.memory_space<vmem>>, %arg5: memref<1x8x128xbf16, #tpu.memory_space<vmem>>, %arg6: memref<1x8x128xbf16, #tpu.memory_space<vmem>>) attributes {dimension_semantics = [#tpu.dimension_semantics<parallel>], iteration_bounds = array<i64: 2>, scalar_prefetch = 1 : i64, scratch_operands = 0 : i64, tpu.core_type = #tpu.core_type<tc>, window_params = [{transform_indices = @transform_0, window_bounds = array<i64: 1, 8, 128>}, {transform_indices = @transform_1, window_bounds = array<i64: 1, 8, 128>}, {pipeline_mode = #tpu.pipeline_mode<synchronous>, transform_indices = @transform_2, window_bounds = array<i64: 128, 128>}, {transform_indices = @transform_3, window_bounds = array<i64: 1, 8, 128>}, {transform_indices = @transform_4, window_bounds = array<i64: 1, 8, 128>}]} {
    %c0 = arith.constant 0 : index
    %c0_0 = arith.constant 0 : index
    %c0_1 = arith.constant 0 : index
    %0 = vector.load %arg2[%c0, %c0_0, %c0_1] : memref<1x8x128xbf16, #tpu.memory_space<vmem>>, vector<1x8x128xbf16>
    %1 = vector.shape_cast %0 : vector<1x8x128xbf16> to vector<8x128xbf16>
    %c0_2 = arith.constant 0 : index
    %c0_3 = arith.constant 0 : index
    %c0_4 = arith.constant 0 : index
    %2 = vector.load %arg3[%c0_2, %c0_3, %c0_4] : memref<1x8x128xbf16, #tpu.memory_space<vmem>>, vector<1x8x128xbf16>
    %3 = vector.shape_cast %2 : vector<1x8x128xbf16> to vector<8x128xbf16>
    %4 = vector.shape_cast %1 : vector<8x128xbf16> to vector<8x4x32xbf16>
    %5 = tpu.transpose %4, [1, 0, 2] : vector<8x4x32xbf16> -> vector<4x8x32xbf16>
    %6 = vector.shape_cast %3 : vector<8x128xbf16> to vector<8x4x32xbf16>
    %7 = tpu.transpose %6, [1, 0, 2] : vector<8x4x32xbf16> -> vector<4x8x32xbf16>
    %8 = vector.extract_strided_slice %7 {offsets = [0, 0, 0], sizes = [2, 8, 32], strides = [1, 1, 1]} : vector<4x8x32xbf16> to vector<2x8x32xbf16>
    %9 = vector.shape_cast %8 : vector<2x8x32xbf16> to vector<2x1x8x32xbf16>
    %10 = vector.broadcast %9 : vector<2x1x8x32xbf16> to vector<2x2x8x32xbf16>
    %11 = vector.shape_cast %10 : vector<2x2x8x32xbf16> to vector<4x8x32xbf16>
    %12 = vector.extract_strided_slice %7 {offsets = [2, 0, 0], sizes = [2, 8, 32], strides = [1, 1, 1]} : vector<4x8x32xbf16> to vector<2x8x32xbf16>
    %13 = vector.shape_cast %12 : vector<2x8x32xbf16> to vector<2x1x8x32xbf16>
    %14 = vector.broadcast %13 : vector<2x1x8x32xbf16> to vector<2x2x8x32xbf16>
    %15 = vector.shape_cast %14 : vector<2x2x8x32xbf16> to vector<4x8x32xbf16>
    "tpu.trace_start"() <{level = 10 : i32, message = "hqd,hkd->hqk"}> : () -> ()
    %cst = arith.constant dense<0.000000e+00> : vector<4x8x8xf32>
    %16 = tpu.matmul %5, %11, %cst {dimension_numbers = #tpu.dot_dimension_numbers<[2], [2], [1], [1], [0, 0, 0, 1, 1, 1], [0], [0]>} : vector<4x8x32xbf16>, vector<4x8x32xbf16>, vector<4x8x8xf32> -> vector<4x8x8xf32>
    "tpu.trace_stop"() : () -> ()
    %cst_5 = arith.constant 0.176776692 : f32
    %17 = vector.broadcast %cst_5 : f32 to vector<4x8x8xf32>
    %18 = arith.mulf %16, %17 : vector<4x8x8xf32>
    %19 = tpu.iota {dimensions = array<i32: 0>} : vector<8x8xi32>
    %c0_6 = arith.constant 0 : index
    %20 = memref.load %arg1[%c0_6] : memref<1xi32, #tpu.memory_space<smem>>
    %21 = vector.broadcast %20 : i32 to vector<8x8xi32>
    %22 = arith.addi %19, %21 : vector<8x8xi32>
    %23 = tpu.iota {dimensions = array<i32: 1>} : vector<8x8xi32>
    %24 = arith.cmpi sle, %23, %22 : vector<8x8xi32>
    %cst_7 = arith.constant -1.000000e+30 : f32
    %25 = vector.shape_cast %24 : vector<8x8xi1> to vector<1x8x8xi1>
    %26 = vector.broadcast %25 : vector<1x8x8xi1> to vector<4x8x8xi1>
    %27 = vector.broadcast %cst_7 : f32 to vector<4x8x8xf32>
    %28 = arith.select %26, %18, %27 : vector<4x8x8xi1>, vector<4x8x8xf32>
    %cst_8 = arith.constant dense<0xFF800000> : vector<4x8xf32>
    %29 = vector.multi_reduction <maximumf>, %28, %cst_8 [2] : vector<4x8x8xf32> to vector<4x8xf32>
    %30 = vector.shape_cast %29 : vector<4x8xf32> to vector<4x8x1xf32>
    %31 = vector.broadcast %30 : vector<4x8x1xf32> to vector<4x8x8xf32>
    %32 = arith.subf %28, %31 : vector<4x8x8xf32>
    %33 = math.exp %32 : vector<4x8x8xf32>
    %cst_9 = arith.constant dense<0.000000e+00> : vector<4x8xf32>
    %34 = vector.multi_reduction <add>, %33, %cst_9 [2] : vector<4x8x8xf32> to vector<4x8xf32>
    %35 = vector.shape_cast %34 : vector<4x8xf32> to vector<4x8x1xf32>
    %36 = arith.truncf %33 : vector<4x8x8xf32> to vector<4x8x8xbf16>
    "tpu.trace_start"() <{level = 10 : i32, message = "hqk,hkd->hqd"}> : () -> ()
    %cst_10 = arith.constant dense<0.000000e+00> : vector<4x8x32xf32>
    %37 = tpu.matmul %36, %15, %cst_10 {dimension_numbers = #tpu.dot_dimension_numbers<[2], [1], [1], [2], [0, 0, 0, 1, 1, 2], [0], [0]>} : vector<4x8x8xbf16>, vector<4x8x32xbf16>, vector<4x8x32xf32> -> vector<4x8x32xf32>
    "tpu.trace_stop"() : () -> ()
    %38 = vector.broadcast %35 : vector<4x8x1xf32> to vector<4x8x32xf32>
    %39 = arith.divf %37, %38 : vector<4x8x32xf32>
    %40 = tpu.transpose %39, [1, 0, 2] : vector<4x8x32xf32> -> vector<8x4x32xf32>
    %41 = vector.shape_cast %40 : vector<8x4x32xf32> to vector<8x128xf32>
    %42 = arith.truncf %41 : vector<8x128xf32> to vector<8x128xbf16>
    %c0_11 = arith.constant 0 : index
    %c0_12 = arith.constant 0 : index
    %43 = vector.load %arg4[%c0_11, %c0_12] : memref<128x128xbf16, #tpu.memory_space<vmem>>, vector<128x128xbf16>
    %cst_13 = arith.constant dense<0.000000e+00> : vector<8x128xf32>
    %44 = tpu.matmul %42, %43, %cst_13 {dimension_numbers = #tpu.dot_dimension_numbers<[1], [0], [0], [1], [0, 0, 1, 1], [], []>} : vector<8x128xbf16>, vector<128x128xbf16>, vector<8x128xf32> -> vector<8x128xf32>
    %c0_14 = arith.constant 0 : index
    %c0_15 = arith.constant 0 : index
    %c0_16 = arith.constant 0 : index
    %45 = vector.load %arg5[%c0_14, %c0_15, %c0_16] : memref<1x8x128xbf16, #tpu.memory_space<vmem>>, vector<1x8x128xbf16>
    %46 = vector.shape_cast %45 : vector<1x8x128xbf16> to vector<8x128xbf16>
    %47 = arith.extf %46 : vector<8x128xbf16> to vector<8x128xf32>
    %48 = arith.addf %47, %44 : vector<8x128xf32>
    %49 = arith.truncf %48 : vector<8x128xf32> to vector<8x128xbf16>
    %50 = vector.shape_cast %49 : vector<8x128xbf16> to vector<1x8x128xbf16>
    %c0_17 = arith.constant 0 : index
    %c0_18 = arith.constant 0 : index
    %c0_19 = arith.constant 0 : index
    %51 = vector.load %arg6[%c0_17, %c0_18, %c0_19] : memref<1x8x128xbf16, #tpu.memory_space<vmem>>, vector<1x8x128xbf16>
    tpu.vector_store %arg6[%c0_17, %c0_18, %c0_19], %50 {strides = array<i32>} : memref<1x8x128xbf16, #tpu.memory_space<vmem>>, vector<1x8x128xbf16>,
    return
  }
  func.func @transform_0(%arg0: i32, %arg1: memref<1xi32, #tpu.memory_space<smem>>) -> (i32, i32, i32) {
    %c0_i32 = arith.constant 0 : i32
    %c0_i32_0 = arith.constant 0 : i32
    %c0_i32_1 = arith.constant 0 : i32
    return %arg0, %c0_i32, %c0_i32_0 : i32, i32, i32
  }
  func.func @transform_1(%arg0: i32, %arg1: memref<1xi32, #tpu.memory_space<smem>>) -> (i32, i32, i32) {
    %c0_i32 = arith.constant 0 : i32
    %c0_i32_0 = arith.constant 0 : i32
    %c0_i32_1 = arith.constant 0 : i32
    return %arg0, %c0_i32, %c0_i32_0 : i32, i32, i32
  }
  func.func @transform_2(%arg0: i32, %arg1: memref<1xi32, #tpu.memory_space<smem>>) -> (i32, i32) {
    %c0_i32 = arith.constant 0 : i32
    %c0_i32_0 = arith.constant 0 : i32
    %c0_i32_1 = arith.constant 0 : i32
    return %c0_i32, %c0_i32_0 : i32, i32
  }
  func.func @transform_3(%arg0: i32, %arg1: memref<1xi32, #tpu.memory_space<smem>>) -> (i32, i32, i32) {
    %c0_i32 = arith.constant 0 : i32
    %c0_i32_0 = arith.constant 0 : i32
    %c0_i32_1 = arith.constant 0 : i32
    return %arg0, %c0_i32, %c0_i32_0 : i32, i32, i32
  }
  func.func @transform_4(%arg0: i32, %arg1: memref<1xi32, #tpu.memory_space<smem>>) -> (i32, i32, i32) {
    %c0_i32 = arith.constant 0 : i32
    %c0_i32_0 = arith.constant 0 : i32
    %c0_i32_1 = arith.constant 0 : i32
    return %arg0, %c0_i32, %c0_i32_0 : i32, i32, i32
  }
}

module attributes {stable_mosaic.version = 11 : i64} {
  func.func @_mlp_kernel(%arg0: i32, %arg1: memref<8x128xbf16, #tpu.memory_space<vmem>>, %arg2: memref<1x128xf32, #tpu.memory_space<vmem>>, %arg3: memref<128x256xbf16, #tpu.memory_space<vmem>>, %arg4: memref<128x256xbf16, #tpu.memory_space<vmem>>, %arg5: memref<256x128xbf16, #tpu.memory_space<vmem>>, %arg6: memref<8x128xbf16, #tpu.memory_space<vmem>>) attributes {dimension_semantics = [#tpu.dimension_semantics<parallel>], iteration_bounds = array<i64: 2>, scalar_prefetch = 0 : i64, scratch_operands = 0 : i64, tpu.core_type = #tpu.core_type<tc>, window_params = [{transform_indices = @transform_0, window_bounds = array<i64: 8, 128>}, {pipeline_mode = #tpu.pipeline_mode<synchronous>, transform_indices = @transform_1, window_bounds = array<i64: 1, 128>}, {pipeline_mode = #tpu.pipeline_mode<synchronous>, transform_indices = @transform_2, window_bounds = array<i64: 128, 256>}, {pipeline_mode = #tpu.pipeline_mode<synchronous>, transform_indices = @transform_3, window_bounds = array<i64: 128, 256>}, {pipeline_mode = #tpu.pipeline_mode<synchronous>, transform_indices = @transform_4, window_bounds = array<i64: 256, 128>}, {transform_indices = @transform_5, window_bounds = array<i64: 8, 128>}]} {
    %c0 = arith.constant 0 : index
    %c0_0 = arith.constant 0 : index
    %0 = vector.load %arg1[%c0, %c0_0] : memref<8x128xbf16, #tpu.memory_space<vmem>>, vector<8x128xbf16>
    %1 = arith.extf %0 : vector<8x128xbf16> to vector<8x128xf32>
    %2 = arith.mulf %1, %1 : vector<8x128xf32>
    %cst = arith.constant dense<0.000000e+00> : vector<8xf32>
    %3 = vector.multi_reduction <add>, %2, %cst [1] : vector<8x128xf32> to vector<8xf32>
    %4 = vector.shape_cast %3 : vector<8xf32> to vector<8x1xf32>
    %cst_1 = arith.constant 1.280000e+02 : f32
    %5 = vector.broadcast %cst_1 : f32 to vector<8x1xf32>
    %6 = arith.divf %4, %5 : vector<8x1xf32>
    %cst_2 = arith.constant 9.99999974E-6 : f32
    %7 = vector.broadcast %cst_2 : f32 to vector<8x1xf32>
    %8 = arith.addf %6, %7 : vector<8x1xf32>
    %9 = math.rsqrt %8 : vector<8x1xf32>
    %10 = vector.broadcast %9 : vector<8x1xf32> to vector<8x128xf32>
    %11 = arith.mulf %1, %10 : vector<8x128xf32>
    %c0_3 = arith.constant 0 : index
    %c0_4 = arith.constant 0 : index
    %12 = vector.load %arg2[%c0_3, %c0_4] : memref<1x128xf32, #tpu.memory_space<vmem>>, vector<1x128xf32>
    %13 = vector.broadcast %12 : vector<1x128xf32> to vector<8x128xf32>
    %14 = arith.mulf %11, %13 : vector<8x128xf32>
    %15 = arith.truncf %14 : vector<8x128xf32> to vector<8x128xbf16>
    %c0_5 = arith.constant 0 : index
    %c0_6 = arith.constant 0 : index
    %16 = vector.load %arg3[%c0_5, %c0_6] : memref<128x256xbf16, #tpu.memory_space<vmem>>, vector<128x256xbf16>
    %cst_7 = arith.constant dense<0.000000e+00> : vector<8x256xf32>
    %17 = tpu.matmul %15, %16, %cst_7 {dimension_numbers = #tpu.dot_dimension_numbers<[1], [0], [0], [1], [0, 0, 1, 1], [], []>} : vector<8x128xbf16>, vector<128x256xbf16>, vector<8x256xf32> -> vector<8x256xf32>
    %c0_8 = arith.constant 0 : index
    %c0_9 = arith.constant 0 : index
    %18 = vector.load %arg4[%c0_8, %c0_9] : memref<128x256xbf16, #tpu.memory_space<vmem>>, vector<128x256xbf16>
    %cst_10 = arith.constant dense<0.000000e+00> : vector<8x256xf32>
    %19 = tpu.matmul %15, %18, %cst_10 {dimension_numbers = #tpu.dot_dimension_numbers<[1], [0], [0], [1], [0, 0, 1, 1], [], []>} : vector<8x128xbf16>, vector<128x256xbf16>, vector<8x256xf32> -> vector<8x256xf32>
    %20 = arith.negf %17 : vector<8x256xf32>
    %21 = math.exp %20 : vector<8x256xf32>
    %cst_11 = arith.constant 1.000000e+00 : f32
    %22 = vector.broadcast %cst_11 : f32 to vector<8x256xf32>
    %23 = arith.addf %22, %21 : vector<8x256xf32>
    %24 = arith.divf %22, %23 : vector<8x256xf32>
    %25 = arith.mulf %17, %24 : vector<8x256xf32>
    %26 = arith.mulf %25, %19 : vector<8x256xf32>
    %27 = arith.truncf %26 : vector<8x256xf32> to vector<8x256xbf16>
    %c0_12 = arith.constant 0 : index
    %c0_13 = arith.constant 0 : index
    %28 = vector.load %arg5[%c0_12, %c0_13] : memref<256x128xbf16, #tpu.memory_space<vmem>>, vector<256x128xbf16>
    %cst_14 = arith.constant dense<0.000000e+00> : vector<8x128xf32>
    %29 = tpu.matmul %27, %28, %cst_14 {dimension_numbers = #tpu.dot_dimension_numbers<[1], [0], [0], [1], [0, 0, 1, 1], [], []>} : vector<8x256xbf16>, vector<256x128xbf16>, vector<8x128xf32> -> vector<8x128xf32>
    %30 = arith.addf %1, %29 : vector<8x128xf32>
    %31 = arith.truncf %30 : vector<8x128xf32> to vector<8x128xbf16>
    %c0_15 = arith.constant 0 : index
    %c0_16 = arith.constant 0 : index
    %32 = vector.load %arg6[%c0_15, %c0_16] : memref<8x128xbf16, #tpu.memory_space<vmem>>, vector<8x128xbf16>
    tpu.vector_store %arg6[%c0_15, %c0_16], %31 {strides = array<i32>} : memref<8x128xbf16, #tpu.memory_space<vmem>>, vector<8x128xbf16>,
    return
  }
  func.func @transform_0(%arg0: i32) -> (i32, i32) {
    %c0_i32 = arith.constant 0 : i32
    %c0_i32_0 = arith.constant 0 : i32
    return %arg0, %c0_i32 : i32, i32
  }
  func.func @transform_1(%arg0: i32) -> (i32, i32) {
    %c0_i32 = arith.constant 0 : i32
    %c0_i32_0 = arith.constant 0 : i32
    %c0_i32_1 = arith.constant 0 : i32
    return %c0_i32, %c0_i32_0 : i32, i32
  }
  func.func @transform_2(%arg0: i32) -> (i32, i32) {
    %c0_i32 = arith.constant 0 : i32
    %c0_i32_0 = arith.constant 0 : i32
    %c0_i32_1 = arith.constant 0 : i32
    return %c0_i32, %c0_i32_0 : i32, i32
  }
  func.func @transform_3(%arg0: i32) -> (i32, i32) {
    %c0_i32 = arith.constant 0 : i32
    %c0_i32_0 = arith.constant 0 : i32
    %c0_i32_1 = arith.constant 0 : i32
    return %c0_i32, %c0_i32_0 : i32, i32
  }
  func.func @transform_4(%arg0: i32) -> (i32, i32) {
    %c0_i32 = arith.constant 0 : i32
    %c0_i32_0 = arith.constant 0 : i32
    %c0_i32_1 = arith.constant 0 : i32
    return %c0_i32, %c0_i32_0 : i32, i32
  }
  func.func @transform_5(%arg0: i32) -> (i32, i32) {
    %c0_i32 = arith.constant 0 : i32
    %c0_i32_0 = arith.constant 0 : i32
    return %arg0, %c0_i32 : i32, i32
  }
}

module attributes {stable_mosaic.version = 11 : i64} {
  func.func @_norm_head_kernel(%arg0: i32, %arg1: memref<2x128xbf16, #tpu.memory_space<vmem>>, %arg2: memref<1x128xf32, #tpu.memory_space<vmem>>, %arg3: memref<128x256xbf16, #tpu.memory_space<vmem>>, %arg4: memref<2x256xf32, #tpu.memory_space<vmem>>) attributes {dimension_semantics = [#tpu.dimension_semantics<parallel>], iteration_bounds = array<i64: 1>, scalar_prefetch = 0 : i64, scratch_operands = 0 : i64, tpu.core_type = #tpu.core_type<tc>, window_params = [{pipeline_mode = #tpu.pipeline_mode<synchronous>, transform_indices = @transform_0, window_bounds = array<i64: 2, 128>}, {pipeline_mode = #tpu.pipeline_mode<synchronous>, transform_indices = @transform_1, window_bounds = array<i64: 1, 128>}, {transform_indices = @transform_2, window_bounds = array<i64: 128, 256>}, {transform_indices = @transform_3, window_bounds = array<i64: 2, 256>}]} {
    %c0 = arith.constant 0 : index
    %c0_0 = arith.constant 0 : index
    %0 = vector.load %arg1[%c0, %c0_0] : memref<2x128xbf16, #tpu.memory_space<vmem>>, vector<2x128xbf16>
    %1 = arith.extf %0 : vector<2x128xbf16> to vector<2x128xf32>
    %2 = arith.mulf %1, %1 : vector<2x128xf32>
    %cst = arith.constant dense<0.000000e+00> : vector<2xf32>
    %3 = vector.multi_reduction <add>, %2, %cst [1] : vector<2x128xf32> to vector<2xf32>
    %4 = vector.shape_cast %3 : vector<2xf32> to vector<2x1xf32>
    %cst_1 = arith.constant 1.280000e+02 : f32
    %5 = vector.broadcast %cst_1 : f32 to vector<2x1xf32>
    %6 = arith.divf %4, %5 : vector<2x1xf32>
    %cst_2 = arith.constant 9.99999974E-6 : f32
    %7 = vector.broadcast %cst_2 : f32 to vector<2x1xf32>
    %8 = arith.addf %6, %7 : vector<2x1xf32>
    %9 = math.rsqrt %8 : vector<2x1xf32>
    %10 = vector.broadcast %9 : vector<2x1xf32> to vector<2x128xf32>
    %11 = arith.mulf %1, %10 : vector<2x128xf32>
    %c0_3 = arith.constant 0 : index
    %c0_4 = arith.constant 0 : index
    %12 = vector.load %arg2[%c0_3, %c0_4] : memref<1x128xf32, #tpu.memory_space<vmem>>, vector<1x128xf32>
    %13 = vector.broadcast %12 : vector<1x128xf32> to vector<2x128xf32>
    %14 = arith.mulf %11, %13 : vector<2x128xf32>
    %15 = arith.truncf %14 : vector<2x128xf32> to vector<2x128xbf16>
    %c0_5 = arith.constant 0 : index
    %c0_6 = arith.constant 0 : index
    %16 = vector.load %arg3[%c0_5, %c0_6] : memref<128x256xbf16, #tpu.memory_space<vmem>>, vector<128x256xbf16>
    %cst_7 = arith.constant dense<0.000000e+00> : vector<2x256xf32>
    %17 = tpu.matmul %15, %16, %cst_7 {dimension_numbers = #tpu.dot_dimension_numbers<[1], [0], [0], [1], [0, 0, 1, 1], [], []>} : vector<2x128xbf16>, vector<128x256xbf16>, vector<2x256xf32> -> vector<2x256xf32>
    %c0_8 = arith.constant 0 : index
    %c0_9 = arith.constant 0 : index
    %18 = vector.load %arg4[%c0_8, %c0_9] : memref<2x256xf32, #tpu.memory_space<vmem>>, vector<2x256xf32>
    tpu.vector_store %arg4[%c0_8, %c0_9], %17 {strides = array<i32>} : memref<2x256xf32, #tpu.memory_space<vmem>>, vector<2x256xf32>,
    return
  }
  func.func @transform_0(%arg0: i32) -> (i32, i32) {
    %c0_i32 = arith.constant 0 : i32
    %c0_i32_0 = arith.constant 0 : i32
    %c0_i32_1 = arith.constant 0 : i32
    return %c0_i32, %c0_i32_0 : i32, i32
  }
  func.func @transform_1(%arg0: i32) -> (i32, i32) {
    %c0_i32 = arith.constant 0 : i32
    %c0_i32_0 = arith.constant 0 : i32
    %c0_i32_1 = arith.constant 0 : i32
    return %c0_i32, %c0_i32_0 : i32, i32
  }
  func.func @transform_2(%arg0: i32) -> (i32, i32) {
    %c0_i32 = arith.constant 0 : i32
    %c0_i32_0 = arith.constant 0 : i32
    return %c0_i32, %arg0 : i32, i32
  }
  func.func @transform_3(%arg0: i32) -> (i32, i32) {
    %c0_i32 = arith.constant 0 : i32
    %c0_i32_0 = arith.constant 0 : i32
    return %c0_i32, %arg0 : i32, i32
  }
}

module attributes {stable_mosaic.version = 11 : i64} {
  func.func @_attn_kernel(%arg0: i32, %arg1: memref<1xi32, #tpu.memory_space<smem>>, %arg2: memref<1x1x128xbf16, #tpu.memory_space<vmem>>, %arg3: memref<1x16x128xbf16, #tpu.memory_space<vmem>>, %arg4: memref<128x128xbf16, #tpu.memory_space<vmem>>, %arg5: memref<1x1x128xbf16, #tpu.memory_space<vmem>>, %arg6: memref<1x1x128xbf16, #tpu.memory_space<vmem>>) attributes {dimension_semantics = [#tpu.dimension_semantics<parallel>], iteration_bounds = array<i64: 2>, scalar_prefetch = 1 : i64, scratch_operands = 0 : i64, tpu.core_type = #tpu.core_type<tc>, window_params = [{transform_indices = @transform_0, window_bounds = array<i64: 1, 1, 128>}, {transform_indices = @transform_1, window_bounds = array<i64: 1, 16, 128>}, {pipeline_mode = #tpu.pipeline_mode<synchronous>, transform_indices = @transform_2, window_bounds = array<i64: 128, 128>}, {transform_indices = @transform_3, window_bounds = array<i64: 1, 1, 128>}, {transform_indices = @transform_4, window_bounds = array<i64: 1, 1, 128>}]} {
    %c0 = arith.constant 0 : index
    %c0_0 = arith.constant 0 : index
    %c0_1 = arith.constant 0 : index
    %0 = vector.load %arg2[%c0, %c0_0, %c0_1] : memref<1x1x128xbf16, #tpu.memory_space<vmem>>, vector<1x1x128xbf16>
    %1 = vector.shape_cast %0 : vector<1x1x128xbf16> to vector<1x128xbf16>
    %c0_2 = arith.constant 0 : index
    %c0_3 = arith.constant 0 : index
    %c0_4 = arith.constant 0 : index
    %2 = vector.load %arg3[%c0_2, %c0_3, %c0_4] : memref<1x16x128xbf16, #tpu.memory_space<vmem>>, vector<1x16x128xbf16>
    %3 = vector.shape_cast %2 : vector<1x16x128xbf16> to vector<16x128xbf16>
    %4 = vector.shape_cast %1 : vector<1x128xbf16> to vector<1x4x32xbf16>
    %5 = tpu.transpose %4, [1, 0, 2] : vector<1x4x32xbf16> -> vector<4x1x32xbf16>
    %6 = vector.shape_cast %3 : vector<16x128xbf16> to vector<16x4x32xbf16>
    %7 = tpu.transpose %6, [1, 0, 2] : vector<16x4x32xbf16> -> vector<4x16x32xbf16>
    %8 = vector.extract_strided_slice %7 {offsets = [0, 0, 0], sizes = [2, 16, 32], strides = [1, 1, 1]} : vector<4x16x32xbf16> to vector<2x16x32xbf16>
    %9 = vector.shape_cast %8 : vector<2x16x32xbf16> to vector<2x1x16x32xbf16>
    %10 = vector.broadcast %9 : vector<2x1x16x32xbf16> to vector<2x2x16x32xbf16>
    %11 = vector.shape_cast %10 : vector<2x2x16x32xbf16> to vector<4x16x32xbf16>
    %12 = vector.extract_strided_slice %7 {offsets = [2, 0, 0], sizes = [2, 16, 32], strides = [1, 1, 1]} : vector<4x16x32xbf16> to vector<2x16x32xbf16>
    %13 = vector.shape_cast %12 : vector<2x16x32xbf16> to vector<2x1x16x32xbf16>
    %14 = vector.broadcast %13 : vector<2x1x16x32xbf16> to vector<2x2x16x32xbf16>
    %15 = vector.shape_cast %14 : vector<2x2x16x32xbf16> to vector<4x16x32xbf16>
    "tpu.trace_start"() <{level = 10 : i32, message = "hqd,hkd->hqk"}> : () -> ()
    %cst = arith.constant dense<0.000000e+00> : vector<4x1x16xf32>
    %16 = tpu.matmul %5, %11, %cst {dimension_numbers = #tpu.dot_dimension_numbers<[2], [2], [1], [1], [0, 0, 0, 1, 1, 1], [0], [0]>} : vector<4x1x32xbf16>, vector<4x16x32xbf16>, vector<4x1x16xf32> -> vector<4x1x16xf32>
    "tpu.trace_stop"() : () -> ()
    %cst_5 = arith.constant 0.176776692 : f32
    %17 = vector.broadcast %cst_5 : f32 to vector<4x1x16xf32>
    %18 = arith.mulf %16, %17 : vector<4x1x16xf32>
    %19 = tpu.iota {dimensions = array<i32: 0>} : vector<1x16xi32>
    %c0_6 = arith.constant 0 : index
    %20 = memref.load %arg1[%c0_6] : memref<1xi32, #tpu.memory_space<smem>>
    %21 = vector.broadcast %20 : i32 to vector<1x16xi32>
    %22 = arith.addi %19, %21 : vector<1x16xi32>
    %23 = tpu.iota {dimensions = array<i32: 1>} : vector<1x16xi32>
    %24 = arith.cmpi sle, %23, %22 : vector<1x16xi32>
    %cst_7 = arith.constant -1.000000e+30 : f32
    %25 = vector.shape_cast %24 : vector<1x16xi1> to vector<1x1x16xi1>
    %26 = vector.broadcast %25 : vector<1x1x16xi1> to vector<4x1x16xi1>
    %27 = vector.broadcast %cst_7 : f32 to vector<4x1x16xf32>
    %28 = arith.select %26, %18, %27 : vector<4x1x16xi1>, vector<4x1x16xf32>
    %cst_8 = arith.constant dense<0xFF800000> : vector<4x1xf32>
    %29 = vector.multi_reduction <maximumf>, %28, %cst_8 [2] : vector<4x1x16xf32> to vector<4x1xf32>
    %30 = vector.shape_cast %29 : vector<4x1xf32> to vector<4x1x1xf32>
    %31 = vector.broadcast %30 : vector<4x1x1xf32> to vector<4x1x16xf32>
    %32 = arith.subf %28, %31 : vector<4x1x16xf32>
    %33 = math.exp %32 : vector<4x1x16xf32>
    %cst_9 = arith.constant dense<0.000000e+00> : vector<4x1xf32>
    %34 = vector.multi_reduction <add>, %33, %cst_9 [2] : vector<4x1x16xf32> to vector<4x1xf32>
    %35 = vector.shape_cast %34 : vector<4x1xf32> to vector<4x1x1xf32>
    %36 = arith.truncf %33 : vector<4x1x16xf32> to vector<4x1x16xbf16>
    "tpu.trace_start"() <{level = 10 : i32, message = "hqk,hkd->hqd"}> : () -> ()
    %cst_10 = arith.constant dense<0.000000e+00> : vector<4x1x32xf32>
    %37 = tpu.matmul %36, %15, %cst_10 {dimension_numbers = #tpu.dot_dimension_numbers<[2], [1], [1], [2], [0, 0, 0, 1, 1, 2], [0], [0]>} : vector<4x1x16xbf16>, vector<4x16x32xbf16>, vector<4x1x32xf32> -> vector<4x1x32xf32>
    "tpu.trace_stop"() : () -> ()
    %38 = vector.broadcast %35 : vector<4x1x1xf32> to vector<4x1x32xf32>
    %39 = arith.divf %37, %38 : vector<4x1x32xf32>
    %40 = tpu.transpose %39, [1, 0, 2] : vector<4x1x32xf32> -> vector<1x4x32xf32>
    %41 = vector.shape_cast %40 : vector<1x4x32xf32> to vector<1x128xf32>
    %42 = arith.truncf %41 : vector<1x128xf32> to vector<1x128xbf16>
    %c0_11 = arith.constant 0 : index
    %c0_12 = arith.constant 0 : index
    %43 = vector.load %arg4[%c0_11, %c0_12] : memref<128x128xbf16, #tpu.memory_space<vmem>>, vector<128x128xbf16>
    %cst_13 = arith.constant dense<0.000000e+00> : vector<1x128xf32>
    %44 = tpu.matmul %42, %43, %cst_13 {dimension_numbers = #tpu.dot_dimension_numbers<[1], [0], [0], [1], [0, 0, 1, 1], [], []>} : vector<1x128xbf16>, vector<128x128xbf16>, vector<1x128xf32> -> vector<1x128xf32>
    %c0_14 = arith.constant 0 : index
    %c0_15 = arith.constant 0 : index
    %c0_16 = arith.constant 0 : index
    %45 = vector.load %arg5[%c0_14, %c0_15, %c0_16] : memref<1x1x128xbf16, #tpu.memory_space<vmem>>, vector<1x1x128xbf16>
    %46 = vector.shape_cast %45 : vector<1x1x128xbf16> to vector<1x128xbf16>
    %47 = arith.extf %46 : vector<1x128xbf16> to vector<1x128xf32>
    %48 = arith.addf %47, %44 : vector<1x128xf32>
    %49 = arith.truncf %48 : vector<1x128xf32> to vector<1x128xbf16>
    %50 = vector.shape_cast %49 : vector<1x128xbf16> to vector<1x1x128xbf16>
    %c0_17 = arith.constant 0 : index
    %c0_18 = arith.constant 0 : index
    %c0_19 = arith.constant 0 : index
    %51 = vector.load %arg6[%c0_17, %c0_18, %c0_19] : memref<1x1x128xbf16, #tpu.memory_space<vmem>>, vector<1x1x128xbf16>
    tpu.vector_store %arg6[%c0_17, %c0_18, %c0_19], %50 {strides = array<i32>} : memref<1x1x128xbf16, #tpu.memory_space<vmem>>, vector<1x1x128xbf16>,
    return
  }
  func.func @transform_0(%arg0: i32, %arg1: memref<1xi32, #tpu.memory_space<smem>>) -> (i32, i32, i32) {
    %c0_i32 = arith.constant 0 : i32
    %c0_i32_0 = arith.constant 0 : i32
    %c0_i32_1 = arith.constant 0 : i32
    return %arg0, %c0_i32, %c0_i32_0 : i32, i32, i32
  }
  func.func @transform_1(%arg0: i32, %arg1: memref<1xi32, #tpu.memory_space<smem>>) -> (i32, i32, i32) {
    %c0_i32 = arith.constant 0 : i32
    %c0_i32_0 = arith.constant 0 : i32
    %c0_i32_1 = arith.constant 0 : i32
    return %arg0, %c0_i32, %c0_i32_0 : i32, i32, i32
  }
  func.func @transform_2(%arg0: i32, %arg1: memref<1xi32, #tpu.memory_space<smem>>) -> (i32, i32) {
    %c0_i32 = arith.constant 0 : i32
    %c0_i32_0 = arith.constant 0 : i32
    %c0_i32_1 = arith.constant 0 : i32
    return %c0_i32, %c0_i32_0 : i32, i32
  }
  func.func @transform_3(%arg0: i32, %arg1: memref<1xi32, #tpu.memory_space<smem>>) -> (i32, i32, i32) {
    %c0_i32 = arith.constant 0 : i32
    %c0_i32_0 = arith.constant 0 : i32
    %c0_i32_1 = arith.constant 0 : i32
    return %arg0, %c0_i32, %c0_i32_0 : i32, i32, i32
  }
  func.func @transform_4(%arg0: i32, %arg1: memref<1xi32, #tpu.memory_space<smem>>) -> (i32, i32, i32) {
    %c0_i32 = arith.constant 0 : i32
    %c0_i32_0 = arith.constant 0 : i32
    %c0_i32_1 = arith.constant 0 : i32
    return %arg0, %c0_i32, %c0_i32_0 : i32, i32, i32
  }
}

module attributes {stable_mosaic.version = 11 : i64} {
  func.func @_mlp_kernel(%arg0: i32, %arg1: memref<2x128xbf16, #tpu.memory_space<vmem>>, %arg2: memref<1x128xf32, #tpu.memory_space<vmem>>, %arg3: memref<128x256xbf16, #tpu.memory_space<vmem>>, %arg4: memref<128x256xbf16, #tpu.memory_space<vmem>>, %arg5: memref<256x128xbf16, #tpu.memory_space<vmem>>, %arg6: memref<2x128xbf16, #tpu.memory_space<vmem>>) attributes {dimension_semantics = [#tpu.dimension_semantics<parallel>], iteration_bounds = array<i64: 1>, scalar_prefetch = 0 : i64, scratch_operands = 0 : i64, tpu.core_type = #tpu.core_type<tc>, window_params = [{transform_indices = @transform_0, window_bounds = array<i64: 2, 128>}, {pipeline_mode = #tpu.pipeline_mode<synchronous>, transform_indices = @transform_1, window_bounds = array<i64: 1, 128>}, {pipeline_mode = #tpu.pipeline_mode<synchronous>, transform_indices = @transform_2, window_bounds = array<i64: 128, 256>}, {pipeline_mode = #tpu.pipeline_mode<synchronous>, transform_indices = @transform_3, window_bounds = array<i64: 128, 256>}, {pipeline_mode = #tpu.pipeline_mode<synchronous>, transform_indices = @transform_4, window_bounds = array<i64: 256, 128>}, {transform_indices = @transform_5, window_bounds = array<i64: 2, 128>}]} {
    %c0 = arith.constant 0 : index
    %c0_0 = arith.constant 0 : index
    %0 = vector.load %arg1[%c0, %c0_0] : memref<2x128xbf16, #tpu.memory_space<vmem>>, vector<2x128xbf16>
    %1 = arith.extf %0 : vector<2x128xbf16> to vector<2x128xf32>
    %2 = arith.mulf %1, %1 : vector<2x128xf32>
    %cst = arith.constant dense<0.000000e+00> : vector<2xf32>
    %3 = vector.multi_reduction <add>, %2, %cst [1] : vector<2x128xf32> to vector<2xf32>
    %4 = vector.shape_cast %3 : vector<2xf32> to vector<2x1xf32>
    %cst_1 = arith.constant 1.280000e+02 : f32
    %5 = vector.broadcast %cst_1 : f32 to vector<2x1xf32>
    %6 = arith.divf %4, %5 : vector<2x1xf32>
    %cst_2 = arith.constant 9.99999974E-6 : f32
    %7 = vector.broadcast %cst_2 : f32 to vector<2x1xf32>
    %8 = arith.addf %6, %7 : vector<2x1xf32>
    %9 = math.rsqrt %8 : vector<2x1xf32>
    %10 = vector.broadcast %9 : vector<2x1xf32> to vector<2x128xf32>
    %11 = arith.mulf %1, %10 : vector<2x128xf32>
    %c0_3 = arith.constant 0 : index
    %c0_4 = arith.constant 0 : index
    %12 = vector.load %arg2[%c0_3, %c0_4] : memref<1x128xf32, #tpu.memory_space<vmem>>, vector<1x128xf32>
    %13 = vector.broadcast %12 : vector<1x128xf32> to vector<2x128xf32>
    %14 = arith.mulf %11, %13 : vector<2x128xf32>
    %15 = arith.truncf %14 : vector<2x128xf32> to vector<2x128xbf16>
    %c0_5 = arith.constant 0 : index
    %c0_6 = arith.constant 0 : index
    %16 = vector.load %arg3[%c0_5, %c0_6] : memref<128x256xbf16, #tpu.memory_space<vmem>>, vector<128x256xbf16>
    %cst_7 = arith.constant dense<0.000000e+00> : vector<2x256xf32>
    %17 = tpu.matmul %15, %16, %cst_7 {dimension_numbers = #tpu.dot_dimension_numbers<[1], [0], [0], [1], [0, 0, 1, 1], [], []>} : vector<2x128xbf16>, vector<128x256xbf16>, vector<2x256xf32> -> vector<2x256xf32>
    %c0_8 = arith.constant 0 : index
    %c0_9 = arith.constant 0 : index
    %18 = vector.load %arg4[%c0_8, %c0_9] : memref<128x256xbf16, #tpu.memory_space<vmem>>, vector<128x256xbf16>
    %cst_10 = arith.constant dense<0.000000e+00> : vector<2x256xf32>
    %19 = tpu.matmul %15, %18, %cst_10 {dimension_numbers = #tpu.dot_dimension_numbers<[1], [0], [0], [1], [0, 0, 1, 1], [], []>} : vector<2x128xbf16>, vector<128x256xbf16>, vector<2x256xf32> -> vector<2x256xf32>
    %20 = arith.negf %17 : vector<2x256xf32>
    %21 = math.exp %20 : vector<2x256xf32>
    %cst_11 = arith.constant 1.000000e+00 : f32
    %22 = vector.broadcast %cst_11 : f32 to vector<2x256xf32>
    %23 = arith.addf %22, %21 : vector<2x256xf32>
    %24 = arith.divf %22, %23 : vector<2x256xf32>
    %25 = arith.mulf %17, %24 : vector<2x256xf32>
    %26 = arith.mulf %25, %19 : vector<2x256xf32>
    %27 = arith.truncf %26 : vector<2x256xf32> to vector<2x256xbf16>
    %c0_12 = arith.constant 0 : index
    %c0_13 = arith.constant 0 : index
    %28 = vector.load %arg5[%c0_12, %c0_13] : memref<256x128xbf16, #tpu.memory_space<vmem>>, vector<256x128xbf16>
    %cst_14 = arith.constant dense<0.000000e+00> : vector<2x128xf32>
    %29 = tpu.matmul %27, %28, %cst_14 {dimension_numbers = #tpu.dot_dimension_numbers<[1], [0], [0], [1], [0, 0, 1, 1], [], []>} : vector<2x256xbf16>, vector<256x128xbf16>, vector<2x128xf32> -> vector<2x128xf32>
    %30 = arith.addf %1, %29 : vector<2x128xf32>
    %31 = arith.truncf %30 : vector<2x128xf32> to vector<2x128xbf16>
    %c0_15 = arith.constant 0 : index
    %c0_16 = arith.constant 0 : index
    %32 = vector.load %arg6[%c0_15, %c0_16] : memref<2x128xbf16, #tpu.memory_space<vmem>>, vector<2x128xbf16>
    tpu.vector_store %arg6[%c0_15, %c0_16], %31 {strides = array<i32>} : memref<2x128xbf16, #tpu.memory_space<vmem>>, vector<2x128xbf16>,
    return
  }
  func.func @transform_0(%arg0: i32) -> (i32, i32) {
    %c0_i32 = arith.constant 0 : i32
    %c0_i32_0 = arith.constant 0 : i32
    return %arg0, %c0_i32 : i32, i32
  }
  func.func @transform_1(%arg0: i32) -> (i32, i32) {
    %c0_i32 = arith.constant 0 : i32
    %c0_i32_0 = arith.constant 0 : i32
    %c0_i32_1 = arith.constant 0 : i32
    return %c0_i32, %c0_i32_0 : i32, i32
  }
  func.func @transform_2(%arg0: i32) -> (i32, i32) {
    %c0_i32 = arith.constant 0 : i32
    %c0_i32_0 = arith.constant 0 : i32
    %c0_i32_1 = arith.constant 0 : i32
    return %c0_i32, %c0_i32_0 : i32, i32
  }
  func.func @transform_3(%arg0: i32) -> (i32, i32) {
    %c0_i32 = arith.constant 0 : i32
    %c0_i32_0 = arith.constant 0 : i32
    %c0_i32_1 = arith.constant 0 : i32
    return %c0_i32, %c0_i32_0 : i32, i32
  }
  func.func @transform_4(%arg0: i32) -> (i32, i32) {
    %c0_i32 = arith.constant 0 : i32
    %c0_i32_0 = arith.constant 0 : i32
    %c0_i32_1 = arith.constant 0 : i32
    return %c0_i32, %c0_i32_0 : i32, i32
  }
  func.func @transform_5(%arg0: i32) -> (i32, i32) {
    %c0_i32 = arith.constant 0 : i32
    %c0_i32_0 = arith.constant 0 : i32
    return %arg0, %c0_i32 : i32, i32
  }
}

module attributes {stable_mosaic.version = 11 : i64} {
  func.func @_norm_qkv_rope_kernel(%arg0: i32, %arg1: memref<2x128xbf16, #tpu.memory_space<vmem>>, %arg2: memref<1x128xf32, #tpu.memory_space<vmem>>, %arg3: memref<128x256xbf16, #tpu.memory_space<vmem>>, %arg4: memref<2x256xf32, #tpu.memory_space<vmem>>, %arg5: memref<2x256xf32, #tpu.memory_space<vmem>>, %arg6: memref<2x128xbf16, #tpu.memory_space<vmem>>, %arg7: memref<2x128xbf16, #tpu.memory_space<vmem>>) attributes {dimension_semantics = [#tpu.dimension_semantics<parallel>], iteration_bounds = array<i64: 1>, scalar_prefetch = 0 : i64, scratch_operands = 0 : i64, tpu.core_type = #tpu.core_type<tc>, window_params = [{transform_indices = @transform_0, window_bounds = array<i64: 2, 128>}, {pipeline_mode = #tpu.pipeline_mode<synchronous>, transform_indices = @transform_1, window_bounds = array<i64: 1, 128>}, {pipeline_mode = #tpu.pipeline_mode<synchronous>, transform_indices = @transform_2, window_bounds = array<i64: 128, 256>}, {transform_indices = @transform_3, window_bounds = array<i64: 2, 256>}, {transform_indices = @transform_4, window_bounds = array<i64: 2, 256>}, {transform_indices = @transform_5, window_bounds = array<i64: 2, 128>}, {transform_indices = @transform_6, window_bounds = array<i64: 2, 128>}]} {
    %c0 = arith.constant 0 : index
    %c0_0 = arith.constant 0 : index
    %0 = vector.load %arg1[%c0, %c0_0] : memref<2x128xbf16, #tpu.memory_space<vmem>>, vector<2x128xbf16>
    %1 = arith.extf %0 : vector<2x128xbf16> to vector<2x128xf32>
    %2 = arith.mulf %1, %1 : vector<2x128xf32>
    %cst = arith.constant dense<0.000000e+00> : vector<2xf32>
    %3 = vector.multi_reduction <add>, %2, %cst [1] : vector<2x128xf32> to vector<2xf32>
    %4 = vector.shape_cast %3 : vector<2xf32> to vector<2x1xf32>
    %cst_1 = arith.constant 1.280000e+02 : f32
    %5 = vector.broadcast %cst_1 : f32 to vector<2x1xf32>
    %6 = arith.divf %4, %5 : vector<2x1xf32>
    %cst_2 = arith.constant 9.99999974E-6 : f32
    %7 = vector.broadcast %cst_2 : f32 to vector<2x1xf32>
    %8 = arith.addf %6, %7 : vector<2x1xf32>
    %9 = math.rsqrt %8 : vector<2x1xf32>
    %10 = vector.broadcast %9 : vector<2x1xf32> to vector<2x128xf32>
    %11 = arith.mulf %1, %10 : vector<2x128xf32>
    %c0_3 = arith.constant 0 : index
    %c0_4 = arith.constant 0 : index
    %12 = vector.load %arg2[%c0_3, %c0_4] : memref<1x128xf32, #tpu.memory_space<vmem>>, vector<1x128xf32>
    %13 = vector.broadcast %12 : vector<1x128xf32> to vector<2x128xf32>
    %14 = arith.mulf %11, %13 : vector<2x128xf32>
    %15 = arith.truncf %14 : vector<2x128xf32> to vector<2x128xbf16>
    %c0_5 = arith.constant 0 : index
    %c0_6 = arith.constant 0 : index
    %16 = vector.load %arg3[%c0_5, %c0_6] : memref<128x256xbf16, #tpu.memory_space<vmem>>, vector<128x256xbf16>
    %cst_7 = arith.constant dense<0.000000e+00> : vector<2x256xf32>
    %17 = tpu.matmul %15, %16, %cst_7 {dimension_numbers = #tpu.dot_dimension_numbers<[1], [0], [0], [1], [0, 0, 1, 1], [], []>} : vector<2x128xbf16>, vector<128x256xbf16>, vector<2x256xf32> -> vector<2x256xf32>
    %c16_i32 = arith.constant 16 : i32
    %18 = tpu.dynamic_rotate %17 by %c16_i32 dim 1 : vector<2x256xf32>, i32 -> vector<2x256xf32>
    %c240_i32 = arith.constant 240 : i32
    %19 = tpu.dynamic_rotate %17 by %c240_i32 dim 1 : vector<2x256xf32>, i32 -> vector<2x256xf32>
    %20 = tpu.iota {dimensions = array<i32: 1>} : vector<2x256xi32>
    %c32_i32 = arith.constant 32 : i32
    %c0_i32 = arith.constant 0 : i32
    %21 = arith.cmpi eq, %c32_i32, %c0_i32 : i32
    %c1_i32 = arith.constant 1 : i32
    %22 = arith.select %21, %c1_i32, %c32_i32 : i32
    %23 = vector.broadcast %22 : i32 to vector<2x256xi32>
    %24 = arith.remsi %20, %23 : vector<2x256xi32>
    %c0_i32_8 = arith.constant 0 : i32
    %25 = vector.broadcast %c0_i32_8 : i32 to vector<2x256xi32>
    %26 = arith.cmpi ne, %24, %25 : vector<2x256xi32>
    %c0_i32_9 = arith.constant 0 : i32
    %27 = vector.broadcast %c0_i32_9 : i32 to vector<2x256xi32>
    %28 = arith.cmpi slt, %24, %27 : vector<2x256xi32>
    %c0_i32_10 = arith.constant 0 : i32
    %29 = arith.cmpi slt, %22, %c0_i32_10 : i32
    %30 = vector.broadcast %29 : i1 to vector<2x256xi1>
    %31 = vector.broadcast %30 : vector<2x256xi1> to vector<2x256xi1>
    %32 = arith.xori %28, %31 : vector<2x256xi1>
    %33 = arith.andi %32, %26 : vector<2x256xi1>
    %34 = vector.broadcast %22 : i32 to vector<2x256xi32>
    %35 = arith.addi %24, %34 : vector<2x256xi32>
    %36 = arith.select %33, %35, %24 : vector<2x256xi1>, vector<2x256xi32>
    %c16_i32_11 = arith.constant 16 : i32
    %37 = vector.broadcast %c16_i32_11 : i32 to vector<2x256xi32>
    %38 = arith.cmpi slt, %36, %37 : vector<2x256xi32>
    %39 = arith.select %38, %19, %18 : vector<2x256xi1>, vector<2x256xf32>
    %c0_12 = arith.constant 0 : index
    %c0_13 = arith.constant 0 : index
    %40 = vector.load %arg4[%c0_12, %c0_13] : memref<2x256xf32, #tpu.memory_space<vmem>>, vector<2x256xf32>
    %41 = arith.mulf %17, %40 : vector<2x256xf32>
    %c0_14 = arith.constant 0 : index
    %c0_15 = arith.constant 0 : index
    %42 = vector.load %arg5[%c0_14, %c0_15] : memref<2x256xf32, #tpu.memory_space<vmem>>, vector<2x256xf32>
    %43 = arith.mulf %39, %42 : vector<2x256xf32>
    %44 = arith.addf %41, %43 : vector<2x256xf32>
    %45 = vector.extract_strided_slice %44 {offsets = [0, 0], sizes = [2, 128], strides = [1, 1]} : vector<2x256xf32> to vector<2x128xf32>
    %46 = arith.truncf %45 : vector<2x128xf32> to vector<2x128xbf16>
    %c0_16 = arith.constant 0 : index
    %c0_17 = arith.constant 0 : index
    %47 = vector.load %arg6[%c0_16, %c0_17] : memref<2x128xbf16, #tpu.memory_space<vmem>>, vector<2x128xbf16>
    tpu.vector_store %arg6[%c0_16, %c0_17], %46 {strides = array<i32>} : memref<2x128xbf16, #tpu.memory_space<vmem>>, vector<2x128xbf16>,
    %48 = vector.extract_strided_slice %44 {offsets = [0, 128], sizes = [2, 128], strides = [1, 1]} : vector<2x256xf32> to vector<2x128xf32>
    %49 = arith.truncf %48 : vector<2x128xf32> to vector<2x128xbf16>
    %c0_18 = arith.constant 0 : index
    %c0_19 = arith.constant 0 : index
    %50 = vector.load %arg7[%c0_18, %c0_19] : memref<2x128xbf16, #tpu.memory_space<vmem>>, vector<2x128xbf16>
    tpu.vector_store %arg7[%c0_18, %c0_19], %49 {strides = array<i32>} : memref<2x128xbf16, #tpu.memory_space<vmem>>, vector<2x128xbf16>,
    return
  }
  func.func @transform_0(%arg0: i32) -> (i32, i32) {
    %c0_i32 = arith.constant 0 : i32
    %c0_i32_0 = arith.constant 0 : i32
    return %arg0, %c0_i32 : i32, i32
  }
  func.func @transform_1(%arg0: i32) -> (i32, i32) {
    %c0_i32 = arith.constant 0 : i32
    %c0_i32_0 = arith.constant 0 : i32
    %c0_i32_1 = arith.constant 0 : i32
    return %c0_i32, %c0_i32_0 : i32, i32
  }
  func.func @transform_2(%arg0: i32) -> (i32, i32) {
    %c0_i32 = arith.constant 0 : i32
    %c0_i32_0 = arith.constant 0 : i32
    %c0_i32_1 = arith.constant 0 : i32
    return %c0_i32, %c0_i32_0 : i32, i32
  }
  func.func @transform_3(%arg0: i32) -> (i32, i32) {
    %c0_i32 = arith.constant 0 : i32
    %c0_i32_0 = arith.constant 0 : i32
    return %arg0, %c0_i32 : i32, i32
  }
  func.func @transform_4(%arg0: i32) -> (i32, i32) {
    %c0_i32 = arith.constant 0 : i32
    %c0_i32_0 = arith.constant 0 : i32
    return %arg0, %c0_i32 : i32, i32
  }
  func.func @transform_5(%arg0: i32) -> (i32, i32) {
    %c0_i32 = arith.constant 0 : i32
    %c0_i32_0 = arith.constant 0 : i32
    return %arg0, %c0_i32 : i32, i32
  }
  func.func @transform_6(%arg0: i32) -> (i32, i32) {
    %c0_i32 = arith.constant 0 : i32
    %c0_i32_0 = arith.constant 0 : i32
    return %arg0, %c0_i32 : i32, i32
  }
}

</mosaic_0001>

<llo_original>
// kernel: tile.29
$region0: #{tile.29}
  %s0 = inlined_call_operand.vmem [shape: f32[16,6,32], index: 0, kind: input, shape index: {}]
  %s1 = inlined_call_operand.vmem [shape: f32[16,192], index: 1, kind: output, shape index: {}]
  %v2 = vld [vmem:[%s0] ss:$4 sm:$0xff]
  %vm3 = vcmask 261120
  %4 = vst.msk [vmem:[%s1] ss:$8 sm:$0x3] %vm3, %v2
  %s5 = scalar_lea.vmem %s1, 4294967281
  %6 = vst.msk [vmem:[%s5] ss:$8 sm:$0xc] %vm3, %v2
  %s7 = scalar_lea.vmem %s1, 4294967266
  %8 = vst.msk [vmem:[%s7] ss:$8 sm:$0x30] %vm3, %v2
  %s9 = scalar_lea.vmem %s1, 4294967251
  %10 = vst.msk [vmem:[%s9] ss:$8 sm:$0xc0] %vm3, %v2
  %s11 = scalar_lea.vmem %s0, 32
  %v12 = vld [vmem:[%s11] ss:$4 sm:$0xff]
  %vm13 = vcmask 261120
  %s14 = scalar_lea.vmem %s1, 4
  %15 = vst.msk [vmem:[%s14] ss:$8 sm:$0x3] %vm13, %v12
  %s16 = scalar_lea.vmem %s1, 4294967285
  %17 = vst.msk [vmem:[%s16] ss:$8 sm:$0xc] %vm13, %v12
  %s18 = scalar_lea.vmem %s1, 4294967270
  %19 = vst.msk [vmem:[%s18] ss:$8 sm:$0x30] %vm13, %v12
  %s20 = scalar_lea.vmem %s1, 4294967255
  %21 = vst.msk [vmem:[%s20] ss:$8 sm:$0xc0] %vm13, %v12
  %s22 = scalar_lea.vmem %s0, 64
  %v23 = vld [vmem:[%s22] ss:$4 sm:$0xff]
  %vm24 = vcmask 261120
  %s25 = scalar_lea.vmem %s1, 16
  %26 = vst.msk [vmem:[%s25] ss:$8 sm:$0x3] %vm24, %v23
  %s27 = scalar_lea.vmem %s1, 1
  %28 = vst.msk [vmem:[%s27] ss:$8 sm:$0xc] %vm24, %v23
  %s29 = scalar_lea.vmem %s1, 4294967282
  %30 = vst.msk [vmem:[%s29] ss:$8 sm:$0x30] %vm24, %v23
  %s31 = scalar_lea.vmem %s1, 4294967267
  %32 = vst.msk [vmem:[%s31] ss:$8 sm:$0xc0] %vm24, %v23
  %s33 = scalar_lea.vmem %s0, 96
  %v34 = vld [vmem:[%s33] ss:$4 sm:$0xff]
  %vm35 = vcmask 261120
  %s36 = scalar_lea.vmem %s1, 20
  %37 = vst.msk [vmem:[%s36] ss:$8 sm:$0x3] %vm35, %v34
  %s38 = scalar_lea.vmem %s1, 5
  %39 = vst.msk [vmem:[%s38] ss:$8 sm:$0xc] %vm35, %v34
  %s40 = scalar_lea.vmem %s1, 4294967286
  %41 = vst.msk [vmem:[%s40] ss:$8 sm:$0x30] %vm35, %v34
  %s42 = scalar_lea.vmem %s1, 4294967271
  %43 = vst.msk [vmem:[%s42] ss:$8 sm:$0xc0] %vm35, %v34
  %s44 = scalar_lea.vmem %s0, 3
  %v45 = vld [vmem:[%s44] ss:$8 sm:$0xf]
  %s46 = scalar_lea.vmem %s0, 3
  %v47 = vld [vmem:[%s46] ss:$8 sm:$0xf0]
  %vm48 = vcmask 1047556
  %v49 = vsel %vm48, %v47, %v45
  %50 = vrot.lane.b32.xlu0 %v49, 96
  %v51 = vpop.permute.xlu0 %50
  %vm52 = vcmask 1048320
  %53 = vst.msk [vmem:[%s1] sm:$0xff] %vm52, %v51
  %s54 = scalar_lea.vmem %s0, 67
  %v55 = vld [vmem:[%s54] ss:$8 sm:$0xf]
  %s56 = scalar_lea.vmem %s0, 67
  %v57 = vld [vmem:[%s56] ss:$8 sm:$0xf0]
  %vm58 = vcmask 1047556
  %v59 = vsel %vm58, %v57, %v55
  %60 = vrot.lane.b32.xlu0 %v59, 96
  %v61 = vpop.permute.xlu0 %60
  %vm62 = vcmask 1048320
  %s63 = scalar_lea.vmem %s1, 16
  %64 = vst.msk [vmem:[%s63] sm:$0xff] %vm62, %v61
  %s65 = scalar_lea.vmem %s0, 2
  %v66 = vld [vmem:[%s65] ss:$8 sm:$0xf]
  %s67 = scalar_lea.vmem %s0, 2
  %v68 = vld [vmem:[%s67] ss:$8 sm:$0xf0]
  %vm69 = vcmask 1047556
  %v70 = vsel %vm69, %v68, %v66
  %71 = vrot.lane.b32.xlu0 %v70, 64
  %v72 = vpop.permute.xlu0 %71
  %vm73 = vcmask 785920
  %74 = vst.msk [vmem:[%s1] sm:$0xff] %vm73, %v72
  %s75 = scalar_lea.vmem %s0, 66
  %v76 = vld [vmem:[%s75] ss:$8 sm:$0xf]
  %s77 = scalar_lea.vmem %s0, 66
  %v78 = vld [vmem:[%s77] ss:$8 sm:$0xf0]
  %vm79 = vcmask 1047556
  %v80 = vsel %vm79, %v78, %v76
  %81 = vrot.lane.b32.xlu0 %v80, 64
  %v82 = vpop.permute.xlu0 %81
  %vm83 = vcmask 785920
  %s84 = scalar_lea.vmem %s1, 16
  %85 = vst.msk [vmem:[%s84] sm:$0xff] %vm83, %v82
  %s86 = scalar_lea.vmem %s0, 1
  %v87 = vld [vmem:[%s86] ss:$8 sm:$0xf]
  %s88 = scalar_lea.vmem %s0, 1
  %v89 = vld [vmem:[%s88] ss:$8 sm:$0xf0]
  %vm90 = vcmask 1047556
  %v91 = vsel %vm90, %v89, %v87
  %92 = vrot.lane.b32.xlu0 %v91, 32
  %v93 = vpop.permute.xlu0 %92
  %vm94 = vcmask 523520
  %95 = vst.msk [vmem:[%s1] sm:$0xff] %vm94, %v93
  %s96 = scalar_lea.vmem %s0, 5
  %v97 = vld [vmem:[%s96] ss:$8 sm:$0xf]
  %s98 = scalar_lea.vmem %s0, 5
  %v99 = vld [vmem:[%s98] ss:$8 sm:$0xf0]
  %vm100 = vcmask 1047556
  %v101 = vsel %vm100, %v99, %v97
  %102 = vrot.lane.b32.xlu0 %v101, 32
  %v103 = vpop.permute.xlu0 %102
  %vm104 = vcmask 523520
  %s105 = scalar_lea.vmem %s1, 8
  %106 = vst.msk [vmem:[%s105] sm:$0xff] %vm104, %v103
  %s107 = scalar_lea.vmem %s0, 65
  %v108 = vld [vmem:[%s107] ss:$8 sm:$0xf]
  %s109 = scalar_lea.vmem %s0, 65
  %v110 = vld [vmem:[%s109] ss:$8 sm:$0xf0]
  %vm111 = vcmask 1047556
  %v112 = vsel %vm111, %v110, %v108
  %113 = vrot.lane.b32.xlu0 %v112, 32
  %v114 = vpop.permute.xlu0 %113
  %vm115 = vcmask 523520
  %s116 = scalar_lea.vmem %s1, 16
  %117 = vst.msk [vmem:[%s116] sm:$0xff] %vm115, %v114
  %s118 = scalar_lea.vmem %s0, 69
  %v119 = vld [vmem:[%s118] ss:$8 sm:$0xf]
  %s120 = scalar_lea.vmem %s0, 69
  %v121 = vld [vmem:[%s120] ss:$8 sm:$0xf0]
  %vm122 = vcmask 1047556
  %v123 = vsel %vm122, %v121, %v119
  %124 = vrot.lane.b32.xlu0 %v123, 32
  %v125 = vpop.permute.xlu0 %124
  %vm126 = vcmask 523520
  %s127 = scalar_lea.vmem %s1, 24
  %128 = vst.msk [vmem:[%s127] sm:$0xff] %vm126, %v125

// kernel: greedy_generate.7
$region0: #{greedy_generate.7}
  #allocation0 [shape = 'u32[]', space=smem, size = 0x4, offset = 0x4, fixed_abs, tag = 'smem constant byte address 0x4 - core index']
  #allocation1 [shape = 'u32[144,128]{1,0:T(1,128)}', space=vmem, size = 0x12000, scoped, tag = 'internal scratch']
  %s0 = inlined_call_operand.vmem [shape: bf16[16,128], index: 0, kind: input, shape index: {}]
  %s1 = inlined_call_operand.vmem [shape: f32[1,128], index: 1, kind: input, shape index: {}]
  %s2 = inlined_call_operand.vmem [shape: bf16[128,256], index: 2, kind: input, shape index: {}]
  %s3 = inlined_call_operand.vmem [shape: f32[16,256], index: 3, kind: input, shape index: {}]
  %s4 = inlined_call_operand.vmem [shape: f32[16,256], index: 4, kind: input, shape index: {}]
  %s5 = inlined_call_operand.vmem [shape: bf16[16,128], index: 5, kind: output, shape index: {0}]
  %s6 = inlined_call_operand.vmem [shape: bf16[16,128], index: 6, kind: output, shape index: {1}]
  %7 = xla_tuple %s5, %s6
  %s8 = sld [smem:[#allocation0]]
  $region61: #{greedy_generate.7} parent=0
    _
  %s10 = ssub.s32 1, %s8
  %s11 = scalar_select 0, %s10, %s8
  loop: start=0, step=1, limit=4
  $region2: #{greedy_generate.7} parent=0 // loop_pre_header
    _
  $region3: #{greedy_generate.7} parent=0 // loop_header
    %s13 = sphi 0, %s17
    %p14 = scmp.ge.s32.totalorder %s13, 4
    %s23 = sphi 0, %s25
    %s26 = sphi 0, %s23
    %s27 = sphi 0, %s26
    %s43 = sphi 0, %s27
    %s47 = sphi 0, %s47
    %s49 = sphi 0, %s47
    %s50 = sphi 0, %s49
    %s64 = sphi 0, %s50
    %s68 = sphi 0, %s68
    %s70 = sphi 0, %s68
    %s71 = sphi 0, %s70
    %s85 = sphi 0, %s71
    %s91 = sphi 0, %s93
    %s94 = sphi 0, %s91
    %s95 = sphi 0, %s94
    %s111 = sphi 0, %s95
    %s117 = sphi 0, %s119
    %s120 = sphi 0, %s117
    %s121 = sphi 0, %s120
    %s137 = sphi 0, %s121
    %s143 = sphi 0, %s145
    %s146 = sphi 0, %s143
    %s147 = sphi 0, %s146
    %s163 = sphi 0, %s147
    %s169 = sphi 0, %s171
    %s172 = sphi 0, %s169
    %s173 = sphi 0, %s172
    %s189 = sphi 0, %s173
  $region4: #{greedy_generate.7} parent=0 // loop_header_branch
    %16 = sbr.rel (%p14) target = $region8
  $region5: #{greedy_generate.7} parent=0 // loop_body
    %s18 = ssub.s32 %s13, 1
    %s19 = ssub.s32 %s13, 2
    %s20 = sadd.s32 %s13, 1
    %s21 = ssub.s32 %s13, %s20
    %p22 = scmp.eq.s32.totalorder %s21, 0
    %s24 = sadd.s32 %s23, 1
    %s25 = scalar_select %p22, %s23, %s24
    %p28 = pneg %p22
    %p29 = scmp.eq.s32.totalorder %s13, 1
    %p30 = por %p28, %p29
    %p31 = scmp.ne.s32.totalorder %s23, %s26
    %p32 = scmp.eq.s32.totalorder %s13, 0
    %p33 = por %p31, %p32
    %p34 = scmp.ne.s32.totalorder %s23, %s26
    %p35 = scmp.eq.s32.totalorder %s18, 1
    %p36 = por %p34, %p35
    %p37 = scmp.ne.s32.totalorder %s26, %s27
    %p38 = scmp.eq.s32.totalorder %s18, 0
    %p39 = por %p37, %p38
    %p40 = scmp.ne.s32.totalorder %s26, %s27
    %p41 = scmp.eq.s32.totalorder %s19, 1
    %p42 = por %p40, %p41
    %p44 = scmp.ne.s32.totalorder %s27, %s43
    %p45 = scmp.eq.s32.totalorder %s19, 0
    %p46 = por %p44, %p45
    %s48 = sadd.s32 %s47, 1
    %p51 = scmp.eq.s32.totalorder %s13, 1
    %p52 = scmp.ne.s32.totalorder %s47, %s49
    %p53 = scmp.eq.s32.totalorder %s13, 0
    %p54 = por %p52, %p53
    %p55 = scmp.ne.s32.totalorder %s47, %s49
    %p56 = scmp.eq.s32.totalorder %s18, 1
    %p57 = por %p55, %p56
    %p58 = scmp.ne.s32.totalorder %s49, %s50
    %p59 = scmp.eq.s32.totalorder %s18, 0
    %p60 = por %p58, %p59
    %p61 = scmp.ne.s32.totalorder %s49, %s50
    %p62 = scmp.eq.s32.totalorder %s19, 1
    %p63 = por %p61, %p62
    %p65 = scmp.ne.s32.totalorder %s50, %s64
    %p66 = scmp.eq.s32.totalorder %s19, 0
    %p67 = por %p65, %p66
    %s69 = sadd.s32 %s68, 1
    %p72 = scmp.eq.s32.totalorder %s13, 1
    %p73 = scmp.ne.s32.totalorder %s68, %s70
    %p74 = scmp.eq.s32.totalorder %s13, 0
    %p75 = por %p73, %p74
    %p76 = scmp.ne.s32.totalorder %s68, %s70
    %p77 = scmp.eq.s32.totalorder %s18, 1
    %p78 = por %p76, %p77
    %p79 = scmp.ne.s32.totalorder %s70, %s71
    %p80 = scmp.eq.s32.totalorder %s18, 0
    %p81 = por %p79, %p80
    %p82 = scmp.ne.s32.totalorder %s70, %s71
    %p83 = scmp.eq.s32.totalorder %s19, 1
    %p84 = por %p82, %p83
    %p86 = scmp.ne.s32.totalorder %s71, %s85
    %p87 = scmp.eq.s32.totalorder %s19, 0
    %p88 = por %p86, %p87
    %s89 = ssub.s32 %s13, %s20
    %p90 = scmp.eq.s32.totalorder %s89, 0
    %s92 = sadd.s32 %s91, 1
    %s93 = scalar_select %p90, %s91, %s92
    %p96 = pneg %p90
    %p97 = scmp.eq.s32.totalorder %s13, 1
    %p98 = por %p96, %p97
    %p99 = scmp.ne.s32.totalorder %s91, %s94
    %p100 = scmp.eq.s32.totalorder %s13, 0
    %p101 = por %p99, %p100
    %p102 = scmp.ne.s32.totalorder %s91, %s94
    %p103 = scmp.eq.s32.totalorder %s18, 1
    %p104 = por %p102, %p103
    %p105 = scmp.ne.s32.totalorder %s94, %s95
    %p106 = scmp.eq.s32.totalorder %s18, 0
    %p107 = por %p105, %p106
    %p108 = scmp.ne.s32.totalorder %s94, %s95
    %p109 = scmp.eq.s32.totalorder %s19, 1
    %p110 = por %p108, %p109
    %p112 = scmp.ne.s32.totalorder %s95, %s111
    %p113 = scmp.eq.s32.totalorder %s19, 0
    %p114 = por %p112, %p113
    %s115 = ssub.s32 %s13, %s20
    %p116 = scmp.eq.s32.totalorder %s115, 0
    %s118 = sadd.s32 %s117, 1
    %s119 = scalar_select %p116, %s117, %s118
    %p122 = pneg %p116
    %p123 = scmp.eq.s32.totalorder %s13, 1
    %p124 = por %p122, %p123
    %p125 = scmp.ne.s32.totalorder %s117, %s120
    %p126 = scmp.eq.s32.totalorder %s13, 0
    %p127 = por %p125, %p126
    %p128 = scmp.ne.s32.totalorder %s117, %s120
    %p129 = scmp.eq.s32.totalorder %s18, 1
    %p130 = por %p128, %p129
    %p131 = scmp.ne.s32.totalorder %s120, %s121
    %p132 = scmp.eq.s32.totalorder %s18, 0
    %p133 = por %p131, %p132
    %p134 = scmp.ne.s32.totalorder %s120, %s121
    %p135 = scmp.eq.s32.totalorder %s19, 1
    %p136 = por %p134, %p135
    %p138 = scmp.ne.s32.totalorder %s121, %s137
    %p139 = scmp.eq.s32.totalorder %s19, 0
    %p140 = por %p138, %p139
    %s141 = ssub.s32 %s13, %s20
    %p142 = scmp.eq.s32.totalorder %s141, 0
    %s144 = sadd.s32 %s143, 1
    %s145 = scalar_select %p142, %s143, %s144
    %p148 = pneg %p142
    %p149 = scmp.eq.s32.totalorder %s13, 1
    %p150 = por %p148, %p149
    %p151 = scmp.ne.s32.totalorder %s143, %s146
    %p152 = scmp.eq.s32.totalorder %s13, 0
    %p153 = por %p151, %p152
    %p154 = scmp.ne.s32.totalorder %s143, %s146
    %p155 = scmp.eq.s32.totalorder %s18, 1
    %p156 = por %p154, %p155
    %p157 = scmp.ne.s32.totalorder %s146, %s147
    %p158 = scmp.eq.s32.totalorder %s18, 0
    %p159 = por %p157, %p158
    %p160 = scmp.ne.s32.totalorder %s146, %s147
    %p161 = scmp.eq.s32.totalorder %s19, 1
    %p162 = por %p160, %p161
    %p164 = scmp.ne.s32.totalorder %s147, %s163
    %p165 = scmp.eq.s32.totalorder %s19, 0
    %p166 = por %p164, %p165
    %s167 = ssub.s32 %s13, %s20
    %p168 = scmp.eq.s32.totalorder %s167, 0
    %s170 = sadd.s32 %s169, 1
    %s171 = scalar_select %p168, %s169, %s170
    %p174 = pneg %p168
    %p175 = scmp.eq.s32.totalorder %s13, 1
    %p176 = por %p174, %p175
    %p177 = scmp.ne.s32.totalorder %s169, %s172
    %p178 = scmp.eq.s32.totalorder %s13, 0
    %p179 = por %p177, %p178
    %p180 = scmp.ne.s32.totalorder %s169, %s172
    %p181 = scmp.eq.s32.totalorder %s18, 1
    %p182 = por %p180, %p181
    %p183 = scmp.ne.s32.totalorder %s172, %s173
    %p184 = scmp.eq.s32.totalorder %s18, 0
    %p185 = por %p183, %p184
    %p186 = scmp.ne.s32.totalorder %s172, %s173
    %p187 = scmp.eq.s32.totalorder %s19, 1
    %p188 = por %p186, %p187
    %p190 = scmp.ne.s32.totalorder %s173, %s189
    %p191 = scmp.eq.s32.totalorder %s19, 0
    %p192 = por %p190, %p191
    %p193 = scmp.le.s32.totalorder 1, %s13
    %p194 = scmp.lt.s32.totalorder %s13, 3
    %p195 = pnand %p193, %p194
    %p196 = pneg %p195
    // Predicated region
    $region9: #{greedy_generate.7} parent=5 // pred_check
      _
    $region10: #{greedy_generate.7} parent=5 // pred_check_branch
      %198 = sbr.rel (%p195) target = $region12
    $region11: #{greedy_generate.7} parent=5 // pred_region
      %s199 = ssub.s32 %s13, 1
      // Predicated region
      $region13: #{greedy_generate.7} parent=11 // pred_check
        %p200 = pneg %p60
      $region14: #{greedy_generate.7} parent=11 // pred_check_branch
        %202 = sbr.rel (%p200) target = $region16
      $region15: #{greedy_generate.7} parent=11 // pred_region
        _
      $region16: #{greedy_generate.7} parent=11 // pred_fallthru
        _
      // Predicated region
      $region17: #{greedy_generate.7} parent=11 // pred_check
        %p203 = pneg %p81
      $region18: #{greedy_generate.7} parent=11 // pred_check_branch
        %205 = sbr.rel (%p203) target = $region20
      $region19: #{greedy_generate.7} parent=11 // pred_region
        _
      $region20: #{greedy_generate.7} parent=11 // pred_fallthru
        _
    $region12: #{greedy_generate.7} parent=5 // pred_fallthru
      _
    %p206 = scmp.lt.s32.totalorder %s13, 2
    // Predicated region
    $region21: #{greedy_generate.7} parent=5 // pred_check
      %p207 = pneg %p206
    $region22: #{greedy_generate.7} parent=5 // pred_check_branch
      %209 = sbr.rel (%p207) target = $region24
    $region23: #{greedy_generate.7} parent=5 // pred_region
      // Predicated region
      $region25: #{greedy_generate.7} parent=23 // pred_check
        %p210 = pneg %p33
      $region26: #{greedy_generate.7} parent=23 // pred_check_branch
        %212 = sbr.rel (%p210) target = $region28
      $region27: #{greedy_generate.7} parent=23 // pred_region
        %p213 = scmp.lt.s32.totalorder %s13, 1
        %s214 = scalar_select %p213, %s13, 1
        %s215 = smul.addr %s214, 4
        %s216 = scalar_lea.vmem %s0, %s215
      $region28: #{greedy_generate.7} parent=23 // pred_fallthru
        _
      // Predicated region
      $region29: #{greedy_generate.7} parent=23 // pred_check
        %p217 = pneg %p101
      $region30: #{greedy_generate.7} parent=23 // pred_check_branch
        %219 = sbr.rel (%p217) target = $region32
      $region31: #{greedy_generate.7} parent=23 // pred_region
        %p220 = scmp.lt.s32.totalorder %s13, 1
        %s221 = scalar_select %p220, %s13, 1
        %s222 = smul.addr %s221, 2
        %s223 = smul.addr %s222, 8
        %s224 = scalar_lea.vmem %s3, %s223
      $region32: #{greedy_generate.7} parent=23 // pred_fallthru
        _
      // Predicated region
      $region33: #{greedy_generate.7} parent=23 // pred_check
        %p225 = pneg %p127
      $region34: #{greedy_generate.7} parent=23 // pred_check_branch
        %227 = sbr.rel (%p225) target = $region36
      $region35: #{greedy_generate.7} parent=23 // pred_region
        %p228 = scmp.lt.s32.totalorder %s13, 1
        %s229 = scalar_select %p228, %s13, 1
        %s230 = smul.addr %s229, 2
        %s231 = smul.addr %s230, 8
        %s232 = scalar_lea.vmem %s4, %s231
      $region36: #{greedy_generate.7} parent=23 // pred_fallthru
        _
    $region24: #{greedy_generate.7} parent=5 // pred_fallthru
      _
    %p233 = scmp.le.s32.totalorder 1, %s13
    %p234 = scmp.lt.s32.totalorder %s13, 3
    %p235 = pnand %p233, %p234
    %p236 = pneg %p235
    // Predicated region
    $region37: #{greedy_generate.7} parent=5 // pred_check
      _
    $region38: #{greedy_generate.7} parent=5 // pred_check_branch
      %238 = sbr.rel (%p235) target = $region40
    $region39: #{greedy_generate.7} parent=5 // pred_region
      %s239 = ssub.s32 %s13, 1
      %p240 = scmp.lt.s32.totalorder %s18, 1
      %s241 = scalar_select %p240, %s18, 1
      %s242 = smul.addr %s241, 4
      %s243 = scalar_lea.vmem %s0, %s242
      %p244 = pneg %p39
      %p245 = pneg %p36
      %p246 = pneg %p60
      %p247 = pneg %p57
      %p248 = pneg %p81
      %p249 = pneg %p78
      %p250 = scmp.lt.s32.totalorder %s18, 1
      %s251 = scalar_select %p250, %s18, 1
      %s252 = smul.addr %s251, 2
      %s253 = smul.addr %s252, 8
      %s254 = scalar_lea.vmem %s3, %s253
      %p255 = pneg %p107
      %p256 = pneg %p104
      %p257 = scmp.lt.s32.totalorder %s18, 1
      %s258 = scalar_select %p257, %s18, 1
      %s259 = smul.addr %s258, 2
      %s260 = smul.addr %s259, 8
      %s261 = scalar_lea.vmem %s4, %s260
      %p262 = pneg %p133
      %p263 = pneg %p130
      %p264 = pneg %p159
      %p265 = pneg %p156
      %p266 = scmp.lt.s32.totalorder %s18, 1
      %s267 = scalar_select %p266, %s18, 1
      %s268 = smul.addr %s267, 4
      %s269 = scalar_lea.vmem %s5, %s268
      %p270 = pneg %p185
      %p271 = pneg %p182
      %p272 = scmp.lt.s32.totalorder %s18, 1
      %s273 = scalar_select %p272, %s18, 1
      %s274 = smul.addr %s273, 4
      %s275 = scalar_lea.vmem %s6, %s274
      %p276 = scmp.lt.s32.totalorder %s18, 1
      %s277 = scalar_select %p276, %s18, 1
      %s278 = smul.addr %s277, 4
      %s279 = scalar_lea.vmem %s0, %s278
      %p280 = scmp.lt.s32.totalorder %s18, 1
      %s281 = scalar_select %p280, %s18, 1
      %s282 = smul.addr %s281, 2
      %s283 = smul.addr %s282, 8
      %s284 = scalar_lea.vmem %s3, %s283
      %p285 = scmp.lt.s32.totalorder %s18, 1
      %s286 = scalar_select %p285, %s18, 1
      %s287 = smul.addr %s286, 2
      %s288 = smul.addr %s287, 8
      %s289 = scalar_lea.vmem %s4, %s288
      %p290 = scmp.lt.s32.totalorder %s18, 1
      %s291 = scalar_select %p290, %s18, 1
      %s292 = smul.addr %s291, 4
      %s293 = scalar_lea.vmem %s5, %s292
      %p294 = scmp.lt.s32.totalorder %s18, 1
      %s295 = scalar_select %p294, %s18, 1
      %s296 = smul.addr %s295, 4
      %s297 = scalar_lea.vmem %s6, %s296
      %v299 = vld [vmem:[%s279] sm:$0xf]
      %v300 = vunpack.c.l.bf16 %v299
      %v301 = vmul.f32 %v300, %v300
      %302 = vadd.xlane.f32.xlu0 %v301
      %v303 = vpop.xlane.xlu0 %302
      %v304 = vrcp.pop 128.0
      %v305 = vmul.f32 %v303, %v304
      %v306 = vadd.f32 %v305, 1e-05
      %v307 = vrsqrt.pop %v306
      %v308 = vmul.f32 %v300, %v307
      %v309 = vld [vmem:[%s1] sm:$0x1]
      %v311 = vlaneseq
      %v312 = vshrl.u32 %v311, 7
      %v313 = vsub.s32 0, %v312
      %v314 = vrot.slane %v309, %v313
      %v316 = vmul.f32 %v308, %v314
      %v317 = vpack.c.bf16 %v316, %v316
      %v318 = vld [vmem:[%s2] sm:$0xff]
      %v319 = vld [vmem:[%s2 + $0x8] sm:$0xff]
      %v320 = vld [vmem:[%s2 + $0x10] sm:$0xff]
      %v321 = vld [vmem:[%s2 + $0x18] sm:$0xff]
      %v322 = vld [vmem:[%s2 + $0x20] sm:$0xff]
      %v323 = vld [vmem:[%s2 + $0x28] sm:$0xff]
      %v324 = vld [vmem:[%s2 + $0x30] sm:$0xff]
      %v325 = vld [vmem:[%s2 + $0x38] sm:$0xff]
      %v326 = vld [vmem:[%s2 + $0x40] sm:$0xff]
      %v327 = vld [vmem:[%s2 + $0x48] sm:$0xff]
      %v328 = vld [vmem:[%s2 + $0x50] sm:$0xff]
      %v329 = vld [vmem:[%s2 + $0x58] sm:$0xff]
      %v330 = vld [vmem:[%s2 + $0x60] sm:$0xff]
      %v331 = vld [vmem:[%s2 + $0x68] sm:$0xff]
      %v332 = vld [vmem:[%s2 + $0x70] sm:$0xff]
      %v333 = vld [vmem:[%s2 + $0x78] sm:$0xff]
      %v350 = vunpack.c.l.b16 %v318
      %v351 = vunpack.c.h.b16 %v318
      %v352 = vunpack.c.l.b16 %v319
      %v353 = vunpack.c.h.b16 %v319
      %v354 = vunpack.c.l.b16 %v320
      %v355 = vunpack.c.h.b16 %v320
      %v356 = vunpack.c.l.b16 %v321
      %v357 = vunpack.c.h.b16 %v321
      %v358 = vunpack.c.l.b16 %v322
      %v359 = vunpack.c.h.b16 %v322
      %v360 = vunpack.c.l.b16 %v323
      %v361 = vunpack.c.h.b16 %v323
      %v362 = vunpack.c.l.b16 %v324
      %v363 = vunpack.c.h.b16 %v324
      %v364 = vunpack.c.l.b16 %v325
      %v365 = vunpack.c.h.b16 %v325
      %v366 = vunpack.c.l.b16 %v326
      %v367 = vunpack.c.h.b16 %v326
      %v368 = vunpack.c.l.b16 %v327
      %v369 = vunpack.c.h.b16 %v327
      %v370 = vunpack.c.l.b16 %v328
      %v371 = vunpack.c.h.b16 %v328
      %v372 = vunpack.c.l.b16 %v329
      %v373 = vunpack.c.h.b16 %v329
      %v374 = vunpack.c.l.b16 %v330
      %v375 = vunpack.c.h.b16 %v330
      %v376 = vunpack.c.l.b16 %v331
      %v377 = vunpack.c.h.b16 %v331
      %v378 = vunpack.c.l.b16 %v332
      %v379 = vunpack.c.h.b16 %v332
      %v380 = vunpack.c.l.b16 %v333
      %v381 = vunpack.c.h.b16 %v333
      %v382 = vpack.c.b16 %v352, %v350
      %v383 = vpack.c.b16 %v353, %v351
      %v384 = vpack.c.b16 %v356, %v354
      %v385 = vpack.c.b16 %v357, %v355
      %v386 = vpack.c.b16 %v360, %v358
      %v387 = vpack.c.b16 %v361, %v359
      %v388 = vpack.c.b16 %v364, %v362
      %v389 = vpack.c.b16 %v365, %v363
      %v390 = vpack.c.b16 %v368, %v366
      %v391 = vpack.c.b16 %v369, %v367
      %v392 = vpack.c.b16 %v372, %v370
      %v393 = vpack.c.b16 %v373, %v371
      %v394 = vpack.c.b16 %v376, %v374
      %v395 = vpack.c.b16 %v377, %v375
      %v396 = vpack.c.b16 %v380, %v378
      %v397 = vpack.c.b16 %v381, %v379
      %414 = vmatprep.subr.bf16.mxu0 %v397
      %415 = vmatpush1.bf16.msra.mxu0 %v396
      %416 = vmatprep.subr.bf16.mxu0 %v395
      %417 = vmatpush1.bf16.msra.mxu0 %v394
      %418 = vmatprep.subr.bf16.mxu0 %v393
      %419 = vmatpush1.bf16.msra.mxu0 %v392
      %420 = vmatprep.subr.bf16.mxu0 %v391
      %421 = vmatpush1.bf16.msra.mxu0 %v390
      %422 = vmatprep.subr.bf16.mxu0 %v389
      %423 = vmatpush1.bf16.msra.mxu0 %v388
      %424 = vmatprep.subr.bf16.mxu0 %v387
      %425 = vmatpush1.bf16.msra.mxu0 %v386
      %426 = vmatprep.subr.bf16.mxu0 %v385
      %427 = vmatpush1.bf16.msra.mxu0 %v384
      %428 = vmatprep.subr.bf16.mxu0 %v383
      %429 = vmatpush1.bf16.msra.mxu0 %v382
      %430 = vmatprep.subr.bf16.mxu0 0
      %431 = vmatpush2.bf16.msra.mxu0 0
      %432 = vmatprep.subr.bf16.mxu0 0
      %433 = vmatpush2.bf16.msra.mxu0 0
      %434 = vmatprep.subr.bf16.mxu0 0
      %435 = vmatpush2.bf16.msra.mxu0 0
      %436 = vmatprep.subr.bf16.mxu0 0
      %437 = vmatpush2.bf16.msra.mxu0 0
      %438 = vmatprep.subr.bf16.mxu0 0
      %439 = vmatpush2.bf16.msra.mxu0 0
      %440 = vmatprep.subr.bf16.mxu0 0
      %441 = vmatpush2.bf16.msra.mxu0 0
      %442 = vmatprep.subr.bf16.mxu0 0
      %443 = vmatpush2.bf16.msra.mxu0 0
      %444 = vmatprep.subr.bf16.mxu0 0
      %445 = vmatpush2.bf16.msra.mxu0 0
      %446 = vmatprep.mubr.bf16.mxu0 0
      %447 = vmatmul.mubr.bf16.gmra.mxu0 %v317
      %v448 = vpop.f32.mrf.mxu0
      %v449 = vadd.f32 0.0, %v448
      %v450 = vpop.f32.mrf.mxu0
      %v451 = vadd.f32 0.0, %v450
      %v452 = vpop.f32.mrf.mxu0
      %v453 = vpop.f32.mrf.mxu0
      %454 = vdwg.mxu0
      %455 = vrot.lane.b32.xlu0 %v449, 16
      %v456 = vpop.permute.xlu0 %455
      %457 = vrot.lane.b32.xlu0 %v451, 16
      %v458 = vpop.permute.xlu0 %457
      %v459 = vlaneseq
      %v460 = vand.u32 %v459, 127
      %vm461 = vcmp.lt.s32.totalorder %v460, 16
      %v462 = vsel %vm461, %v456, %v458
      %v463 = vsel %vm461, %v458, %v456
      %464 = vrot.lane.b32.xlu0 %v449, 112
      %v465 = vpop.permute.xlu0 %464
      %466 = vrot.lane.b32.xlu0 %v451, 112
      %v467 = vpop.permute.xlu0 %466
      %vm468 = vcmp.lt.s32.totalorder %v460, 112
      %v469 = vsel %vm468, %v465, %v467
      %v470 = vsel %vm468, %v467, %v465
      %v471 = vadd.s32 %v460, 128
      %vm472 = vcmp.lt.s32.totalorder %v460, 0
      %v473 = vsub.s32 0, %v460
      %v474 = vsel %vm472, %v473, %v460
      %v475 = vshrl.u32 %v474, 5
      %v476 = vand.u32 %v474, 31
      %v477 = vsub.s32 0, %v476
      %v478 = vsel %vm472, %v477, %v476
      %vm479 = vcmp.lt.s32.totalorder %v471, 0
      %v480 = vsub.s32 0, %v471
      %v481 = vsel %vm479, %v480, %v471
      %v482 = vshrl.u32 %v481, 5
      %v483 = vand.u32 %v481, 31
      %v484 = vsub.s32 0, %v483
      %v485 = vsel %vm479, %v484, %v483
      %vm486 = vcmp.ne.s32.totalorder %v478, 0
      %vm487 = vcmp.ne.s32.totalorder %v485, 0
      %vm488 = vcmp.lt.s32.totalorder %v478, 0
      %vm489 = vcmp.lt.s32.totalorder %v485, 0
      %vm490 = vmand %vm488, %vm486
      %vm491 = vmand %vm489, %vm487
      %v492 = vadd.s32 %v478, 32
      %v493 = vadd.s32 %v485, 32
      %v494 = vsel %vm490, %v492, %v478
      %v495 = vsel %vm491, %v493, %v485
      %vm496 = vcmp.lt.s32.totalorder %v494, 16
      %vm497 = vcmp.lt.s32.totalorder %v495, 16
      %v498 = vsel %vm496, %v469, %v463
      %v499 = vsel %vm497, %v470, %v462
      %v500 = vld [vmem:[%s284] sm:$0xff]
      %v501 = vld [vmem:[%s284 + $0x8] sm:$0xff]
      %v502 = vmul.f32 %v449, %v500
      %v503 = vmul.f32 %v451, %v501
      %v504 = vld [vmem:[%s289] sm:$0xff]
      %v505 = vld [vmem:[%s289 + $0x8] sm:$0xff]
      %v506 = vmul.f32 %v498, %v504
      %v507 = vmul.f32 %v499, %v505
      %v508 = vadd.f32 %v502, %v506
      %v509 = vadd.f32 %v503, %v507
      %v510 = vpack.c.bf16 %v508, %v508
      %511 = vst [vmem:[%s293] sm:$0xf] %v510
      %v512 = vpack.c.bf16 %v509, %v509
      %513 = vst [vmem:[%s297] sm:$0xf] %v512
      %p514 = scmp.lt.s32.totalorder %s18, 1
      %s515 = scalar_select %p514, %s18, 1
      %s516 = smul.addr %s515, 4
      %s517 = scalar_lea.vmem %s5, %s516
      %p518 = scmp.lt.s32.totalorder %s18, 1
      %s519 = scalar_select %p518, %s18, 1
      %s520 = smul.addr %s519, 4
      %s521 = scalar_lea.vmem %s6, %s520
      // Predicated region
      $region41: #{greedy_generate.7} parent=39 // pred_check
        %p522 = pneg %p156
      $region42: #{greedy_generate.7} parent=39 // pred_check_branch
        %524 = sbr.rel (%p522) target = $region44
      $region43: #{greedy_generate.7} parent=39 // pred_region
        _
      $region44: #{greedy_generate.7} parent=39 // pred_fallthru
        _
      // Predicated region
      $region45: #{greedy_generate.7} parent=39 // pred_check
        %p525 = pneg %p182
      $region46: #{greedy_generate.7} parent=39 // pred_check_branch
        %527 = sbr.rel (%p525) target = $region48
      $region47: #{greedy_generate.7} parent=39 // pred_region
        _
      $region48: #{greedy_generate.7} parent=39 // pred_fallthru
        _
    $region40: #{greedy_generate.7} parent=5 // pred_fallthru
      _
    %p528 = scmp.le.s32.totalorder 2, %s13
    // Predicated region
    $region49: #{greedy_generate.7} parent=5 // pred_check
      %p529 = pneg %p528
    $region50: #{greedy_generate.7} parent=5 // pred_check_branch
      %531 = sbr.rel (%p529) target = $region52
    $region51: #{greedy_generate.7} parent=5 // pred_region
      %s532 = ssub.s32 %s13, 2
      // Predicated region
      $region53: #{greedy_generate.7} parent=51 // pred_check
        %p533 = pneg %p162
      $region54: #{greedy_generate.7} parent=51 // pred_check_branch
        %535 = sbr.rel (%p533) target = $region56
      $region55: #{greedy_generate.7} parent=51 // pred_region
        %p536 = scmp.lt.s32.totalorder %s19, 1
        %s537 = scalar_select %p536, %s19, 1
        %s538 = smul.addr %s537, 4
        %s539 = scalar_lea.vmem %s5, %s538
      $region56: #{greedy_generate.7} parent=51 // pred_fallthru
        _
      // Predicated region
      $region57: #{greedy_generate.7} parent=51 // pred_check
        %p540 = pneg %p188
      $region58: #{greedy_generate.7} parent=51 // pred_check_branch
        %542 = sbr.rel (%p540) target = $region60
      $region59: #{greedy_generate.7} parent=51 // pred_region
        %p543 = scmp.lt.s32.totalorder %s19, 1
        %s544 = scalar_select %p543, %s19, 1
        %s545 = smul.addr %s544, 4
        %s546 = scalar_lea.vmem %s6, %s545
      $region60: #{greedy_generate.7} parent=51 // pred_fallthru
        _
    $region52: #{greedy_generate.7} parent=5 // pred_fallthru
      _
  $region6: #{greedy_generate.7} parent=0 // loop_footer
    %s17 = sadd.s32 1, %s13
  $region7: #{greedy_generate.7} parent=0 // loop_footer_branch
    %12 = sbr.rel target = $region3
  $region8: #{greedy_generate.7} parent=0 // loop_exit
    _

// kernel: greedy_generate.13
$region0: #{greedy_generate.13}
  #allocation0 [shape = 'u32[]', space=smem, size = 0x4, offset = 0x4, fixed_abs, tag = 'smem constant byte address 0x4 - core index']
  #allocation1 [shape = 'u32[144,128]{1,0:T(1,128)}', space=vmem, size = 0x12000, scoped, tag = 'internal scratch']
  %s0 = inlined_call_operand.vmem [shape: bf16[2,128], index: 0, kind: input, shape index: {}]
  %s1 = inlined_call_operand.vmem [shape: f32[1,128], index: 1, kind: input, shape index: {}]
  %s2 = inlined_call_operand.vmem [shape: bf16[128,256], index: 2, kind: input, shape index: {}]
  %s3 = inlined_call_operand.vmem [shape: f32[2,256], index: 3, kind: output, shape index: {}]
  %s4 = sld [smem:[#allocation0]]
  $region22: #{greedy_generate.13} parent=0
    _
  %s6 = ssub.s32 1, %s4
  %s7 = scalar_select 0, %s6, %s4
  // Predicated region
  $region2: #{greedy_generate.13} parent=0 // pred_check
    _
  $region3: #{greedy_generate.13} parent=0 // pred_check_branch
    %9 = sbr.rel (0) target = $region5
  $region4: #{greedy_generate.13} parent=0 // pred_region
    _
  $region5: #{greedy_generate.13} parent=0 // pred_fallthru
    _
  // Predicated region
  $region6: #{greedy_generate.13} parent=0 // pred_check
    _
  $region7: #{greedy_generate.13} parent=0 // pred_check_branch
    %11 = sbr.rel (0) target = $region9
  $region8: #{greedy_generate.13} parent=0 // pred_region
    _
  $region9: #{greedy_generate.13} parent=0 // pred_fallthru
    _
  // Predicated region
  $region10: #{greedy_generate.13} parent=0 // pred_check
    _
  $region11: #{greedy_generate.13} parent=0 // pred_check_branch
    %13 = sbr.rel (0) target = $region13
  $region12: #{greedy_generate.13} parent=0 // pred_region
    _
  $region13: #{greedy_generate.13} parent=0 // pred_fallthru
    _
  %v15 = vld [vmem:[%s0] sm:$0x1]
  %v16 = vunpack.c.l.bf16 %v15
  %v17 = vmul.f32 %v16, %v16
  %vm18 = vcmask 1041408
  %v19 = vsel %vm18, %v17, 0.0
  %20 = vadd.xlane.f32.xlu0 %v19
  %v21 = vpop.xlane.xlu0 %20
  %v22 = vrcp.pop 128.0
  %v23 = vmul.f32 %v21, %v22
  %v24 = vadd.f32 %v23, 1e-05
  %v25 = vrsqrt.pop %v24
  %v26 = vmul.f32 %v16, %v25
  %v27 = vld [vmem:[%s1] sm:$0x1]
  %v29 = vlaneseq
  %v30 = vshrl.u32 %v29, 7
  %v31 = vsub.s32 0, %v30
  %v32 = vrot.slane %v27, %v31
  %v34 = vmul.f32 %v26, %v32
  %v35 = vpack.c.bf16 %v34, %v34
  %v36 = vld [vmem:[%s2] sm:$0xff]
  %v37 = vld [vmem:[%s2 + $0x8] sm:$0xff]
  %v38 = vld [vmem:[%s2 + $0x10] sm:$0xff]
  %v39 = vld [vmem:[%s2 + $0x18] sm:$0xff]
  %v40 = vld [vmem:[%s2 + $0x20] sm:$0xff]
  %v41 = vld [vmem:[%s2 + $0x28] sm:$0xff]
  %v42 = vld [vmem:[%s2 + $0x30] sm:$0xff]
  %v43 = vld [vmem:[%s2 + $0x38] sm:$0xff]
  %v44 = vld [vmem:[%s2 + $0x40] sm:$0xff]
  %v45 = vld [vmem:[%s2 + $0x48] sm:$0xff]
  %v46 = vld [vmem:[%s2 + $0x50] sm:$0xff]
  %v47 = vld [vmem:[%s2 + $0x58] sm:$0xff]
  %v48 = vld [vmem:[%s2 + $0x60] sm:$0xff]
  %v49 = vld [vmem:[%s2 + $0x68] sm:$0xff]
  %v50 = vld [vmem:[%s2 + $0x70] sm:$0xff]
  %v51 = vld [vmem:[%s2 + $0x78] sm:$0xff]
  %v68 = vunpack.c.l.b16 %v36
  %v69 = vunpack.c.h.b16 %v36
  %v70 = vunpack.c.l.b16 %v37
  %v71 = vunpack.c.h.b16 %v37
  %v72 = vunpack.c.l.b16 %v38
  %v73 = vunpack.c.h.b16 %v38
  %v74 = vunpack.c.l.b16 %v39
  %v75 = vunpack.c.h.b16 %v39
  %v76 = vunpack.c.l.b16 %v40
  %v77 = vunpack.c.h.b16 %v40
  %v78 = vunpack.c.l.b16 %v41
  %v79 = vunpack.c.h.b16 %v41
  %v80 = vunpack.c.l.b16 %v42
  %v81 = vunpack.c.h.b16 %v42
  %v82 = vunpack.c.l.b16 %v43
  %v83 = vunpack.c.h.b16 %v43
  %v84 = vunpack.c.l.b16 %v44
  %v85 = vunpack.c.h.b16 %v44
  %v86 = vunpack.c.l.b16 %v45
  %v87 = vunpack.c.h.b16 %v45
  %v88 = vunpack.c.l.b16 %v46
  %v89 = vunpack.c.h.b16 %v46
  %v90 = vunpack.c.l.b16 %v47
  %v91 = vunpack.c.h.b16 %v47
  %v92 = vunpack.c.l.b16 %v48
  %v93 = vunpack.c.h.b16 %v48
  %v94 = vunpack.c.l.b16 %v49
  %v95 = vunpack.c.h.b16 %v49
  %v96 = vunpack.c.l.b16 %v50
  %v97 = vunpack.c.h.b16 %v50
  %v98 = vunpack.c.l.b16 %v51
  %v99 = vunpack.c.h.b16 %v51
  %v100 = vpack.c.b16 %v70, %v68
  %v101 = vpack.c.b16 %v71, %v69
  %v102 = vpack.c.b16 %v74, %v72
  %v103 = vpack.c.b16 %v75, %v73
  %v104 = vpack.c.b16 %v78, %v76
  %v105 = vpack.c.b16 %v79, %v77
  %v106 = vpack.c.b16 %v82, %v80
  %v107 = vpack.c.b16 %v83, %v81
  %v108 = vpack.c.b16 %v86, %v84
  %v109 = vpack.c.b16 %v87, %v85
  %v110 = vpack.c.b16 %v90, %v88
  %v111 = vpack.c.b16 %v91, %v89
  %v112 = vpack.c.b16 %v94, %v92
  %v113 = vpack.c.b16 %v95, %v93
  %v114 = vpack.c.b16 %v98, %v96
  %v115 = vpack.c.b16 %v99, %v97
  %132 = vmatprep.subr.bf16.mxu0 %v115
  %133 = vmatpush1.bf16.msra.mxu0 %v114
  %134 = vmatprep.subr.bf16.mxu0 %v113
  %135 = vmatpush1.bf16.msra.mxu0 %v112
  %136 = vmatprep.subr.bf16.mxu0 %v111
  %137 = vmatpush1.bf16.msra.mxu0 %v110
  %138 = vmatprep.subr.bf16.mxu0 %v109
  %139 = vmatpush1.bf16.msra.mxu0 %v108
  %140 = vmatprep.subr.bf16.mxu0 %v107
  %141 = vmatpush1.bf16.msra.mxu0 %v106
  %142 = vmatprep.subr.bf16.mxu0 %v105
  %143 = vmatpush1.bf16.msra.mxu0 %v104
  %144 = vmatprep.subr.bf16.mxu0 %v103
  %145 = vmatpush1.bf16.msra.mxu0 %v102
  %146 = vmatprep.subr.bf16.mxu0 %v101
  %147 = vmatpush1.bf16.msra.mxu0 %v100
  %148 = vmatprep.subr.bf16.mxu0 0
  %149 = vmatpush2.bf16.msra.mxu0 0
  %150 = vmatprep.subr.bf16.mxu0 0
  %151 = vmatpush2.bf16.msra.mxu0 0
  %152 = vmatprep.subr.bf16.mxu0 0
  %153 = vmatpush2.bf16.msra.mxu0 0
  %154 = vmatprep.subr.bf16.mxu0 0
  %155 = vmatpush2.bf16.msra.mxu0 0
  %156 = vmatprep.subr.bf16.mxu0 0
  %157 = vmatpush2.bf16.msra.mxu0 0
  %158 = vmatprep.subr.bf16.mxu0 0
  %159 = vmatpush2.bf16.msra.mxu0 0
  %160 = vmatprep.subr.bf16.mxu0 0
  %161 = vmatpush2.bf16.msra.mxu0 0
  %162 = vmatprep.subr.bf16.mxu0 0
  %163 = vmatpush2.bf16.msra.mxu0 0
  %164 = vmatprep.mubr.bf16.mxu0 0
  %165 = vmatmul.mubr.bf16.gmra.mxu0 %v35
  %v166 = vpop.f32.mrf.mxu0
  %v167 = vadd.f32 0.0, %v166
  %v168 = vpop.f32.mrf.mxu0
  %v169 = vadd.f32 0.0, %v168
  %v170 = vpop.f32.mrf.mxu0
  %v171 = vpop.f32.mrf.mxu0
  %172 = vdwg.mxu0
  %v175 = vcombine.low %v167, %v169
  %v177 = vunpack.c.l.s4 1983009808
  %v178 = vunpack.c.0.s8 %v177
  %v179 = vlaneseq
  %v180 = vshrl.u32 %v179, 7
  %v181 = vsub.s32 %v178, %v180
  %v182 = vrot.slane %v175, %v181
  %184 = vst [vmem:[%s3] sm:$0xf] %v182
  // Predicated region
  $region14: #{greedy_generate.13} parent=0 // pred_check
    _
  $region15: #{greedy_generate.13} parent=0 // pred_check_branch
    %186 = sbr.rel (0) target = $region17
  $region16: #{greedy_generate.13} parent=0 // pred_region
    _
  $region17: #{greedy_generate.13} parent=0 // pred_fallthru
    _
  // Predicated region
  $region18: #{greedy_generate.13} parent=0 // pred_check
    _
  $region19: #{greedy_generate.13} parent=0 // pred_check_branch
    %188 = sbr.rel (0) target = $region21
  $region20: #{greedy_generate.13} parent=0 // pred_region
    _
  $region21: #{greedy_generate.13} parent=0 // pred_fallthru
    _

// kernel: greedy_generate.9
$region0: #{greedy_generate.9}
  #allocation0 [shape = 'u32[]', space=smem, size = 0x4, offset = 0x4, fixed_abs, tag = 'smem constant byte address 0x4 - core index']
  #allocation1 [shape = 'u32[144,128]{1,0:T(1,128)}', space=vmem, size = 0x12000, scoped, tag = 'internal scratch']
  %s0 = inlined_call_operand.vmem [shape: bf16[16,128], index: 0, kind: input, shape index: {}]
  %s1 = inlined_call_operand.vmem [shape: f32[1,128], index: 1, kind: input, shape index: {}]
  %s2 = inlined_call_operand.vmem [shape: bf16[128,256], index: 2, kind: input, shape index: {}]
  %s3 = inlined_call_operand.vmem [shape: bf16[128,256], index: 3, kind: input, shape index: {}]
  %s4 = inlined_call_operand.vmem [shape: bf16[256,128], index: 4, kind: input, shape index: {}]
  %s5 = inlined_call_operand.vmem [shape: bf16[16,128], index: 5, kind: output, shape index: {}]
  %s6 = sld [smem:[#allocation0]]
  $region53: #{greedy_generate.9} parent=0
    _
  %s8 = ssub.s32 1, %s6
  %s9 = scalar_select 0, %s8, %s6
  loop: start=0, step=1, limit=4
  $region2: #{greedy_generate.9} parent=0 // loop_pre_header
    _
  $region3: #{greedy_generate.9} parent=0 // loop_header
    %s11 = sphi 0, %s15
    %p12 = scmp.ge.s32.totalorder %s11, 4
    %s21 = sphi 0, %s23
    %s24 = sphi 0, %s21
    %s25 = sphi 0, %s24
    %s41 = sphi 0, %s25
    %s45 = sphi 0, %s45
    %s47 = sphi 0, %s45
    %s48 = sphi 0, %s47
    %s62 = sphi 0, %s48
    %s66 = sphi 0, %s66
    %s68 = sphi 0, %s66
    %s69 = sphi 0, %s68
    %s83 = sphi 0, %s69
    %s87 = sphi 0, %s87
    %s89 = sphi 0, %s87
    %s90 = sphi 0, %s89
    %s104 = sphi 0, %s90
    %s108 = sphi 0, %s108
    %s110 = sphi 0, %s108
    %s111 = sphi 0, %s110
    %s125 = sphi 0, %s111
    %s131 = sphi 0, %s133
    %s134 = sphi 0, %s131
    %s135 = sphi 0, %s134
    %s151 = sphi 0, %s135
  $region4: #{greedy_generate.9} parent=0 // loop_header_branch
    %14 = sbr.rel (%p12) target = $region8
  $region5: #{greedy_generate.9} parent=0 // loop_body
    %s16 = ssub.s32 %s11, 1
    %s17 = ssub.s32 %s11, 2
    %s18 = sadd.s32 %s11, 1
    %s19 = ssub.s32 %s11, %s18
    %p20 = scmp.eq.s32.totalorder %s19, 0
    %s22 = sadd.s32 %s21, 1
    %s23 = scalar_select %p20, %s21, %s22
    %p26 = pneg %p20
    %p27 = scmp.eq.s32.totalorder %s11, 1
    %p28 = por %p26, %p27
    %p29 = scmp.ne.s32.totalorder %s21, %s24
    %p30 = scmp.eq.s32.totalorder %s11, 0
    %p31 = por %p29, %p30
    %p32 = scmp.ne.s32.totalorder %s21, %s24
    %p33 = scmp.eq.s32.totalorder %s16, 1
    %p34 = por %p32, %p33
    %p35 = scmp.ne.s32.totalorder %s24, %s25
    %p36 = scmp.eq.s32.totalorder %s16, 0
    %p37 = por %p35, %p36
    %p38 = scmp.ne.s32.totalorder %s24, %s25
    %p39 = scmp.eq.s32.totalorder %s17, 1
    %p40 = por %p38, %p39
    %p42 = scmp.ne.s32.totalorder %s25, %s41
    %p43 = scmp.eq.s32.totalorder %s17, 0
    %p44 = por %p42, %p43
    %s46 = sadd.s32 %s45, 1
    %p49 = scmp.eq.s32.totalorder %s11, 1
    %p50 = scmp.ne.s32.totalorder %s45, %s47
    %p51 = scmp.eq.s32.totalorder %s11, 0
    %p52 = por %p50, %p51
    %p53 = scmp.ne.s32.totalorder %s45, %s47
    %p54 = scmp.eq.s32.totalorder %s16, 1
    %p55 = por %p53, %p54
    %p56 = scmp.ne.s32.totalorder %s47, %s48
    %p57 = scmp.eq.s32.totalorder %s16, 0
    %p58 = por %p56, %p57
    %p59 = scmp.ne.s32.totalorder %s47, %s48
    %p60 = scmp.eq.s32.totalorder %s17, 1
    %p61 = por %p59, %p60
    %p63 = scmp.ne.s32.totalorder %s48, %s62
    %p64 = scmp.eq.s32.totalorder %s17, 0
    %p65 = por %p63, %p64
    %s67 = sadd.s32 %s66, 1
    %p70 = scmp.eq.s32.totalorder %s11, 1
    %p71 = scmp.ne.s32.totalorder %s66, %s68
    %p72 = scmp.eq.s32.totalorder %s11, 0
    %p73 = por %p71, %p72
    %p74 = scmp.ne.s32.totalorder %s66, %s68
    %p75 = scmp.eq.s32.totalorder %s16, 1
    %p76 = por %p74, %p75
    %p77 = scmp.ne.s32.totalorder %s68, %s69
    %p78 = scmp.eq.s32.totalorder %s16, 0
    %p79 = por %p77, %p78
    %p80 = scmp.ne.s32.totalorder %s68, %s69
    %p81 = scmp.eq.s32.totalorder %s17, 1
    %p82 = por %p80, %p81
    %p84 = scmp.ne.s32.totalorder %s69, %s83
    %p85 = scmp.eq.s32.totalorder %s17, 0
    %p86 = por %p84, %p85
    %s88 = sadd.s32 %s87, 1
    %p91 = scmp.eq.s32.totalorder %s11, 1
    %p92 = scmp.ne.s32.totalorder %s87, %s89
    %p93 = scmp.eq.s32.totalorder %s11, 0
    %p94 = por %p92, %p93
    %p95 = scmp.ne.s32.totalorder %s87, %s89
    %p96 = scmp.eq.s32.totalorder %s16, 1
    %p97 = por %p95, %p96
    %p98 = scmp.ne.s32.totalorder %s89, %s90
    %p99 = scmp.eq.s32.totalorder %s16, 0
    %p100 = por %p98, %p99
    %p101 = scmp.ne.s32.totalorder %s89, %s90
    %p102 = scmp.eq.s32.totalorder %s17, 1
    %p103 = por %p101, %p102
    %p105 = scmp.ne.s32.totalorder %s90, %s104
    %p106 = scmp.eq.s32.totalorder %s17, 0
    %p107 = por %p105, %p106
    %s109 = sadd.s32 %s108, 1
    %p112 = scmp.eq.s32.totalorder %s11, 1
    %p113 = scmp.ne.s32.totalorder %s108, %s110
    %p114 = scmp.eq.s32.totalorder %s11, 0
    %p115 = por %p113, %p114
    %p116 = scmp.ne.s32.totalorder %s108, %s110
    %p117 = scmp.eq.s32.totalorder %s16, 1
    %p118 = por %p116, %p117
    %p119 = scmp.ne.s32.totalorder %s110, %s111
    %p120 = scmp.eq.s32.totalorder %s16, 0
    %p121 = por %p119, %p120
    %p122 = scmp.ne.s32.totalorder %s110, %s111
    %p123 = scmp.eq.s32.totalorder %s17, 1
    %p124 = por %p122, %p123
    %p126 = scmp.ne.s32.totalorder %s111, %s125
    %p127 = scmp.eq.s32.totalorder %s17, 0
    %p128 = por %p126, %p127
    %s129 = ssub.s32 %s11, %s18
    %p130 = scmp.eq.s32.totalorder %s129, 0
    %s132 = sadd.s32 %s131, 1
    %s133 = scalar_select %p130, %s131, %s132
    %p136 = pneg %p130
    %p137 = scmp.eq.s32.totalorder %s11, 1
    %p138 = por %p136, %p137
    %p139 = scmp.ne.s32.totalorder %s131, %s134
    %p140 = scmp.eq.s32.totalorder %s11, 0
    %p141 = por %p139, %p140
    %p142 = scmp.ne.s32.totalorder %s131, %s134
    %p143 = scmp.eq.s32.totalorder %s16, 1
    %p144 = por %p142, %p143
    %p145 = scmp.ne.s32.totalorder %s134, %s135
    %p146 = scmp.eq.s32.totalorder %s16, 0
    %p147 = por %p145, %p146
    %p148 = scmp.ne.s32.totalorder %s134, %s135
    %p149 = scmp.eq.s32.totalorder %s17, 1
    %p150 = por %p148, %p149
    %p152 = scmp.ne.s32.totalorder %s135, %s151
    %p153 = scmp.eq.s32.totalorder %s17, 0
    %p154 = por %p152, %p153
    %p155 = scmp.le.s32.totalorder 1, %s11
    %p156 = scmp.lt.s32.totalorder %s11, 3
    %p157 = pnand %p155, %p156
    %p158 = pneg %p157
    // Predicated region
    $region9: #{greedy_generate.9} parent=5 // pred_check
      _
    $region10: #{greedy_generate.9} parent=5 // pred_check_branch
      %160 = sbr.rel (%p157) target = $region12
    $region11: #{greedy_generate.9} parent=5 // pred_region
      %s161 = ssub.s32 %s11, 1
      // Predicated region
      $region13: #{greedy_generate.9} parent=11 // pred_check
        %p162 = pneg %p58
      $region14: #{greedy_generate.9} parent=11 // pred_check_branch
        %164 = sbr.rel (%p162) target = $region16
      $region15: #{greedy_generate.9} parent=11 // pred_region
        _
      $region16: #{greedy_generate.9} parent=11 // pred_fallthru
        _
      // Predicated region
      $region17: #{greedy_generate.9} parent=11 // pred_check
        %p165 = pneg %p79
      $region18: #{greedy_generate.9} parent=11 // pred_check_branch
        %167 = sbr.rel (%p165) target = $region20
      $region19: #{greedy_generate.9} parent=11 // pred_region
        _
      $region20: #{greedy_generate.9} parent=11 // pred_fallthru
        _
      // Predicated region
      $region21: #{greedy_generate.9} parent=11 // pred_check
        %p168 = pneg %p100
      $region22: #{greedy_generate.9} parent=11 // pred_check_branch
        %170 = sbr.rel (%p168) target = $region24
      $region23: #{greedy_generate.9} parent=11 // pred_region
        _
      $region24: #{greedy_generate.9} parent=11 // pred_fallthru
        _
      // Predicated region
      $region25: #{greedy_generate.9} parent=11 // pred_check
        %p171 = pneg %p121
      $region26: #{greedy_generate.9} parent=11 // pred_check_branch
        %173 = sbr.rel (%p171) target = $region28
      $region27: #{greedy_generate.9} parent=11 // pred_region
        _
      $region28: #{greedy_generate.9} parent=11 // pred_fallthru
        _
    $region12: #{greedy_generate.9} parent=5 // pred_fallthru
      _
    %p174 = scmp.lt.s32.totalorder %s11, 2
    // Predicated region
    $region29: #{greedy_generate.9} parent=5 // pred_check
      %p175 = pneg %p174
    $region30: #{greedy_generate.9} parent=5 // pred_check_branch
      %177 = sbr.rel (%p175) target = $region32
    $region31: #{greedy_generate.9} parent=5 // pred_region
      // Predicated region
      $region33: #{greedy_generate.9} parent=31 // pred_check
        %p178 = pneg %p31
      $region34: #{greedy_generate.9} parent=31 // pred_check_branch
        %180 = sbr.rel (%p178) target = $region36
      $region35: #{greedy_generate.9} parent=31 // pred_region
        %p181 = scmp.lt.s32.totalorder %s11, 1
        %s182 = scalar_select %p181, %s11, 1
        %s183 = smul.addr %s182, 4
        %s184 = scalar_lea.vmem %s0, %s183
      $region36: #{greedy_generate.9} parent=31 // pred_fallthru
        _
    $region32: #{greedy_generate.9} parent=5 // pred_fallthru
      _
    %p185 = scmp.le.s32.totalorder 1, %s11
    %p186 = scmp.lt.s32.totalorder %s11, 3
    %p187 = pnand %p185, %p186
    %p188 = pneg %p187
    // Predicated region
    $region37: #{greedy_generate.9} parent=5 // pred_check
      _
    $region38: #{greedy_generate.9} parent=5 // pred_check_branch
      %190 = sbr.rel (%p187) target = $region40
    $region39: #{greedy_generate.9} parent=5 // pred_region
      %s191 = ssub.s32 %s11, 1
      %p192 = scmp.lt.s32.totalorder %s16, 1
      %s193 = scalar_select %p192, %s16, 1
      %s194 = smul.addr %s193, 4
      %s195 = scalar_lea.vmem %s0, %s194
      %p196 = pneg %p37
      %p197 = pneg %p34
      %p198 = pneg %p58
      %p199 = pneg %p55
      %p200 = pneg %p79
      %p201 = pneg %p76
      %p202 = pneg %p100
      %p203 = pneg %p97
      %p204 = pneg %p121
      %p205 = pneg %p118
      %p206 = pneg %p147
      %p207 = pneg %p144
      %p208 = scmp.lt.s32.totalorder %s16, 1
      %s209 = scalar_select %p208, %s16, 1
      %s210 = smul.addr %s209, 4
      %s211 = scalar_lea.vmem %s5, %s210
      %p212 = scmp.lt.s32.totalorder %s16, 1
      %s213 = scalar_select %p212, %s16, 1
      %s214 = smul.addr %s213, 4
      %s215 = scalar_lea.vmem %s0, %s214
      %p216 = scmp.lt.s32.totalorder %s16, 1
      %s217 = scalar_select %p216, %s16, 1
      %s218 = smul.addr %s217, 4
      %s219 = scalar_lea.vmem %s5, %s218
      %v221 = vld [vmem:[%s215] sm:$0xf]
      %v222 = vunpack.c.l.bf16 %v221
      %v223 = vmul.f32 %v222, %v222
      %224 = vadd.xlane.f32.xlu0 %v223
      %v225 = vpop.xlane.xlu0 %224
      %v226 = vrcp.pop 128.0
      %v227 = vmul.f32 %v225, %v226
      %v228 = vadd.f32 %v227, 1e-05
      %v229 = vrsqrt.pop %v228
      %v230 = vmul.f32 %v222, %v229
      %v231 = vld [vmem:[%s1] sm:$0x1]
      %v233 = vlaneseq
      %v234 = vshrl.u32 %v233, 7
      %v235 = vsub.s32 0, %v234
      %v236 = vrot.slane %v231, %v235
      %v238 = vmul.f32 %v230, %v236
      %v239 = vpack.c.bf16 %v238, %v238
      %v240 = vld [vmem:[%s2] sm:$0xff]
      %v241 = vld [vmem:[%s2 + $0x8] sm:$0xff]
      %v242 = vld [vmem:[%s2 + $0x10] sm:$0xff]
      %v243 = vld [vmem:[%s2 + $0x18] sm:$0xff]
      %v244 = vld [vmem:[%s2 + $0x20] sm:$0xff]
      %v245 = vld [vmem:[%s2 + $0x28] sm:$0xff]
      %v246 = vld [vmem:[%s2 + $0x30] sm:$0xff]
      %v247 = vld [vmem:[%s2 + $0x38] sm:$0xff]
      %v248 = vld [vmem:[%s2 + $0x40] sm:$0xff]
      %v249 = vld [vmem:[%s2 + $0x48] sm:$0xff]
      %v250 = vld [vmem:[%s2 + $0x50] sm:$0xff]
      %v251 = vld [vmem:[%s2 + $0x58] sm:$0xff]
      %v252 = vld [vmem:[%s2 + $0x60] sm:$0xff]
      %v253 = vld [vmem:[%s2 + $0x68] sm:$0xff]
      %v254 = vld [vmem:[%s2 + $0x70] sm:$0xff]
      %v255 = vld [vmem:[%s2 + $0x78] sm:$0xff]
      %v272 = vunpack.c.l.b16 %v240
      %v273 = vunpack.c.h.b16 %v240
      %v274 = vunpack.c.l.b16 %v241
      %v275 = vunpack.c.h.b16 %v241
      %v276 = vunpack.c.l.b16 %v242
      %v277 = vunpack.c.h.b16 %v242
      %v278 = vunpack.c.l.b16 %v243
      %v279 = vunpack.c.h.b16 %v243
      %v280 = vunpack.c.l.b16 %v244
      %v281 = vunpack.c.h.b16 %v244
      %v282 = vunpack.c.l.b16 %v245
      %v283 = vunpack.c.h.b16 %v245
      %v284 = vunpack.c.l.b16 %v246
      %v285 = vunpack.c.h.b16 %v246
      %v286 = vunpack.c.l.b16 %v247
      %v287 = vunpack.c.h.b16 %v247
      %v288 = vunpack.c.l.b16 %v248
      %v289 = vunpack.c.h.b16 %v248
      %v290 = vunpack.c.l.b16 %v249
      %v291 = vunpack.c.h.b16 %v249
      %v292 = vunpack.c.l.b16 %v250
      %v293 = vunpack.c.h.b16 %v250
      %v294 = vunpack.c.l.b16 %v251
      %v295 = vunpack.c.h.b16 %v251
      %v296 = vunpack.c.l.b16 %v252
      %v297 = vunpack.c.h.b16 %v252
      %v298 = vunpack.c.l.b16 %v253
      %v299 = vunpack.c.h.b16 %v253
      %v300 = vunpack.c.l.b16 %v254
      %v301 = vunpack.c.h.b16 %v254
      %v302 = vunpack.c.l.b16 %v255
      %v303 = vunpack.c.h.b16 %v255
      %v304 = vpack.c.b16 %v274, %v272
      %v305 = vpack.c.b16 %v275, %v273
      %v306 = vpack.c.b16 %v278, %v276
      %v307 = vpack.c.b16 %v279, %v277
      %v308 = vpack.c.b16 %v282, %v280
      %v309 = vpack.c.b16 %v283, %v281
      %v310 = vpack.c.b16 %v286, %v284
      %v311 = vpack.c.b16 %v287, %v285
      %v312 = vpack.c.b16 %v290, %v288
      %v313 = vpack.c.b16 %v291, %v289
      %v314 = vpack.c.b16 %v294, %v292
      %v315 = vpack.c.b16 %v295, %v293
      %v316 = vpack.c.b16 %v298, %v296
      %v317 = vpack.c.b16 %v299, %v297
      %v318 = vpack.c.b16 %v302, %v300
      %v319 = vpack.c.b16 %v303, %v301
      %336 = vmatprep.subr.bf16.mxu0 %v319
      %337 = vmatpush1.bf16.msra.mxu0 %v318
      %338 = vmatprep.subr.bf16.mxu0 %v317
      %339 = vmatpush1.bf16.msra.mxu0 %v316
      %340 = vmatprep.subr.bf16.mxu0 %v315
      %341 = vmatpush1.bf16.msra.mxu0 %v314
      %342 = vmatprep.subr.bf16.mxu0 %v313
      %343 = vmatpush1.bf16.msra.mxu0 %v312
      %344 = vmatprep.subr.bf16.mxu0 %v311
      %345 = vmatpush1.bf16.msra.mxu0 %v310
      %346 = vmatprep.subr.bf16.mxu0 %v309
      %347 = vmatpush1.bf16.msra.mxu0 %v308
      %348 = vmatprep.subr.bf16.mxu0 %v307
      %349 = vmatpush1.bf16.msra.mxu0 %v306
      %350 = vmatprep.subr.bf16.mxu0 %v305
      %351 = vmatpush1.bf16.msra.mxu0 %v304
      %352 = vmatprep.subr.bf16.mxu0 0
      %353 = vmatpush2.bf16.msra.mxu0 0
      %354 = vmatprep.subr.bf16.mxu0 0
      %355 = vmatpush2.bf16.msra.mxu0 0
      %356 = vmatprep.subr.bf16.mxu0 0
      %357 = vmatpush2.bf16.msra.mxu0 0
      %358 = vmatprep.subr.bf16.mxu0 0
      %359 = vmatpush2.bf16.msra.mxu0 0
      %360 = vmatprep.subr.bf16.mxu0 0
      %361 = vmatpush2.bf16.msra.mxu0 0
      %362 = vmatprep.subr.bf16.mxu0 0
      %363 = vmatpush2.bf16.msra.mxu0 0
      %364 = vmatprep.subr.bf16.mxu0 0
      %365 = vmatpush2.bf16.msra.mxu0 0
      %366 = vmatprep.subr.bf16.mxu0 0
      %367 = vmatpush2.bf16.msra.mxu0 0
      %368 = vmatprep.mubr.bf16.mxu0 0
      %369 = vmatmul.mubr.bf16.gmra.mxu0 %v239
      %v370 = vpop.f32.mrf.mxu0
      %v371 = vadd.f32 0.0, %v370
      %v372 = vpop.f32.mrf.mxu0
      %v373 = vadd.f32 0.0, %v372
      %v374 = vpop.f32.mrf.mxu0
      %v375 = vpop.f32.mrf.mxu0
      %376 = vdwg.mxu0
      %v377 = vld [vmem:[%s3] sm:$0xff]
      %v378 = vld [vmem:[%s3 + $0x8] sm:$0xff]
      %v379 = vld [vmem:[%s3 + $0x10] sm:$0xff]
      %v380 = vld [vmem:[%s3 + $0x18] sm:$0xff]
      %v381 = vld [vmem:[%s3 + $0x20] sm:$0xff]
      %v382 = vld [vmem:[%s3 + $0x28] sm:$0xff]
      %v383 = vld [vmem:[%s3 + $0x30] sm:$0xff]
      %v384 = vld [vmem:[%s3 + $0x38] sm:$0xff]
      %v385 = vld [vmem:[%s3 + $0x40] sm:$0xff]
      %v386 = vld [vmem:[%s3 + $0x48] sm:$0xff]
      %v387 = vld [vmem:[%s3 + $0x50] sm:$0xff]
      %v388 = vld [vmem:[%s3 + $0x58] sm:$0xff]
      %v389 = vld [vmem:[%s3 + $0x60] sm:$0xff]
      %v390 = vld [vmem:[%s3 + $0x68] sm:$0xff]
      %v391 = vld [vmem:[%s3 + $0x70] sm:$0xff]
      %v392 = vld [vmem:[%s3 + $0x78] sm:$0xff]
      %v409 = vunpack.c.l.b16 %v377
      %v410 = vunpack.c.h.b16 %v377
      %v411 = vunpack.c.l.b16 %v378
      %v412 = vunpack.c.h.b16 %v378
      %v413 = vunpack.c.l.b16 %v379
      %v414 = vunpack.c.h.b16 %v379
      %v415 = vunpack.c.l.b16 %v380
      %v416 = vunpack.c.h.b16 %v380
      %v417 = vunpack.c.l.b16 %v381
      %v418 = vunpack.c.h.b16 %v381
      %v419 = vunpack.c.l.b16 %v382
      %v420 = vunpack.c.h.b16 %v382
      %v421 = vunpack.c.l.b16 %v383
      %v422 = vunpack.c.h.b16 %v383
      %v423 = vunpack.c.l.b16 %v384
      %v424 = vunpack.c.h.b16 %v384
      %v425 = vunpack.c.l.b16 %v385
      %v426 = vunpack.c.h.b16 %v385
      %v427 = vunpack.c.l.b16 %v386
      %v428 = vunpack.c.h.b16 %v386
      %v429 = vunpack.c.l.b16 %v387
      %v430 = vunpack.c.h.b16 %v387
      %v431 = vunpack.c.l.b16 %v388
      %v432 = vunpack.c.h.b16 %v388
      %v433 = vunpack.c.l.b16 %v389
      %v434 = vunpack.c.h.b16 %v389
      %v435 = vunpack.c.l.b16 %v390
      %v436 = vunpack.c.h.b16 %v390
      %v437 = vunpack.c.l.b16 %v391
      %v438 = vunpack.c.h.b16 %v391
      %v439 = vunpack.c.l.b16 %v392
      %v440 = vunpack.c.h.b16 %v392
      %v441 = vpack.c.b16 %v411, %v409
      %v442 = vpack.c.b16 %v412, %v410
      %v443 = vpack.c.b16 %v415, %v413
      %v444 = vpack.c.b16 %v416, %v414
      %v445 = vpack.c.b16 %v419, %v417
      %v446 = vpack.c.b16 %v420, %v418
      %v447 = vpack.c.b16 %v423, %v421
      %v448 = vpack.c.b16 %v424, %v422
      %v449 = vpack.c.b16 %v427, %v425
      %v450 = vpack.c.b16 %v428, %v426
      %v451 = vpack.c.b16 %v431, %v429
      %v452 = vpack.c.b16 %v432, %v430
      %v453 = vpack.c.b16 %v435, %v433
      %v454 = vpack.c.b16 %v436, %v434
      %v455 = vpack.c.b16 %v439, %v437
      %v456 = vpack.c.b16 %v440, %v438
      %473 = vmatprep.subr.bf16.mxu0 %v456
      %474 = vmatpush1.bf16.msra.mxu0 %v455
      %475 = vmatprep.subr.bf16.mxu0 %v454
      %476 = vmatpush1.bf16.msra.mxu0 %v453
      %477 = vmatprep.subr.bf16.mxu0 %v452
      %478 = vmatpush1.bf16.msra.mxu0 %v451
      %479 = vmatprep.subr.bf16.mxu0 %v450
      %480 = vmatpush1.bf16.msra.mxu0 %v449
      %481 = vmatprep.subr.bf16.mxu0 %v448
      %482 = vmatpush1.bf16.msra.mxu0 %v447
      %483 = vmatprep.subr.bf16.mxu0 %v446
      %484 = vmatpush1.bf16.msra.mxu0 %v445
      %485 = vmatprep.subr.bf16.mxu0 %v444
      %486 = vmatpush1.bf16.msra.mxu0 %v443
      %487 = vmatprep.subr.bf16.mxu0 %v442
      %488 = vmatpush1.bf16.msra.mxu0 %v441
      %489 = vmatprep.subr.bf16.mxu0 0
      %490 = vmatpush2.bf16.msra.mxu0 0
      %491 = vmatprep.subr.bf16.mxu0 0
      %492 = vmatpush2.bf16.msra.mxu0 0
      %493 = vmatprep.subr.bf16.mxu0 0
      %494 = vmatpush2.bf16.msra.mxu0 0
      %495 = vmatprep.subr.bf16.mxu0 0
      %496 = vmatpush2.bf16.msra.mxu0 0
      %497 = vmatprep.subr.bf16.mxu0 0
      %498 = vmatpush2.bf16.msra.mxu0 0
      %499 = vmatprep.subr.bf16.mxu0 0
      %500 = vmatpush2.bf16.msra.mxu0 0
      %501 = vmatprep.subr.bf16.mxu0 0
      %502 = vmatpush2.bf16.msra.mxu0 0
      %503 = vmatprep.subr.bf16.mxu0 0
      %504 = vmatpush2.bf16.msra.mxu0 0
      %505 = vmatprep.mubr.bf16.mxu0 0
      %506 = vmatmul.mubr.bf16.gmra.mxu0 %v239
      %v507 = vpop.f32.mrf.mxu0
      %v508 = vadd.f32 0.0, %v507
      %v509 = vpop.f32.mrf.mxu0
      %v510 = vadd.f32 0.0, %v509
      %v511 = vpop.f32.mrf.mxu0
      %v512 = vpop.f32.mrf.mxu0
      %513 = vdwg.mxu0
      %v514 = vxor.u32 %v371, 2147483648
      %v515 = vxor.u32 %v373, 2147483648
      %v516 = vmul.f32 %v514, 1.442695
      %v517 = vpow.pop %v516
      %v518 = vmul.f32 %v515, 1.442695
      %v519 = vpow.pop %v518
      %v520 = vadd.f32 %v517, 1.0
      %v521 = vadd.f32 %v519, 1.0
      %v522 = vrcp.pop %v520
      %v523 = vmul.f32 1.0, %v522
      %v524 = vrcp.pop %v521
      %v525 = vmul.f32 1.0, %v524
      %v526 = vmul.f32 %v371, %v523
      %v527 = vmul.f32 %v373, %v525
      %v528 = vmul.f32 %v526, %v508
      %v529 = vmul.f32 %v527, %v510
      %v530 = vpack.c.bf16 %v528, %v528
      %v531 = vpack.c.bf16 %v529, %v529
      %v532 = vld [vmem:[%s4] sm:$0xf]
      %v533 = vld [vmem:[%s4 + $0x4] sm:$0xf]
      %v534 = vld [vmem:[%s4 + $0x8] sm:$0xf]
      %v535 = vld [vmem:[%s4 + $0xc] sm:$0xf]
      %v536 = vld [vmem:[%s4 + $0x10] sm:$0xf]
      %v537 = vld [vmem:[%s4 + $0x14] sm:$0xf]
      %v538 = vld [vmem:[%s4 + $0x18] sm:$0xf]
      %v539 = vld [vmem:[%s4 + $0x1c] sm:$0xf]
      %v540 = vld [vmem:[%s4 + $0x20] sm:$0xf]
      %v541 = vld [vmem:[%s4 + $0x24] sm:$0xf]
      %v542 = vld [vmem:[%s4 + $0x28] sm:$0xf]
      %v543 = vld [vmem:[%s4 + $0x2c] sm:$0xf]
      %v544 = vld [vmem:[%s4 + $0x30] sm:$0xf]
      %v545 = vld [vmem:[%s4 + $0x34] sm:$0xf]
      %v546 = vld [vmem:[%s4 + $0x38] sm:$0xf]
      %v547 = vld [vmem:[%s4 + $0x3c] sm:$0xf]
      %v548 = vld [vmem:[%s4 + $0x40] sm:$0xf]
      %v549 = vld [vmem:[%s4 + $0x44] sm:$0xf]
      %v550 = vld [vmem:[%s4 + $0x48] sm:$0xf]
      %v551 = vld [vmem:[%s4 + $0x4c] sm:$0xf]
      %v552 = vld [vmem:[%s4 + $0x50] sm:$0xf]
      %v553 = vld [vmem:[%s4 + $0x54] sm:$0xf]
      %v554 = vld [vmem:[%s4 + $0x58] sm:$0xf]
      %v555 = vld [vmem:[%s4 + $0x5c] sm:$0xf]
      %v556 = vld [vmem:[%s4 + $0x60] sm:$0xf]
      %v557 = vld [vmem:[%s4 + $0x64] sm:$0xf]
      %v558 = vld [vmem:[%s4 + $0x68] sm:$0xf]
      %v559 = vld [vmem:[%s4 + $0x6c] sm:$0xf]
      %v560 = vld [vmem:[%s4 + $0x70] sm:$0xf]
      %v561 = vld [vmem:[%s4 + $0x74] sm:$0xf]
      %v562 = vld [vmem:[%s4 + $0x78] sm:$0xf]
      %v563 = vld [vmem:[%s4 + $0x7c] sm:$0xf]
      %v596 = vunpack.c.l.b16 %v532
      %v597 = vunpack.c.l.b16 %v533
      %v598 = vunpack.c.l.b16 %v534
      %v599 = vunpack.c.l.b16 %v535
      %v600 = vunpack.c.l.b16 %v536
      %v601 = vunpack.c.l.b16 %v537
      %v602 = vunpack.c.l.b16 %v538
      %v603 = vunpack.c.l.b16 %v539
      %v604 = vunpack.c.l.b16 %v540
      %v605 = vunpack.c.l.b16 %v541
      %v606 = vunpack.c.l.b16 %v542
      %v607 = vunpack.c.l.b16 %v543
      %v608 = vunpack.c.l.b16 %v544
      %v609 = vunpack.c.l.b16 %v545
      %v610 = vunpack.c.l.b16 %v546
      %v611 = vunpack.c.l.b16 %v547
      %v612 = vunpack.c.l.b16 %v548
      %v613 = vunpack.c.l.b16 %v549
      %v614 = vunpack.c.l.b16 %v550
      %v615 = vunpack.c.l.b16 %v551
      %v616 = vunpack.c.l.b16 %v552
      %v617 = vunpack.c.l.b16 %v553
      %v618 = vunpack.c.l.b16 %v554
      %v619 = vunpack.c.l.b16 %v555
      %v620 = vunpack.c.l.b16 %v556
      %v621 = vunpack.c.l.b16 %v557
      %v622 = vunpack.c.l.b16 %v558
      %v623 = vunpack.c.l.b16 %v559
      %v624 = vunpack.c.l.b16 %v560
      %v625 = vunpack.c.l.b16 %v561
      %v626 = vunpack.c.l.b16 %v562
      %v627 = vunpack.c.l.b16 %v563
      %v628 = vpack.c.b16 %v597, %v596
      %v629 = vpack.c.b16 %v599, %v598
      %v630 = vpack.c.b16 %v601, %v600
      %v631 = vpack.c.b16 %v603, %v602
      %v632 = vpack.c.b16 %v605, %v604
      %v633 = vpack.c.b16 %v607, %v606
      %v634 = vpack.c.b16 %v609, %v608
      %v635 = vpack.c.b16 %v611, %v610
      %v636 = vpack.c.b16 %v613, %v612
      %v637 = vpack.c.b16 %v615, %v614
      %v638 = vpack.c.b16 %v617, %v616
      %v639 = vpack.c.b16 %v619, %v618
      %v640 = vpack.c.b16 %v621, %v620
      %v641 = vpack.c.b16 %v623, %v622
      %v642 = vpack.c.b16 %v625, %v624
      %v643 = vpack.c.b16 %v627, %v626
      %660 = vmatprep.subr.bf16.mxu0 0
      %661 = vmatpush1.bf16.msra.mxu0 %v635
      %662 = vmatprep.subr.bf16.mxu0 0
      %663 = vmatpush1.bf16.msra.mxu0 %v634
      %664 = vmatprep.subr.bf16.mxu0 0
      %665 = vmatpush1.bf16.msra.mxu0 %v633
      %666 = vmatprep.subr.bf16.mxu0 0
      %667 = vmatpush1.bf16.msra.mxu0 %v632
      %668 = vmatprep.subr.bf16.mxu0 0
      %669 = vmatpush1.bf16.msra.mxu0 %v631
      %670 = vmatprep.subr.bf16.mxu0 0
      %671 = vmatpush1.bf16.msra.mxu0 %v630
      %672 = vmatprep.subr.bf16.mxu0 0
      %673 = vmatpush1.bf16.msra.mxu0 %v629
      %674 = vmatprep.subr.bf16.mxu0 0
      %675 = vmatpush1.bf16.msra.mxu0 %v628
      %676 = vmatprep.subr.bf16.mxu0 0
      %677 = vmatpush2.bf16.msra.mxu0 %v643
      %678 = vmatprep.subr.bf16.mxu0 0
      %679 = vmatpush2.bf16.msra.mxu0 %v642
      %680 = vmatprep.subr.bf16.mxu0 0
      %681 = vmatpush2.bf16.msra.mxu0 %v641
      %682 = vmatprep.subr.bf16.mxu0 0
      %683 = vmatpush2.bf16.msra.mxu0 %v640
      %684 = vmatprep.subr.bf16.mxu0 0
      %685 = vmatpush2.bf16.msra.mxu0 %v639
      %686 = vmatprep.subr.bf16.mxu0 0
      %687 = vmatpush2.bf16.msra.mxu0 %v638
      %688 = vmatprep.subr.bf16.mxu0 0
      %689 = vmatpush2.bf16.msra.mxu0 %v637
      %690 = vmatprep.subr.bf16.mxu0 0
      %691 = vmatpush2.bf16.msra.mxu0 %v636
      %692 = vmatprep.mubr.bf16.mxu0 %v531
      %693 = vmatmul.mubr.bf16.gmra.mxu0 %v530
      %v694 = vpop.f32.mrf.mxu0
      %v695 = vadd.f32 0.0, %v694
      %v696 = vpop.f32.mrf.mxu0
      %v697 = vpop.f32.mrf.mxu0
      %v698 = vpop.f32.mrf.mxu0
      %699 = vdwg.mxu0
      %v700 = vadd.f32 %v222, %v695
      %v701 = vpack.c.bf16 %v700, %v700
      %702 = vst [vmem:[%s219] sm:$0xf] %v701
      %p703 = scmp.lt.s32.totalorder %s16, 1
      %s704 = scalar_select %p703, %s16, 1
      %s705 = smul.addr %s704, 4
      %s706 = scalar_lea.vmem %s5, %s705
      // Predicated region
      $region41: #{greedy_generate.9} parent=39 // pred_check
        %p707 = pneg %p144
      $region42: #{greedy_generate.9} parent=39 // pred_check_branch
        %709 = sbr.rel (%p707) target = $region44
      $region43: #{greedy_generate.9} parent=39 // pred_region
        _
      $region44: #{greedy_generate.9} parent=39 // pred_fallthru
        _
    $region40: #{greedy_generate.9} parent=5 // pred_fallthru
      _
    %p710 = scmp.le.s32.totalorder 2, %s11
    // Predicated region
    $region45: #{greedy_generate.9} parent=5 // pred_check
      %p711 = pneg %p710
    $region46: #{greedy_generate.9} parent=5 // pred_check_branch
      %713 = sbr.rel (%p711) target = $region48
    $region47: #{greedy_generate.9} parent=5 // pred_region
      %s714 = ssub.s32 %s11, 2
      // Predicated region
      $region49: #{greedy_generate.9} parent=47 // pred_check
        %p715 = pneg %p150
      $region50: #{greedy_generate.9} parent=47 // pred_check_branch
        %717 = sbr.rel (%p715) target = $region52
      $region51: #{greedy_generate.9} parent=47 // pred_region
        %p718 = scmp.lt.s32.totalorder %s17, 1
        %s719 = scalar_select %p718, %s17, 1
        %s720 = smul.addr %s719, 4
        %s721 = scalar_lea.vmem %s5, %s720
      $region52: #{greedy_generate.9} parent=47 // pred_fallthru
        _
    $region48: #{greedy_generate.9} parent=5 // pred_fallthru
      _
  $region6: #{greedy_generate.9} parent=0 // loop_footer
    %s15 = sadd.s32 1, %s11
  $region7: #{greedy_generate.9} parent=0 // loop_footer_branch
    %10 = sbr.rel target = $region3
  $region8: #{greedy_generate.9} parent=0 // loop_exit
    _

// kernel: greedy_generate.8
$region0: #{greedy_generate.8}
  #allocation0 [shape = 'u32[]', space=smem, size = 0x4, offset = 0x4, fixed_abs, tag = 'smem constant byte address 0x4 - core index']
  #allocation1 [shape = 'u32[144,128]{1,0:T(1,128)}', space=vmem, size = 0x12000, scoped, tag = 'internal scratch']
  #allocation2 [shape = 's32[1]{0}', space=sflag, size = 0x4, scoped, tag = 'scoped memory for greedy_generate.8']
  #allocation3 [shape = 's32[1]{0:T(128)S(6)}', space=smem, size = 0x200, scoped, tag = 'prefetched SMEM operand 0']
  %s0 = inlined_call_operand.<no memory space> [shape: s32[1], index: 0, kind: input, shape index: {}]
  %s1 = inlined_call_operand.vmem [shape: bf16[2,8,128], index: 1, kind: input, shape index: {}]
  %s2 = inlined_call_operand.vmem [shape: bf16[2,8,128], index: 2, kind: input, shape index: {}]
  %s3 = inlined_call_operand.vmem [shape: bf16[128,128], index: 3, kind: input, shape index: {}]
  %s4 = inlined_call_operand.vmem [shape: bf16[2,8,128], index: 4, kind: input, shape index: {}]
  %s5 = inlined_call_operand.vmem [shape: bf16[2,8,128], index: 5, kind: output, shape index: {}]
  %s6 = sld [smem:[#allocation0]]
  $region49: #{greedy_generate.8} parent=0
    _
  %s8 = ssub.s32 1, %s6
  %s9 = scalar_select 0, %s8, %s6
  %10 = sst [smem:[#allocation3]] %s0
  loop: start=0, step=1, limit=4
  $region2: #{greedy_generate.8} parent=0 // loop_pre_header
    _
  $region3: #{greedy_generate.8} parent=0 // loop_header
    %s12 = sphi 0, %s16
    %p13 = scmp.ge.s32.totalorder %s12, 4
    %s22 = sphi 0, %s24
    %s25 = sphi 0, %s22
    %s26 = sphi 0, %s25
    %s42 = sphi 0, %s26
    %s48 = sphi 0, %s50
    %s51 = sphi 0, %s48
    %s52 = sphi 0, %s51
    %s68 = sphi 0, %s52
    %s72 = sphi 0, %s72
    %s74 = sphi 0, %s72
    %s75 = sphi 0, %s74
    %s89 = sphi 0, %s75
    %s95 = sphi 0, %s97
    %s98 = sphi 0, %s95
    %s99 = sphi 0, %s98
    %s115 = sphi 0, %s99
    %s121 = sphi 0, %s123
    %s124 = sphi 0, %s121
    %s125 = sphi 0, %s124
    %s141 = sphi 0, %s125
  $region4: #{greedy_generate.8} parent=0 // loop_header_branch
    %15 = sbr.rel (%p13) target = $region8
  $region5: #{greedy_generate.8} parent=0 // loop_body
    %s17 = ssub.s32 %s12, 1
    %s18 = ssub.s32 %s12, 2
    %s19 = sadd.s32 %s12, 1
    %s20 = ssub.s32 %s12, %s19
    %p21 = scmp.eq.s32.totalorder %s20, 0
    %s23 = sadd.s32 %s22, 1
    %s24 = scalar_select %p21, %s22, %s23
    %p27 = pneg %p21
    %p28 = scmp.eq.s32.totalorder %s12, 1
    %p29 = por %p27, %p28
    %p30 = scmp.ne.s32.totalorder %s22, %s25
    %p31 = scmp.eq.s32.totalorder %s12, 0
    %p32 = por %p30, %p31
    %p33 = scmp.ne.s32.totalorder %s22, %s25
    %p34 = scmp.eq.s32.totalorder %s17, 1
    %p35 = por %p33, %p34
    %p36 = scmp.ne.s32.totalorder %s25, %s26
    %p37 = scmp.eq.s32.totalorder %s17, 0
    %p38 = por %p36, %p37
    %p39 = scmp.ne.s32.totalorder %s25, %s26
    %p40 = scmp.eq.s32.totalorder %s18, 1
    %p41 = por %p39, %p40
    %p43 = scmp.ne.s32.totalorder %s26, %s42
    %p44 = scmp.eq.s32.totalorder %s18, 0
    %p45 = por %p43, %p44
    %s46 = ssub.s32 %s12, %s19
    %p47 = scmp.eq.s32.totalorder %s46, 0
    %s49 = sadd.s32 %s48, 1
    %s50 = scalar_select %p47, %s48, %s49
    %p53 = pneg %p47
    %p54 = scmp.eq.s32.totalorder %s12, 1
    %p55 = por %p53, %p54
    %p56 = scmp.ne.s32.totalorder %s48, %s51
    %p57 = scmp.eq.s32.totalorder %s12, 0
    %p58 = por %p56, %p57
    %p59 = scmp.ne.s32.totalorder %s48, %s51
    %p60 = scmp.eq.s32.totalorder %s17, 1
    %p61 = por %p59, %p60
    %p62 = scmp.ne.s32.totalorder %s51, %s52
    %p63 = scmp.eq.s32.totalorder %s17, 0
    %p64 = por %p62, %p63
    %p65 = scmp.ne.s32.totalorder %s51, %s52
    %p66 = scmp.eq.s32.totalorder %s18, 1
    %p67 = por %p65, %p66
    %p69 = scmp.ne.s32.totalorder %s52, %s68
    %p70 = scmp.eq.s32.totalorder %s18, 0
    %p71 = por %p69, %p70
    %s73 = sadd.s32 %s72, 1
    %p76 = scmp.eq.s32.totalorder %s12, 1
    %p77 = scmp.ne.s32.totalorder %s72, %s74
    %p78 = scmp.eq.s32.totalorder %s12, 0
    %p79 = por %p77, %p78
    %p80 = scmp.ne.s32.totalorder %s72, %s74
    %p81 = scmp.eq.s32.totalorder %s17, 1
    %p82 = por %p80, %p81
    %p83 = scmp.ne.s32.totalorder %s74, %s75
    %p84 = scmp.eq.s32.totalorder %s17, 0
    %p85 = por %p83, %p84
    %p86 = scmp.ne.s32.totalorder %s74, %s75
    %p87 = scmp.eq.s32.totalorder %s18, 1
    %p88 = por %p86, %p87
    %p90 = scmp.ne.s32.totalorder %s75, %s89
    %p91 = scmp.eq.s32.totalorder %s18, 0
    %p92 = por %p90, %p91
    %s93 = ssub.s32 %s12, %s19
    %p94 = scmp.eq.s32.totalorder %s93, 0
    %s96 = sadd.s32 %s95, 1
    %s97 = scalar_select %p94, %s95, %s96
    %p100 = pneg %p94
    %p101 = scmp.eq.s32.totalorder %s12, 1
    %p102 = por %p100, %p101
    %p103 = scmp.ne.s32.totalorder %s95, %s98
    %p104 = scmp.eq.s32.totalorder %s12, 0
    %p105 = por %p103, %p104
    %p106 = scmp.ne.s32.totalorder %s95, %s98
    %p107 = scmp.eq.s32.totalorder %s17, 1
    %p108 = por %p106, %p107
    %p109 = scmp.ne.s32.totalorder %s98, %s99
    %p110 = scmp.eq.s32.totalorder %s17, 0
    %p111 = por %p109, %p110
    %p112 = scmp.ne.s32.totalorder %s98, %s99
    %p113 = scmp.eq.s32.totalorder %s18, 1
    %p114 = por %p112, %p113
    %p116 = scmp.ne.s32.totalorder %s99, %s115
    %p117 = scmp.eq.s32.totalorder %s18, 0
    %p118 = por %p116, %p117
    %s119 = ssub.s32 %s12, %s19
    %p120 = scmp.eq.s32.totalorder %s119, 0
    %s122 = sadd.s32 %s121, 1
    %s123 = scalar_select %p120, %s121, %s122
    %p126 = pneg %p120
    %p127 = scmp.eq.s32.totalorder %s12, 1
    %p128 = por %p126, %p127
    %p129 = scmp.ne.s32.totalorder %s121, %s124
    %p130 = scmp.eq.s32.totalorder %s12, 0
    %p131 = por %p129, %p130
    %p132 = scmp.ne.s32.totalorder %s121, %s124
    %p133 = scmp.eq.s32.totalorder %s17, 1
    %p134 = por %p132, %p133
    %p135 = scmp.ne.s32.totalorder %s124, %s125
    %p136 = scmp.eq.s32.totalorder %s17, 0
    %p137 = por %p135, %p136
    %p138 = scmp.ne.s32.totalorder %s124, %s125
    %p139 = scmp.eq.s32.totalorder %s18, 1
    %p140 = por %p138, %p139
    %p142 = scmp.ne.s32.totalorder %s125, %s141
    %p143 = scmp.eq.s32.totalorder %s18, 0
    %p144 = por %p142, %p143
    %p145 = scmp.le.s32.totalorder 1, %s12
    %p146 = scmp.lt.s32.totalorder %s12, 3
    %p147 = pnand %p145, %p146
    %p148 = pneg %p147
    // Predicated region
    $region9: #{greedy_generate.8} parent=5 // pred_check
      _
    $region10: #{greedy_generate.8} parent=5 // pred_check_branch
      %150 = sbr.rel (%p147) target = $region12
    $region11: #{greedy_generate.8} parent=5 // pred_region
      %s151 = ssub.s32 %s12, 1
      // Predicated region
      $region13: #{greedy_generate.8} parent=11 // pred_check
        %p152 = pneg %p85
      $region14: #{greedy_generate.8} parent=11 // pred_check_branch
        %154 = sbr.rel (%p152) target = $region16
      $region15: #{greedy_generate.8} parent=11 // pred_region
        _
      $region16: #{greedy_generate.8} parent=11 // pred_fallthru
        _
    $region12: #{greedy_generate.8} parent=5 // pred_fallthru
      _
    %p155 = scmp.lt.s32.totalorder %s12, 2
    // Predicated region
    $region17: #{greedy_generate.8} parent=5 // pred_check
      %p156 = pneg %p155
    $region18: #{greedy_generate.8} parent=5 // pred_check_branch
      %158 = sbr.rel (%p156) target = $region20
    $region19: #{greedy_generate.8} parent=5 // pred_region
      // Predicated region
      $region21: #{greedy_generate.8} parent=19 // pred_check
        %p159 = pneg %p32
      $region22: #{greedy_generate.8} parent=19 // pred_check_branch
        %161 = sbr.rel (%p159) target = $region24
      $region23: #{greedy_generate.8} parent=19 // pred_region
        %p162 = scmp.lt.s32.totalorder %s12, 1
        %s163 = scalar_select %p162, %s12, 1
        %s164 = smul.addr %s163, 4
        %s165 = scalar_lea.vmem %s1, %s164
      $region24: #{greedy_generate.8} parent=19 // pred_fallthru
        _
      // Predicated region
      $region25: #{greedy_generate.8} parent=19 // pred_check
        %p166 = pneg %p58
      $region26: #{greedy_generate.8} parent=19 // pred_check_branch
        %168 = sbr.rel (%p166) target = $region28
      $region27: #{greedy_generate.8} parent=19 // pred_region
        %p169 = scmp.lt.s32.totalorder %s12, 1
        %s170 = scalar_select %p169, %s12, 1
        %s171 = smul.addr %s170, 4
        %s172 = scalar_lea.vmem %s2, %s171
      $region28: #{greedy_generate.8} parent=19 // pred_fallthru
        _
      // Predicated region
      $region29: #{greedy_generate.8} parent=19 // pred_check
        %p173 = pneg %p105
      $region30: #{greedy_generate.8} parent=19 // pred_check_branch
        %175 = sbr.rel (%p173) target = $region32
      $region31: #{greedy_generate.8} parent=19 // pred_region
        %p176 = scmp.lt.s32.totalorder %s12, 1
        %s177 = scalar_select %p176, %s12, 1
        %s178 = smul.addr %s177, 4
        %s179 = scalar_lea.vmem %s4, %s178
      $region32: #{greedy_generate.8} parent=19 // pred_fallthru
        _
    $region20: #{greedy_generate.8} parent=5 // pred_fallthru
      _
    %p180 = scmp.le.s32.totalorder 1, %s12
    %p181 = scmp.lt.s32.totalorder %s12, 3
    %p182 = pnand %p180, %p181
    %p183 = pneg %p182
    // Predicated region
    $region33: #{greedy_generate.8} parent=5 // pred_check
      _
    $region34: #{greedy_generate.8} parent=5 // pred_check_branch
      %185 = sbr.rel (%p182) target = $region36
    $region35: #{greedy_generate.8} parent=5 // pred_region
      %s186 = ssub.s32 %s12, 1
      %p187 = scmp.lt.s32.totalorder %s17, 1
      %s188 = scalar_select %p187, %s17, 1
      %s189 = smul.addr %s188, 4
      %s190 = scalar_lea.vmem %s1, %s189
      %p191 = pneg %p38
      %p192 = pneg %p35
      %p193 = scmp.lt.s32.totalorder %s17, 1
      %s194 = scalar_select %p193, %s17, 1
      %s195 = smul.addr %s194, 4
      %s196 = scalar_lea.vmem %s2, %s195
      %p197 = pneg %p64
      %p198 = pneg %p61
      %p199 = pneg %p85
      %p200 = pneg %p82
      %p201 = scmp.lt.s32.totalorder %s17, 1
      %s202 = scalar_select %p201, %s17, 1
      %s203 = smul.addr %s202, 4
      %s204 = scalar_lea.vmem %s4, %s203
      %p205 = pneg %p111
      %p206 = pneg %p108
      %p207 = pneg %p137
      %p208 = pneg %p134
      %p209 = scmp.lt.s32.totalorder %s17, 1
      %s210 = scalar_select %p209, %s17, 1
      %s211 = smul.addr %s210, 4
      %s212 = scalar_lea.vmem %s5, %s211
      %p213 = scmp.lt.s32.totalorder %s17, 1
      %s214 = scalar_select %p213, %s17, 1
      %s215 = smul.addr %s214, 4
      %s216 = scalar_lea.vmem %s1, %s215
      %p217 = scmp.lt.s32.totalorder %s17, 1
      %s218 = scalar_select %p217, %s17, 1
      %s219 = smul.addr %s218, 4
      %s220 = scalar_lea.vmem %s2, %s219
      %p221 = scmp.lt.s32.totalorder %s17, 1
      %s222 = scalar_select %p221, %s17, 1
      %s223 = smul.addr %s222, 4
      %s224 = scalar_lea.vmem %s4, %s223
      %p225 = scmp.lt.s32.totalorder %s17, 1
      %s226 = scalar_select %p225, %s17, 1
      %s227 = smul.addr %s226, 4
      %s228 = scalar_lea.vmem %s5, %s227
      %v230 = vld [vmem:[%s216] sm:$0xf]
      %v231 = vld [vmem:[%s220] sm:$0xf]
      %233 = vrot.lane.b32.xlu0 %v230, 96
      %v234 = vpop.permute.xlu0 %233
      %235 = vrot.lane.b32.xlu0 %v230, 64
      %v236 = vpop.permute.xlu0 %235
      %237 = vrot.lane.b32.xlu0 %v230, 32
      %v238 = vpop.permute.xlu0 %237
      %v241 = vpack.i.b16 %v234, %v230
      %v242 = vshrl.u32 %v230, 16
      %v243 = vshrl.u32 %v234, 16
      %v244 = vpack.i.b16 %v243, %v242
      %v247 = vpack.i.b16 %v238, %v236
      %v248 = vshrl.u32 %v236, 16
      %v249 = vshrl.u32 %v238, 16
      %v250 = vpack.i.b16 %v249, %v248
      %v253 = vunpack.c.l.s4 1983009808
      %v254 = vunpack.c.0.s8 %v253
      %v255 = vlaneseq
      %v256 = vshrl.u32 %v255, 7
      %v257 = vsub.s32 %v254, %v256
      %v258 = vrot.slane %v241, %v257
      %v261 = vunpack.c.l.s4 1983009808
      %v262 = vunpack.c.0.s8 %v261
      %v263 = vlaneseq
      %v264 = vshrl.u32 %v263, 7
      %v265 = vsub.s32 %v262, %v264
      %v266 = vrot.slane %v247, %v265
      %v267 = vcombine.low %v258, %v266
      %v268 = vcombine.high %v258, %v266
      %v270 = vunpack.c.l.s4 1934713408
      %v271 = vunpack.c.0.s8 %v270
      %v272 = vlaneseq
      %v273 = vshrl.u32 %v272, 7
      %v274 = vsub.s32 %v271, %v273
      %v275 = vrot.slane %v267, %v274
      %v277 = vunpack.c.l.s4 1934713408
      %v278 = vunpack.c.0.s8 %v277
      %v279 = vlaneseq
      %v280 = vshrl.u32 %v279, 7
      %v281 = vsub.s32 %v278, %v280
      %v282 = vrot.slane %v268, %v281
      %v283 = vcombine.high %v275, 0
      %v284 = vcombine.high %v282, 0
      %v287 = vunpack.c.l.s4 1983009808
      %v288 = vunpack.c.0.s8 %v287
      %v289 = vlaneseq
      %v290 = vshrl.u32 %v289, 7
      %v291 = vsub.s32 %v288, %v290
      %v292 = vrot.slane %v244, %v291
      %v295 = vunpack.c.l.s4 1983009808
      %v296 = vunpack.c.0.s8 %v295
      %v297 = vlaneseq
      %v298 = vshrl.u32 %v297, 7
      %v299 = vsub.s32 %v296, %v298
      %v300 = vrot.slane %v250, %v299
      %v301 = vcombine.low %v292, %v300
      %v302 = vcombine.high %v292, %v300
      %v304 = vunpack.c.l.s4 1934713408
      %v305 = vunpack.c.0.s8 %v304
      %v306 = vlaneseq
      %v307 = vshrl.u32 %v306, 7
      %v308 = vsub.s32 %v305, %v307
      %v309 = vrot.slane %v301, %v308
      %v311 = vunpack.c.l.s4 1934713408
      %v312 = vunpack.c.0.s8 %v311
      %v313 = vlaneseq
      %v314 = vshrl.u32 %v313, 7
      %v315 = vsub.s32 %v312, %v314
      %v316 = vrot.slane %v302, %v315
      %v317 = vcombine.high %v309, 0
      %v318 = vcombine.high %v316, 0
      %v319 = vcombine.low %v275, %v282
      %v321 = vunpack.c.l.s4 1983009808
      %v322 = vunpack.c.0.s8 %v321
      %v323 = vlaneseq
      %v324 = vshrl.u32 %v323, 7
      %v325 = vsub.s32 %v322, %v324
      %v326 = vrot.slane %v319, %v325
      %v327 = vcombine.low %v283, %v284
      %v329 = vunpack.c.l.s4 1983009808
      %v330 = vunpack.c.0.s8 %v329
      %v331 = vlaneseq
      %v332 = vshrl.u32 %v331, 7
      %v333 = vsub.s32 %v330, %v332
      %v334 = vrot.slane %v327, %v333
      %v335 = vcombine.low %v326, %v334
      %v337 = vunpack.c.l.s4 1934713408
      %v338 = vunpack.c.0.s8 %v337
      %v339 = vlaneseq
      %v340 = vshrl.u32 %v339, 7
      %v341 = vsub.s32 %v338, %v340
      %v342 = vrot.slane %v335, %v341
      %v343 = vcombine.high %v342, 0
      %v344 = vcombine.low %v309, %v316
      %v346 = vunpack.c.l.s4 1983009808
      %v347 = vunpack.c.0.s8 %v346
      %v348 = vlaneseq
      %v349 = vshrl.u32 %v348, 7
      %v350 = vsub.s32 %v347, %v349
      %v351 = vrot.slane %v344, %v350
      %v352 = vcombine.low %v317, %v318
      %v354 = vunpack.c.l.s4 1983009808
      %v355 = vunpack.c.0.s8 %v354
      %v356 = vlaneseq
      %v357 = vshrl.u32 %v356, 7
      %v358 = vsub.s32 %v355, %v357
      %v359 = vrot.slane %v352, %v358
      %v360 = vcombine.low %v351, %v359
      %v362 = vunpack.c.l.s4 1934713408
      %v363 = vunpack.c.0.s8 %v362
      %v364 = vlaneseq
      %v365 = vshrl.u32 %v364, 7
      %v366 = vsub.s32 %v363, %v365
      %v367 = vrot.slane %v360, %v366
      %v368 = vcombine.high %v367, 0
      %v371 = vpack.i.b16 %v367, %v342
      %v372 = vshrl.u32 %v342, 16
      %v373 = vshrl.u32 %v367, 16
      %v374 = vpack.i.b16 %v373, %v372
      %v377 = vpack.i.b16 %v368, %v343
      %v378 = vshrl.u32 %v343, 16
      %v379 = vshrl.u32 %v368, 16
      %v380 = vpack.i.b16 %v379, %v378
      %382 = vrot.lane.b32.xlu0 %v231, 96
      %v383 = vpop.permute.xlu0 %382
      %384 = vrot.lane.b32.xlu0 %v231, 64
      %v385 = vpop.permute.xlu0 %384
      %386 = vrot.lane.b32.xlu0 %v231, 32
      %v387 = vpop.permute.xlu0 %386
      %v390 = vpack.i.b16 %v383, %v231
      %v391 = vshrl.u32 %v231, 16
      %v392 = vshrl.u32 %v383, 16
      %v393 = vpack.i.b16 %v392, %v391
      %v396 = vpack.i.b16 %v387, %v385
      %v397 = vshrl.u32 %v385, 16
      %v398 = vshrl.u32 %v387, 16
      %v399 = vpack.i.b16 %v398, %v397
      %v402 = vunpack.c.l.s4 1983009808
      %v403 = vunpack.c.0.s8 %v402
      %v404 = vlaneseq
      %v405 = vshrl.u32 %v404, 7
      %v406 = vsub.s32 %v403, %v405
      %v407 = vrot.slane %v390, %v406
      %v410 = vunpack.c.l.s4 1983009808
      %v411 = vunpack.c.0.s8 %v410
      %v412 = vlaneseq
      %v413 = vshrl.u32 %v412, 7
      %v414 = vsub.s32 %v411, %v413
      %v415 = vrot.slane %v396, %v414
      %v416 = vcombine.low %v407, %v415
      %v417 = vcombine.high %v407, %v415
      %v419 = vunpack.c.l.s4 1934713408
      %v420 = vunpack.c.0.s8 %v419
      %v421 = vlaneseq
      %v422 = vshrl.u32 %v421, 7
      %v423 = vsub.s32 %v420, %v422
      %v424 = vrot.slane %v416, %v423
      %v426 = vunpack.c.l.s4 1934713408
      %v427 = vunpack.c.0.s8 %v426
      %v428 = vlaneseq
      %v429 = vshrl.u32 %v428, 7
      %v430 = vsub.s32 %v427, %v429
      %v431 = vrot.slane %v417, %v430
      %v432 = vcombine.high %v424, 0
      %v433 = vcombine.high %v431, 0
      %v436 = vunpack.c.l.s4 1983009808
      %v437 = vunpack.c.0.s8 %v436
      %v438 = vlaneseq
      %v439 = vshrl.u32 %v438, 7
      %v440 = vsub.s32 %v437, %v439
      %v441 = vrot.slane %v393, %v440
      %v444 = vunpack.c.l.s4 1983009808
      %v445 = vunpack.c.0.s8 %v444
      %v446 = vlaneseq
      %v447 = vshrl.u32 %v446, 7
      %v448 = vsub.s32 %v445, %v447
      %v449 = vrot.slane %v399, %v448
      %v450 = vcombine.low %v441, %v449
      %v451 = vcombine.high %v441, %v449
      %v453 = vunpack.c.l.s4 1934713408
      %v454 = vunpack.c.0.s8 %v453
      %v455 = vlaneseq
      %v456 = vshrl.u32 %v455, 7
      %v457 = vsub.s32 %v454, %v456
      %v458 = vrot.slane %v450, %v457
      %v460 = vunpack.c.l.s4 1934713408
      %v461 = vunpack.c.0.s8 %v460
      %v462 = vlaneseq
      %v463 = vshrl.u32 %v462, 7
      %v464 = vsub.s32 %v461, %v463
      %v465 = vrot.slane %v451, %v464
      %v466 = vcombine.high %v458, 0
      %v467 = vcombine.high %v465, 0
      %v468 = vcombine.low %v424, %v431
      %v470 = vunpack.c.l.s4 1983009808
      %v471 = vunpack.c.0.s8 %v470
      %v472 = vlaneseq
      %v473 = vshrl.u32 %v472, 7
      %v474 = vsub.s32 %v471, %v473
      %v475 = vrot.slane %v468, %v474
      %v476 = vcombine.low %v432, %v433
      %v478 = vunpack.c.l.s4 1983009808
      %v479 = vunpack.c.0.s8 %v478
      %v480 = vlaneseq
      %v481 = vshrl.u32 %v480, 7
      %v482 = vsub.s32 %v479, %v481
      %v483 = vrot.slane %v476, %v482
      %v484 = vcombine.low %v475, %v483
      %v486 = vunpack.c.l.s4 1934713408
      %v487 = vunpack.c.0.s8 %v486
      %v488 = vlaneseq
      %v489 = vshrl.u32 %v488, 7
      %v490 = vsub.s32 %v487, %v489
      %v491 = vrot.slane %v484, %v490
      %v492 = vcombine.high %v491, 0
      %v493 = vcombine.low %v458, %v465
      %v495 = vunpack.c.l.s4 1983009808
      %v496 = vunpack.c.0.s8 %v495
      %v497 = vlaneseq
      %v498 = vshrl.u32 %v497, 7
      %v499 = vsub.s32 %v496, %v498
      %v500 = vrot.slane %v493, %v499
      %v501 = vcombine.low %v466, %v467
      %v503 = vunpack.c.l.s4 1983009808
      %v504 = vunpack.c.0.s8 %v503
      %v505 = vlaneseq
      %v506 = vshrl.u32 %v505, 7
      %v507 = vsub.s32 %v504, %v506
      %v508 = vrot.slane %v501, %v507
      %v509 = vcombine.low %v500, %v508
      %v511 = vunpack.c.l.s4 1934713408
      %v512 = vunpack.c.0.s8 %v511
      %v513 = vlaneseq
      %v514 = vshrl.u32 %v513, 7
      %v515 = vsub.s32 %v512, %v514
      %v516 = vrot.slane %v509, %v515
      %v517 = vcombine.high %v516, 0
      %v520 = vpack.i.b16 %v516, %v491
      %v521 = vshrl.u32 %v491, 16
      %v522 = vshrl.u32 %v516, 16
      %v523 = vpack.i.b16 %v522, %v521
      %v526 = vpack.i.b16 %v517, %v492
      %v527 = vshrl.u32 %v492, 16
      %v528 = vshrl.u32 %v517, 16
      %v529 = vpack.i.b16 %v528, %v527
      %vm530 = vcmask 261120
      %v532 = vsel %vm530, %v371, 0
      %v535 = vsel %vm530, %v520, 0
      %537 = vmatprep.subr.bf16.mxu0 0
      %538 = vmatpush1.bf16.xpose.msra.mxu0 0
      %539 = vmatprep.subr.bf16.mxu0 0
      %540 = vmatpush1.bf16.xpose.msra.mxu0 0
      %541 = vmatprep.subr.bf16.mxu0 0
      %542 = vmatpush1.bf16.xpose.msra.mxu0 0
      %543 = vmatprep.subr.bf16.mxu0 0
      %544 = vmatpush1.bf16.xpose.msra.mxu0 0
      %545 = vmatprep.subr.bf16.mxu0 0
      %546 = vmatpush1.bf16.xpose.msra.mxu0 0
      %547 = vmatprep.subr.bf16.mxu0 0
      %548 = vmatpush1.bf16.xpose.msra.mxu0 0
      %549 = vmatprep.subr.bf16.mxu0 0
      %550 = vmatpush1.bf16.xpose.msra.mxu0 0
      %551 = vmatprep.subr.bf16.mxu0 0
      %552 = vmatpush1.bf16.xpose.msra.mxu0 %v535
      %553 = vmatprep.subr.bf16.mxu0 0
      %554 = vmatpush2.bf16.xpose.msra.mxu0 0
      %555 = vmatprep.subr.bf16.mxu0 0
      %556 = vmatpush2.bf16.xpose.msra.mxu0 0
      %557 = vmatprep.subr.bf16.mxu0 0
      %558 = vmatpush2.bf16.xpose.msra.mxu0 0
      %559 = vmatprep.subr.bf16.mxu0 0
      %560 = vmatpush2.bf16.xpose.msra.mxu0 0
      %561 = vmatprep.subr.bf16.mxu0 0
      %562 = vmatpush2.bf16.xpose.msra.mxu0 0
      %563 = vmatprep.subr.bf16.mxu0 0
      %564 = vmatpush2.bf16.xpose.msra.mxu0 0
      %565 = vmatprep.subr.bf16.mxu0 0
      %566 = vmatpush2.bf16.xpose.msra.mxu0 0
      %567 = vmatprep.subr.bf16.mxu0 0
      %568 = vmatpush2.bf16.xpose.msra.mxu0 0
      %569 = vmatprep.mubr.bf16.mxu0 0
      %570 = vmatmul.mubr.bf16.gmra.mxu0 %v532
      %v571 = vpop.f32.mrf.mxu0
      %v572 = vadd.f32 0.0, %v571
      %v573 = vpop.f32.mrf.mxu0
      %v574 = vpop.f32.mrf.mxu0
      %v575 = vpop.f32.mrf.mxu0
      %576 = vdwg.mxu0
      %v578 = vsel %vm530, %v374, 0
      %580 = vmatprep.subr.bf16.mxu0 0
      %581 = vmatpush1.bf16.xpose.msra.mxu0 0
      %582 = vmatprep.subr.bf16.mxu0 0
      %583 = vmatpush1.bf16.xpose.msra.mxu0 0
      %584 = vmatprep.subr.bf16.mxu0 0
      %585 = vmatpush1.bf16.xpose.msra.mxu0 0
      %586 = vmatprep.subr.bf16.mxu0 0
      %587 = vmatpush1.bf16.xpose.msra.mxu0 0
      %588 = vmatprep.subr.bf16.mxu0 0
      %589 = vmatpush1.bf16.xpose.msra.mxu0 0
      %590 = vmatprep.subr.bf16.mxu0 0
      %591 = vmatpush1.bf16.xpose.msra.mxu0 0
      %592 = vmatprep.subr.bf16.mxu0 0
      %593 = vmatpush1.bf16.xpose.msra.mxu0 0
      %594 = vmatprep.subr.bf16.mxu0 0
      %595 = vmatpush1.bf16.xpose.msra.mxu0 %v535
      %596 = vmatprep.subr.bf16.mxu0 0
      %597 = vmatpush2.bf16.xpose.msra.mxu0 0
      %598 = vmatprep.subr.bf16.mxu0 0
      %599 = vmatpush2.bf16.xpose.msra.mxu0 0
      %600 = vmatprep.subr.bf16.mxu0 0
      %601 = vmatpush2.bf16.xpose.msra.mxu0 0
      %602 = vmatprep.subr.bf16.mxu0 0
      %603 = vmatpush2.bf16.xpose.msra.mxu0 0
      %604 = vmatprep.subr.bf16.mxu0 0
      %605 = vmatpush2.bf16.xpose.msra.mxu0 0
      %606 = vmatprep.subr.bf16.mxu0 0
      %607 = vmatpush2.bf16.xpose.msra.mxu0 0
      %608 = vmatprep.subr.bf16.mxu0 0
      %609 = vmatpush2.bf16.xpose.msra.mxu0 0
      %610 = vmatprep.subr.bf16.mxu0 0
      %611 = vmatpush2.bf16.xpose.msra.mxu0 0
      %612 = vmatprep.mubr.bf16.mxu0 0
      %613 = vmatmul.mubr.bf16.gmra.mxu0 %v578
      %v614 = vpop.f32.mrf.mxu0
      %v615 = vadd.f32 0.0, %v614
      %v616 = vpop.f32.mrf.mxu0
      %v617 = vpop.f32.mrf.mxu0
      %v618 = vpop.f32.mrf.mxu0
      %619 = vdwg.mxu0
      %v621 = vsel %vm530, %v377, 0
      %v624 = vsel %vm530, %v523, 0
      %626 = vmatprep.subr.bf16.mxu0 0
      %627 = vmatpush1.bf16.xpose.msra.mxu0 0
      %628 = vmatprep.subr.bf16.mxu0 0
      %629 = vmatpush1.bf16.xpose.msra.mxu0 0
      %630 = vmatprep.subr.bf16.mxu0 0
      %631 = vmatpush1.bf16.xpose.msra.mxu0 0
      %632 = vmatprep.subr.bf16.mxu0 0
      %633 = vmatpush1.bf16.xpose.msra.mxu0 0
      %634 = vmatprep.subr.bf16.mxu0 0
      %635 = vmatpush1.bf16.xpose.msra.mxu0 0
      %636 = vmatprep.subr.bf16.mxu0 0
      %637 = vmatpush1.bf16.xpose.msra.mxu0 0
      %638 = vmatprep.subr.bf16.mxu0 0
      %639 = vmatpush1.bf16.xpose.msra.mxu0 0
      %640 = vmatprep.subr.bf16.mxu0 0
      %641 = vmatpush1.bf16.xpose.msra.mxu0 %v624
      %642 = vmatprep.subr.bf16.mxu0 0
      %643 = vmatpush2.bf16.xpose.msra.mxu0 0
      %644 = vmatprep.subr.bf16.mxu0 0
      %645 = vmatpush2.bf16.xpose.msra.mxu0 0
      %646 = vmatprep.subr.bf16.mxu0 0
      %647 = vmatpush2.bf16.xpose.msra.mxu0 0
      %648 = vmatprep.subr.bf16.mxu0 0
      %649 = vmatpush2.bf16.xpose.msra.mxu0 0
      %650 = vmatprep.subr.bf16.mxu0 0
      %651 = vmatpush2.bf16.xpose.msra.mxu0 0
      %652 = vmatprep.subr.bf16.mxu0 0
      %653 = vmatpush2.bf16.xpose.msra.mxu0 0
      %654 = vmatprep.subr.bf16.mxu0 0
      %655 = vmatpush2.bf16.xpose.msra.mxu0 0
      %656 = vmatprep.subr.bf16.mxu0 0
      %657 = vmatpush2.bf16.xpose.msra.mxu0 0
      %658 = vmatprep.mubr.bf16.mxu0 0
      %659 = vmatmul.mubr.bf16.gmra.mxu0 %v621
      %v660 = vpop.f32.mrf.mxu0
      %v661 = vadd.f32 0.0, %v660
      %v662 = vpop.f32.mrf.mxu0
      %v663 = vpop.f32.mrf.mxu0
      %v664 = vpop.f32.mrf.mxu0
      %665 = vdwg.mxu0
      %v667 = vsel %vm530, %v380, 0
      %669 = vmatprep.subr.bf16.mxu0 0
      %670 = vmatpush1.bf16.xpose.msra.mxu0 0
      %671 = vmatprep.subr.bf16.mxu0 0
      %672 = vmatpush1.bf16.xpose.msra.mxu0 0
      %673 = vmatprep.subr.bf16.mxu0 0
      %674 = vmatpush1.bf16.xpose.msra.mxu0 0
      %675 = vmatprep.subr.bf16.mxu0 0
      %676 = vmatpush1.bf16.xpose.msra.mxu0 0
      %677 = vmatprep.subr.bf16.mxu0 0
      %678 = vmatpush1.bf16.xpose.msra.mxu0 0
      %679 = vmatprep.subr.bf16.mxu0 0
      %680 = vmatpush1.bf16.xpose.msra.mxu0 0
      %681 = vmatprep.subr.bf16.mxu0 0
      %682 = vmatpush1.bf16.xpose.msra.mxu0 0
      %683 = vmatprep.subr.bf16.mxu0 0
      %684 = vmatpush1.bf16.xpose.msra.mxu0 %v624
      %685 = vmatprep.subr.bf16.mxu0 0
      %686 = vmatpush2.bf16.xpose.msra.mxu0 0
      %687 = vmatprep.subr.bf16.mxu0 0
      %688 = vmatpush2.bf16.xpose.msra.mxu0 0
      %689 = vmatprep.subr.bf16.mxu0 0
      %690 = vmatpush2.bf16.xpose.msra.mxu0 0
      %691 = vmatprep.subr.bf16.mxu0 0
      %692 = vmatpush2.bf16.xpose.msra.mxu0 0
      %693 = vmatprep.subr.bf16.mxu0 0
      %694 = vmatpush2.bf16.xpose.msra.mxu0 0
      %695 = vmatprep.subr.bf16.mxu0 0
      %696 = vmatpush2.bf16.xpose.msra.mxu0 0
      %697 = vmatprep.subr.bf16.mxu0 0
      %698 = vmatpush2.bf16.xpose.msra.mxu0 0
      %699 = vmatprep.subr.bf16.mxu0 0
      %700 = vmatpush2.bf16.xpose.msra.mxu0 0
      %701 = vmatprep.mubr.bf16.mxu0 0
      %702 = vmatmul.mubr.bf16.gmra.mxu0 %v667
      %v703 = vpop.f32.mrf.mxu0
      %v704 = vadd.f32 0.0, %v703
      %v705 = vpop.f32.mrf.mxu0
      %v706 = vpop.f32.mrf.mxu0
      %v707 = vpop.f32.mrf.mxu0
      %708 = vdwg.mxu0
      %v709 = vmul.f32 %v572, 0.17677669
      %v710 = vmul.f32 %v615, 0.17677669
      %v711 = vmul.f32 %v661, 0.17677669
      %v712 = vmul.f32 %v704, 0.17677669
      %v713 = vlaneseq
      %v714 = vshrl.u32 %v713, 7
      %s715 = sld [smem:[#allocation3]]
      %v716 = vstv %s715
      %v717 = vadd.s32 %v714, %v716
      %v718 = vlaneseq
      %v719 = vand.u32 %v718, 127
      %vm720 = vcmp.le.s32.totalorder %v719, %v717
      %v721 = vsel %vm720, 1, 0
      %vm722 = vcmp.eq.s32.totalorder %v721, 1
      %v723 = vsel %vm722, %v709, -1e+30
      %v724 = vsel %vm722, %v710, -1e+30
      %v725 = vsel %vm722, %v711, -1e+30
      %v726 = vsel %vm722, %v712, -1e+30
      %vm727 = vcmask 64512
      %v728 = vsel %vm727, %v723, -inf
      %729 = vmax.xlane.f32.xlu0 %v728
      %v730 = vpop.xlane.xlu0 %729
      %v731 = vsel %vm727, %v724, -inf
      %732 = vmax.xlane.f32.xlu0 %v731
      %v733 = vpop.xlane.xlu0 %732
      %v734 = vsel %vm727, %v725, -inf
      %735 = vmax.xlane.f32.xlu0 %v734
      %v736 = vpop.xlane.xlu0 %735
      %v737 = vsel %vm727, %v726, -inf
      %738 = vmax.xlane.f32.xlu0 %v737
      %v739 = vpop.xlane.xlu0 %738
      %v740 = vsub.f32 %v723, %v730
      %v741 = vsub.f32 %v724, %v733
      %v742 = vsub.f32 %v725, %v736
      %v743 = vsub.f32 %v726, %v739
      %v744 = vmul.f32 %v740, 1.442695
      %v745 = vpow.pop %v744
      %v746 = vmul.f32 %v741, 1.442695
      %v747 = vpow.pop %v746
      %v748 = vmul.f32 %v742, 1.442695
      %v749 = vpow.pop %v748
      %v750 = vmul.f32 %v743, 1.442695
      %v751 = vpow.pop %v750
      %v752 = vsel %vm727, %v745, 0.0
      %753 = vadd.xlane.f32.xlu0 %v752
      %v754 = vpop.xlane.xlu0 %753
      %v755 = vsel %vm727, %v747, 0.0
      %756 = vadd.xlane.f32.xlu0 %v755
      %v757 = vpop.xlane.xlu0 %756
      %v758 = vsel %vm727, %v749, 0.0
      %759 = vadd.xlane.f32.xlu0 %v758
      %v760 = vpop.xlane.xlu0 %759
      %v761 = vsel %vm727, %v751, 0.0
      %762 = vadd.xlane.f32.xlu0 %v761
      %v763 = vpop.xlane.xlu0 %762
      %v764 = vpack.c.bf16 %v745, %v745
      %v765 = vpack.c.bf16 %v747, %v747
      %v766 = vpack.c.bf16 %v749, %v749
      %v767 = vpack.c.bf16 %v751, %v751
      %v769 = vsel %vm727, %v764, 0
      %vm771 = vcmask 1043456
      %v773 = vsel %vm771, %v526, 0
      %775 = vmatprep.subr.bf16.mxu0 0
      %776 = vmatpush1.bf16.msra.mxu0 0
      %777 = vmatprep.subr.bf16.mxu0 0
      %778 = vmatpush1.bf16.msra.mxu0 0
      %779 = vmatprep.subr.bf16.mxu0 0
      %780 = vmatpush1.bf16.msra.mxu0 0
      %781 = vmatprep.subr.bf16.mxu0 0
      %782 = vmatpush1.bf16.msra.mxu0 0
      %783 = vmatprep.subr.bf16.mxu0 0
      %784 = vmatpush1.bf16.msra.mxu0 0
      %785 = vmatprep.subr.bf16.mxu0 0
      %786 = vmatpush1.bf16.msra.mxu0 0
      %787 = vmatprep.subr.bf16.mxu0 0
      %788 = vmatpush1.bf16.msra.mxu0 0
      %789 = vmatprep.subr.bf16.mxu0 0
      %790 = vmatpush1.bf16.msra.mxu0 %v773
      %791 = vmatprep.subr.bf16.mxu0 0
      %792 = vmatpush2.bf16.msra.mxu0 0
      %793 = vmatprep.subr.bf16.mxu0 0
      %794 = vmatpush2.bf16.msra.mxu0 0
      %795 = vmatprep.subr.bf16.mxu0 0
      %796 = vmatpush2.bf16.msra.mxu0 0
      %797 = vmatprep.subr.bf16.mxu0 0
      %798 = vmatpush2.bf16.msra.mxu0 0
      %799 = vmatprep.subr.bf16.mxu0 0
      %800 = vmatpush2.bf16.msra.mxu0 0
      %801 = vmatprep.subr.bf16.mxu0 0
      %802 = vmatpush2.bf16.msra.mxu0 0
      %803 = vmatprep.subr.bf16.mxu0 0
      %804 = vmatpush2.bf16.msra.mxu0 0
      %805 = vmatprep.subr.bf16.mxu0 0
      %806 = vmatpush2.bf16.msra.mxu0 0
      %807 = vmatprep.mubr.bf16.mxu0 0
      %808 = vmatmul.mubr.bf16.gmra.mxu0 %v769
      %v809 = vpop.f32.mrf.mxu0
      %v810 = vadd.f32 0.0, %v809
      %v811 = vpop.f32.mrf.mxu0
      %v812 = vpop.f32.mrf.mxu0
      %v813 = vpop.f32.mrf.mxu0
      %814 = vdwg.mxu0
      %v816 = vsel %vm727, %v765, 0
      %818 = vmatprep.subr.bf16.mxu0 0
      %819 = vmatpush1.bf16.msra.mxu0 0
      %820 = vmatprep.subr.bf16.mxu0 0
      %821 = vmatpush1.bf16.msra.mxu0 0
      %822 = vmatprep.subr.bf16.mxu0 0
      %823 = vmatpush1.bf16.msra.mxu0 0
      %824 = vmatprep.subr.bf16.mxu0 0
      %825 = vmatpush1.bf16.msra.mxu0 0
      %826 = vmatprep.subr.bf16.mxu0 0
      %827 = vmatpush1.bf16.msra.mxu0 0
      %828 = vmatprep.subr.bf16.mxu0 0
      %829 = vmatpush1.bf16.msra.mxu0 0
      %830 = vmatprep.subr.bf16.mxu0 0
      %831 = vmatpush1.bf16.msra.mxu0 0
      %832 = vmatprep.subr.bf16.mxu0 0
      %833 = vmatpush1.bf16.msra.mxu0 %v773
      %834 = vmatprep.subr.bf16.mxu0 0
      %835 = vmatpush2.bf16.msra.mxu0 0
      %836 = vmatprep.subr.bf16.mxu0 0
      %837 = vmatpush2.bf16.msra.mxu0 0
      %838 = vmatprep.subr.bf16.mxu0 0
      %839 = vmatpush2.bf16.msra.mxu0 0
      %840 = vmatprep.subr.bf16.mxu0 0
      %841 = vmatpush2.bf16.msra.mxu0 0
      %842 = vmatprep.subr.bf16.mxu0 0
      %843 = vmatpush2.bf16.msra.mxu0 0
      %844 = vmatprep.subr.bf16.mxu0 0
      %845 = vmatpush2.bf16.msra.mxu0 0
      %846 = vmatprep.subr.bf16.mxu0 0
      %847 = vmatpush2.bf16.msra.mxu0 0
      %848 = vmatprep.subr.bf16.mxu0 0
      %849 = vmatpush2.bf16.msra.mxu0 0
      %850 = vmatprep.mubr.bf16.mxu0 0
      %851 = vmatmul.mubr.bf16.gmra.mxu0 %v816
      %v852 = vpop.f32.mrf.mxu0
      %v853 = vadd.f32 0.0, %v852
      %v854 = vpop.f32.mrf.mxu0
      %v855 = vpop.f32.mrf.mxu0
      %v856 = vpop.f32.mrf.mxu0
      %857 = vdwg.mxu0
      %v859 = vsel %vm727, %v766, 0
      %v862 = vsel %vm771, %v529, 0
      %864 = vmatprep.subr.bf16.mxu0 0
      %865 = vmatpush1.bf16.msra.mxu0 0
      %866 = vmatprep.subr.bf16.mxu0 0
      %867 = vmatpush1.bf16.msra.mxu0 0
      %868 = vmatprep.subr.bf16.mxu0 0
      %869 = vmatpush1.bf16.msra.mxu0 0
      %870 = vmatprep.subr.bf16.mxu0 0
      %871 = vmatpush1.bf16.msra.mxu0 0
      %872 = vmatprep.subr.bf16.mxu0 0
      %873 = vmatpush1.bf16.msra.mxu0 0
      %874 = vmatprep.subr.bf16.mxu0 0
      %875 = vmatpush1.bf16.msra.mxu0 0
      %876 = vmatprep.subr.bf16.mxu0 0
      %877 = vmatpush1.bf16.msra.mxu0 0
      %878 = vmatprep.subr.bf16.mxu0 0
      %879 = vmatpush1.bf16.msra.mxu0 %v862
      %880 = vmatprep.subr.bf16.mxu0 0
      %881 = vmatpush2.bf16.msra.mxu0 0
      %882 = vmatprep.subr.bf16.mxu0 0
      %883 = vmatpush2.bf16.msra.mxu0 0
      %884 = vmatprep.subr.bf16.mxu0 0
      %885 = vmatpush2.bf16.msra.mxu0 0
      %886 = vmatprep.subr.bf16.mxu0 0
      %887 = vmatpush2.bf16.msra.mxu0 0
      %888 = vmatprep.subr.bf16.mxu0 0
      %889 = vmatpush2.bf16.msra.mxu0 0
      %890 = vmatprep.subr.bf16.mxu0 0
      %891 = vmatpush2.bf16.msra.mxu0 0
      %892 = vmatprep.subr.bf16.mxu0 0
      %893 = vmatpush2.bf16.msra.mxu0 0
      %894 = vmatprep.subr.bf16.mxu0 0
      %895 = vmatpush2.bf16.msra.mxu0 0
      %896 = vmatprep.mubr.bf16.mxu0 0
      %897 = vmatmul.mubr.bf16.gmra.mxu0 %v859
      %v898 = vpop.f32.mrf.mxu0
      %v899 = vadd.f32 0.0, %v898
      %v900 = vpop.f32.mrf.mxu0
      %v901 = vpop.f32.mrf.mxu0
      %v902 = vpop.f32.mrf.mxu0
      %903 = vdwg.mxu0
      %v905 = vsel %vm727, %v767, 0
      %907 = vmatprep.subr.bf16.mxu0 0
      %908 = vmatpush1.bf16.msra.mxu0 0
      %909 = vmatprep.subr.bf16.mxu0 0
      %910 = vmatpush1.bf16.msra.mxu0 0
      %911 = vmatprep.subr.bf16.mxu0 0
      %912 = vmatpush1.bf16.msra.mxu0 0
      %913 = vmatprep.subr.bf16.mxu0 0
      %914 = vmatpush1.bf16.msra.mxu0 0
      %915 = vmatprep.subr.bf16.mxu0 0
      %916 = vmatpush1.bf16.msra.mxu0 0
      %917 = vmatprep.subr.bf16.mxu0 0
      %918 = vmatpush1.bf16.msra.mxu0 0
      %919 = vmatprep.subr.bf16.mxu0 0
      %920 = vmatpush1.bf16.msra.mxu0 0
      %921 = vmatprep.subr.bf16.mxu0 0
      %922 = vmatpush1.bf16.msra.mxu0 %v862
      %923 = vmatprep.subr.bf16.mxu0 0
      %924 = vmatpush2.bf16.msra.mxu0 0
      %925 = vmatprep.subr.bf16.mxu0 0
      %926 = vmatpush2.bf16.msra.mxu0 0
      %927 = vmatprep.subr.bf16.mxu0 0
      %928 = vmatpush2.bf16.msra.mxu0 0
      %929 = vmatprep.subr.bf16.mxu0 0
      %930 = vmatpush2.bf16.msra.mxu0 0
      %931 = vmatprep.subr.bf16.mxu0 0
      %932 = vmatpush2.bf16.msra.mxu0 0
      %933 = vmatprep.subr.bf16.mxu0 0
      %934 = vmatpush2.bf16.msra.mxu0 0
      %935 = vmatprep.subr.bf16.mxu0 0
      %936 = vmatpush2.bf16.msra.mxu0 0
      %937 = vmatprep.subr.bf16.mxu0 0
      %938 = vmatpush2.bf16.msra.mxu0 0
      %939 = vmatprep.mubr.bf16.mxu0 0
      %940 = vmatmul.mubr.bf16.gmra.mxu0 %v905
      %v941 = vpop.f32.mrf.mxu0
      %v942 = vadd.f32 0.0, %v941
      %v943 = vpop.f32.mrf.mxu0
      %v944 = vpop.f32.mrf.mxu0
      %v945 = vpop.f32.mrf.mxu0
      %946 = vdwg.mxu0
      %v947 = vrcp.pop %v754
      %v948 = vmul.f32 %v810, %v947
      %v949 = vrcp.pop %v757
      %v950 = vmul.f32 %v853, %v949
      %v951 = vrcp.pop %v760
      %v952 = vmul.f32 %v899, %v951
      %v953 = vrcp.pop %v763
      %v954 = vmul.f32 %v942, %v953
      %v955 = vcombine.low %v948, %v952
      %v956 = vcombine.high %v948, %v952
      %v958 = vunpack.c.l.s4 1983009808
      %v959 = vunpack.c.0.s8 %v958
      %v960 = vlaneseq
      %v961 = vshrl.u32 %v960, 7
      %v962 = vsub.s32 %v959, %v961
      %v963 = vrot.slane %v955, %v962
      %v965 = vunpack.c.l.s4 1983009808
      %v966 = vunpack.c.0.s8 %v965
      %v967 = vlaneseq
      %v968 = vshrl.u32 %v967, 7
      %v969 = vsub.s32 %v966, %v968
      %v970 = vrot.slane %v956, %v969
      %v971 = vcombine.low %v950, %v954
      %v972 = vcombine.high %v950, %v954
      %v974 = vunpack.c.l.s4 1983009808
      %v975 = vunpack.c.0.s8 %v974
      %v976 = vlaneseq
      %v977 = vshrl.u32 %v976, 7
      %v978 = vsub.s32 %v975, %v977
      %v979 = vrot.slane %v971, %v978
      %v981 = vunpack.c.l.s4 1983009808
      %v982 = vunpack.c.0.s8 %v981
      %v983 = vlaneseq
      %v984 = vshrl.u32 %v983, 7
      %v985 = vsub.s32 %v982, %v984
      %v986 = vrot.slane %v972, %v985
      %v987 = vcombine.low %v963, %v979
      %v988 = vcombine.high %v963, %v979
      %v990 = vunpack.c.l.s4 1934713408
      %v991 = vunpack.c.0.s8 %v990
      %v992 = vlaneseq
      %v993 = vshrl.u32 %v992, 7
      %v994 = vsub.s32 %v991, %v993
      %v995 = vrot.slane %v987, %v994
      %v997 = vunpack.c.l.s4 1934713408
      %v998 = vunpack.c.0.s8 %v997
      %v999 = vlaneseq
      %v1000 = vshrl.u32 %v999, 7
      %v1001 = vsub.s32 %v998, %v1000
      %v1002 = vrot.slane %v988, %v1001
      %v1003 = vcombine.low %v970, %v986
      %v1004 = vcombine.high %v970, %v986
      %v1006 = vunpack.c.l.s4 1934713408
      %v1007 = vunpack.c.0.s8 %v1006
      %v1008 = vlaneseq
      %v1009 = vshrl.u32 %v1008, 7
      %v1010 = vsub.s32 %v1007, %v1009
      %v1011 = vrot.slane %v1003, %v1010
      %v1013 = vunpack.c.l.s4 1934713408
      %v1014 = vunpack.c.0.s8 %v1013
      %v1015 = vlaneseq
      %v1016 = vshrl.u32 %v1015, 7
      %v1017 = vsub.s32 %v1014, %v1016
      %v1018 = vrot.slane %v1004, %v1017
      %v1019 = vcombine.high %v995, 0.0
      %v1020 = vcombine.high %v1002, 0.0
      %v1021 = vcombine.high %v1011, 0.0
      %v1022 = vcombine.high %v1018, 0.0
      %v1023 = vcombine.low %v995, %v1002
      %v1025 = vunpack.c.l.s4 1983009808
      %v1026 = vunpack.c.0.s8 %v1025
      %v1027 = vlaneseq
      %v1028 = vshrl.u32 %v1027, 7
      %v1029 = vsub.s32 %v1026, %v1028
      %v1030 = vrot.slane %v1023, %v1029
      %v1031 = vcombine.low %v1019, %v1020
      %v1033 = vunpack.c.l.s4 1983009808
      %v1034 = vunpack.c.0.s8 %v1033
      %v1035 = vlaneseq
      %v1036 = vshrl.u32 %v1035, 7
      %v1037 = vsub.s32 %v1034, %v1036
      %v1038 = vrot.slane %v1031, %v1037
      %v1039 = vcombine.low %v1011, %v1018
      %v1041 = vunpack.c.l.s4 1983009808
      %v1042 = vunpack.c.0.s8 %v1041
      %v1043 = vlaneseq
      %v1044 = vshrl.u32 %v1043, 7
      %v1045 = vsub.s32 %v1042, %v1044
      %v1046 = vrot.slane %v1039, %v1045
      %v1047 = vcombine.low %v1021, %v1022
      %v1049 = vunpack.c.l.s4 1983009808
      %v1050 = vunpack.c.0.s8 %v1049
      %v1051 = vlaneseq
      %v1052 = vshrl.u32 %v1051, 7
      %v1053 = vsub.s32 %v1050, %v1052
      %v1054 = vrot.slane %v1047, %v1053
      %v1055 = vcombine.low %v1030, %v1038
      %v1056 = vcombine.high %v1030, %v1038
      %v1058 = vunpack.c.l.s4 1934713408
      %v1059 = vunpack.c.0.s8 %v1058
      %v1060 = vlaneseq
      %v1061 = vshrl.u32 %v1060, 7
      %v1062 = vsub.s32 %v1059, %v1061
      %v1063 = vrot.slane %v1055, %v1062
      %v1065 = vunpack.c.l.s4 1934713408
      %v1066 = vunpack.c.0.s8 %v1065
      %v1067 = vlaneseq
      %v1068 = vshrl.u32 %v1067, 7
      %v1069 = vsub.s32 %v1066, %v1068
      %v1070 = vrot.slane %v1056, %v1069
      %v1071 = vcombine.low %v1046, %v1054
      %v1072 = vcombine.high %v1046, %v1054
      %v1074 = vunpack.c.l.s4 1934713408
      %v1075 = vunpack.c.0.s8 %v1074
      %v1076 = vlaneseq
      %v1077 = vshrl.u32 %v1076, 7
      %v1078 = vsub.s32 %v1075, %v1077
      %v1079 = vrot.slane %v1071, %v1078
      %v1081 = vunpack.c.l.s4 1934713408
      %v1082 = vunpack.c.0.s8 %v1081
      %v1083 = vlaneseq
      %v1084 = vshrl.u32 %v1083, 7
      %v1085 = vsub.s32 %v1082, %v1084
      %v1086 = vrot.slane %v1072, %v1085
      %v1087 = vcombine.low %v1063, %v1079
      %v1088 = vcombine.high %v1063, %v1079
      %v1089 = vcombine.low %v1070, %v1086
      %v1090 = vcombine.high %v1070, %v1086
      %1092 = vrot.lane.b32.xlu0 %v1088, 32
      %v1093 = vpop.permute.xlu0 %1092
      %1096 = vrot.lane.b32.xlu0 %v1089, 64
      %v1097 = vpop.permute.xlu0 %1096
      %1100 = vrot.lane.b32.xlu0 %v1090, 96
      %v1101 = vpop.permute.xlu0 %1100
      %v1103 = vsel %vm530, %v1087, %v1093
      %vm1104 = vcmask 523264
      %v1105 = vsel %vm1104, %v1103, %v1097
      %vm1106 = vcmask 785408
      %v1107 = vsel %vm1106, %v1105, %v1101
      %v1108 = vpack.c.bf16 %v1107, %v1107
      %v1109 = vld [vmem:[%s3] sm:$0xf]
      %v1110 = vld [vmem:[%s3 + $0x4] sm:$0xf]
      %v1111 = vld [vmem:[%s3 + $0x8] sm:$0xf]
      %v1112 = vld [vmem:[%s3 + $0xc] sm:$0xf]
      %v1113 = vld [vmem:[%s3 + $0x10] sm:$0xf]
      %v1114 = vld [vmem:[%s3 + $0x14] sm:$0xf]
      %v1115 = vld [vmem:[%s3 + $0x18] sm:$0xf]
      %v1116 = vld [vmem:[%s3 + $0x1c] sm:$0xf]
      %v1117 = vld [vmem:[%s3 + $0x20] sm:$0xf]
      %v1118 = vld [vmem:[%s3 + $0x24] sm:$0xf]
      %v1119 = vld [vmem:[%s3 + $0x28] sm:$0xf]
      %v1120 = vld [vmem:[%s3 + $0x2c] sm:$0xf]
      %v1121 = vld [vmem:[%s3 + $0x30] sm:$0xf]
      %v1122 = vld [vmem:[%s3 + $0x34] sm:$0xf]
      %v1123 = vld [vmem:[%s3 + $0x38] sm:$0xf]
      %v1124 = vld [vmem:[%s3 + $0x3c] sm:$0xf]
      %v1141 = vunpack.c.l.b16 %v1109
      %v1142 = vunpack.c.l.b16 %v1110
      %v1143 = vunpack.c.l.b16 %v1111
      %v1144 = vunpack.c.l.b16 %v1112
      %v1145 = vunpack.c.l.b16 %v1113
      %v1146 = vunpack.c.l.b16 %v1114
      %v1147 = vunpack.c.l.b16 %v1115
      %v1148 = vunpack.c.l.b16 %v1116
      %v1149 = vunpack.c.l.b16 %v1117
      %v1150 = vunpack.c.l.b16 %v1118
      %v1151 = vunpack.c.l.b16 %v1119
      %v1152 = vunpack.c.l.b16 %v1120
      %v1153 = vunpack.c.l.b16 %v1121
      %v1154 = vunpack.c.l.b16 %v1122
      %v1155 = vunpack.c.l.b16 %v1123
      %v1156 = vunpack.c.l.b16 %v1124
      %v1157 = vpack.c.b16 %v1142, %v1141
      %v1158 = vpack.c.b16 %v1144, %v1143
      %v1159 = vpack.c.b16 %v1146, %v1145
      %v1160 = vpack.c.b16 %v1148, %v1147
      %v1161 = vpack.c.b16 %v1150, %v1149
      %v1162 = vpack.c.b16 %v1152, %v1151
      %v1163 = vpack.c.b16 %v1154, %v1153
      %v1164 = vpack.c.b16 %v1156, %v1155
      %1173 = vmatprep.subr.bf16.mxu0 0
      %1174 = vmatpush1.bf16.msra.mxu0 %v1164
      %1175 = vmatprep.subr.bf16.mxu0 0
      %1176 = vmatpush1.bf16.msra.mxu0 %v1163
      %1177 = vmatprep.subr.bf16.mxu0 0
      %1178 = vmatpush1.bf16.msra.mxu0 %v1162
      %1179 = vmatprep.subr.bf16.mxu0 0
      %1180 = vmatpush1.bf16.msra.mxu0 %v1161
      %1181 = vmatprep.subr.bf16.mxu0 0
      %1182 = vmatpush1.bf16.msra.mxu0 %v1160
      %1183 = vmatprep.subr.bf16.mxu0 0
      %1184 = vmatpush1.bf16.msra.mxu0 %v1159
      %1185 = vmatprep.subr.bf16.mxu0 0
      %1186 = vmatpush1.bf16.msra.mxu0 %v1158
      %1187 = vmatprep.subr.bf16.mxu0 0
      %1188 = vmatpush1.bf16.msra.mxu0 %v1157
      %1189 = vmatprep.subr.bf16.mxu0 0
      %1190 = vmatpush2.bf16.msra.mxu0 0
      %1191 = vmatprep.subr.bf16.mxu0 0
      %1192 = vmatpush2.bf16.msra.mxu0 0
      %1193 = vmatprep.subr.bf16.mxu0 0
      %1194 = vmatpush2.bf16.msra.mxu0 0
      %1195 = vmatprep.subr.bf16.mxu0 0
      %1196 = vmatpush2.bf16.msra.mxu0 0
      %1197 = vmatprep.subr.bf16.mxu0 0
      %1198 = vmatpush2.bf16.msra.mxu0 0
      %1199 = vmatprep.subr.bf16.mxu0 0
      %1200 = vmatpush2.bf16.msra.mxu0 0
      %1201 = vmatprep.subr.bf16.mxu0 0
      %1202 = vmatpush2.bf16.msra.mxu0 0
      %1203 = vmatprep.subr.bf16.mxu0 0
      %1204 = vmatpush2.bf16.msra.mxu0 0
      %1205 = vmatprep.mubr.bf16.mxu0 0
      %1206 = vmatmul.mubr.bf16.gmra.mxu0 %v1108
      %v1207 = vpop.f32.mrf.mxu0
      %v1208 = vadd.f32 0.0, %v1207
      %v1209 = vpop.f32.mrf.mxu0
      %v1210 = vpop.f32.mrf.mxu0
      %v1211 = vpop.f32.mrf.mxu0
      %1212 = vdwg.mxu0
      %v1213 = vld [vmem:[%s224] sm:$0xf]
      %v1214 = vunpack.c.l.bf16 %v1213
      %v1215 = vadd.f32 %v1214, %v1208
      %v1216 = vpack.c.bf16 %v1215, %v1215
      %1217 = vst [vmem:[%s228] sm:$0xf] %v1216
      %p1218 = scmp.lt.s32.totalorder %s17, 1
      %s1219 = scalar_select %p1218, %s17, 1
      %s1220 = smul.addr %s1219, 4
      %s1221 = scalar_lea.vmem %s5, %s1220
      // Predicated region
      $region37: #{greedy_generate.8} parent=35 // pred_check
        %p1222 = pneg %p134
      $region38: #{greedy_generate.8} parent=35 // pred_check_branch
        %1224 = sbr.rel (%p1222) target = $region40
      $region39: #{greedy_generate.8} parent=35 // pred_region
        _
      $region40: #{greedy_generate.8} parent=35 // pred_fallthru
        _
    $region36: #{greedy_generate.8} parent=5 // pred_fallthru
      _
    %p1225 = scmp.le.s32.totalorder 2, %s12
    // Predicated region
    $region41: #{greedy_generate.8} parent=5 // pred_check
      %p1226 = pneg %p1225
    $region42: #{greedy_generate.8} parent=5 // pred_check_branch
      %1228 = sbr.rel (%p1226) target = $region44
    $region43: #{greedy_generate.8} parent=5 // pred_region
      %s1229 = ssub.s32 %s12, 2
      // Predicated region
      $region45: #{greedy_generate.8} parent=43 // pred_check
        %p1230 = pneg %p140
      $region46: #{greedy_generate.8} parent=43 // pred_check_branch
        %1232 = sbr.rel (%p1230) target = $region48
      $region47: #{greedy_generate.8} parent=43 // pred_region
        %p1233 = scmp.lt.s32.totalorder %s18, 1
        %s1234 = scalar_select %p1233, %s18, 1
        %s1235 = smul.addr %s1234, 4
        %s1236 = scalar_lea.vmem %s5, %s1235
      $region48: #{greedy_generate.8} parent=43 // pred_fallthru
        _
    $region44: #{greedy_generate.8} parent=5 // pred_fallthru
      _
  $region6: #{greedy_generate.8} parent=0 // loop_footer
    %s16 = sadd.s32 1, %s12
  $region7: #{greedy_generate.8} parent=0 // loop_footer_branch
    %11 = sbr.rel target = $region3
  $region8: #{greedy_generate.8} parent=0 // loop_exit
    _

// kernel: closed_call.109
$region0: #{closed_call.109}
  #allocation0 [shape = 'u32[]', space=smem, size = 0x4, offset = 0x4, fixed_abs, tag = 'smem constant byte address 0x4 - core index']
  #allocation1 [shape = 'u32[144,128]{1,0:T(1,128)}', space=vmem, size = 0x12000, scoped, tag = 'internal scratch']
  %s0 = inlined_call_operand.vmem [shape: bf16[2,128], index: 0, kind: input, shape index: {}]
  %s1 = inlined_call_operand.vmem [shape: f32[1,128], index: 1, kind: input, shape index: {}]
  %s2 = inlined_call_operand.vmem [shape: bf16[128,256], index: 2, kind: input, shape index: {}]
  %s3 = inlined_call_operand.vmem [shape: f32[2,256], index: 3, kind: input, shape index: {}]
  %s4 = inlined_call_operand.vmem [shape: f32[2,256], index: 4, kind: input, shape index: {}]
  %s5 = inlined_call_operand.vmem [shape: bf16[2,128], index: 5, kind: output, shape index: {0}]
  %s6 = inlined_call_operand.vmem [shape: bf16[2,128], index: 6, kind: output, shape index: {1}]
  %7 = xla_tuple %s5, %s6
  %s8 = sld [smem:[#allocation0]]
  $region38: #{closed_call.109} parent=0
    _
  %s10 = ssub.s32 1, %s8
  %s11 = scalar_select 0, %s10, %s8
  // Predicated region
  $region2: #{closed_call.109} parent=0 // pred_check
    _
  $region3: #{closed_call.109} parent=0 // pred_check_branch
    %13 = sbr.rel (0) target = $region5
  $region4: #{closed_call.109} parent=0 // pred_region
    _
  $region5: #{closed_call.109} parent=0 // pred_fallthru
    _
  // Predicated region
  $region6: #{closed_call.109} parent=0 // pred_check
    _
  $region7: #{closed_call.109} parent=0 // pred_check_branch
    %15 = sbr.rel (0) target = $region9
  $region8: #{closed_call.109} parent=0 // pred_region
    _
  $region9: #{closed_call.109} parent=0 // pred_fallthru
    _
  // Predicated region
  $region10: #{closed_call.109} parent=0 // pred_check
    _
  $region11: #{closed_call.109} parent=0 // pred_check_branch
    %17 = sbr.rel (0) target = $region13
  $region12: #{closed_call.109} parent=0 // pred_region
    _
  $region13: #{closed_call.109} parent=0 // pred_fallthru
    _
  // Predicated region
  $region14: #{closed_call.109} parent=0 // pred_check
    _
  $region15: #{closed_call.109} parent=0 // pred_check_branch
    %19 = sbr.rel (0) target = $region17
  $region16: #{closed_call.109} parent=0 // pred_region
    _
  $region17: #{closed_call.109} parent=0 // pred_fallthru
    _
  // Predicated region
  $region18: #{closed_call.109} parent=0 // pred_check
    _
  $region19: #{closed_call.109} parent=0 // pred_check_branch
    %21 = sbr.rel (0) target = $region21
  $region20: #{closed_call.109} parent=0 // pred_region
    _
  $region21: #{closed_call.109} parent=0 // pred_fallthru
    _
  %v23 = vld [vmem:[%s0] sm:$0x1]
  %v24 = vunpack.c.l.bf16 %v23
  %v25 = vmul.f32 %v24, %v24
  %vm26 = vcmask 1041408
  %v27 = vsel %vm26, %v25, 0.0
  %28 = vadd.xlane.f32.xlu0 %v27
  %v29 = vpop.xlane.xlu0 %28
  %v30 = vrcp.pop 128.0
  %v31 = vmul.f32 %v29, %v30
  %v32 = vadd.f32 %v31, 1e-05
  %v33 = vrsqrt.pop %v32
  %v34 = vmul.f32 %v24, %v33
  %v35 = vld [vmem:[%s1] sm:$0x1]
  %v37 = vlaneseq
  %v38 = vshrl.u32 %v37, 7
  %v39 = vsub.s32 0, %v38
  %v40 = vrot.slane %v35, %v39
  %v42 = vmul.f32 %v34, %v40
  %v43 = vpack.c.bf16 %v42, %v42
  %v44 = vld [vmem:[%s2] sm:$0xff]
  %v45 = vld [vmem:[%s2 + $0x8] sm:$0xff]
  %v46 = vld [vmem:[%s2 + $0x10] sm:$0xff]
  %v47 = vld [vmem:[%s2 + $0x18] sm:$0xff]
  %v48 = vld [vmem:[%s2 + $0x20] sm:$0xff]
  %v49 = vld [vmem:[%s2 + $0x28] sm:$0xff]
  %v50 = vld [vmem:[%s2 + $0x30] sm:$0xff]
  %v51 = vld [vmem:[%s2 + $0x38] sm:$0xff]
  %v52 = vld [vmem:[%s2 + $0x40] sm:$0xff]
  %v53 = vld [vmem:[%s2 + $0x48] sm:$0xff]
  %v54 = vld [vmem:[%s2 + $0x50] sm:$0xff]
  %v55 = vld [vmem:[%s2 + $0x58] sm:$0xff]
  %v56 = vld [vmem:[%s2 + $0x60] sm:$0xff]
  %v57 = vld [vmem:[%s2 + $0x68] sm:$0xff]
  %v58 = vld [vmem:[%s2 + $0x70] sm:$0xff]
  %v59 = vld [vmem:[%s2 + $0x78] sm:$0xff]
  %v76 = vunpack.c.l.b16 %v44
  %v77 = vunpack.c.h.b16 %v44
  %v78 = vunpack.c.l.b16 %v45
  %v79 = vunpack.c.h.b16 %v45
  %v80 = vunpack.c.l.b16 %v46
  %v81 = vunpack.c.h.b16 %v46
  %v82 = vunpack.c.l.b16 %v47
  %v83 = vunpack.c.h.b16 %v47
  %v84 = vunpack.c.l.b16 %v48
  %v85 = vunpack.c.h.b16 %v48
  %v86 = vunpack.c.l.b16 %v49
  %v87 = vunpack.c.h.b16 %v49
  %v88 = vunpack.c.l.b16 %v50
  %v89 = vunpack.c.h.b16 %v50
  %v90 = vunpack.c.l.b16 %v51
  %v91 = vunpack.c.h.b16 %v51
  %v92 = vunpack.c.l.b16 %v52
  %v93 = vunpack.c.h.b16 %v52
  %v94 = vunpack.c.l.b16 %v53
  %v95 = vunpack.c.h.b16 %v53
  %v96 = vunpack.c.l.b16 %v54
  %v97 = vunpack.c.h.b16 %v54
  %v98 = vunpack.c.l.b16 %v55
  %v99 = vunpack.c.h.b16 %v55
  %v100 = vunpack.c.l.b16 %v56
  %v101 = vunpack.c.h.b16 %v56
  %v102 = vunpack.c.l.b16 %v57
  %v103 = vunpack.c.h.b16 %v57
  %v104 = vunpack.c.l.b16 %v58
  %v105 = vunpack.c.h.b16 %v58
  %v106 = vunpack.c.l.b16 %v59
  %v107 = vunpack.c.h.b16 %v59
  %v108 = vpack.c.b16 %v78, %v76
  %v109 = vpack.c.b16 %v79, %v77
  %v110 = vpack.c.b16 %v82, %v80
  %v111 = vpack.c.b16 %v83, %v81
  %v112 = vpack.c.b16 %v86, %v84
  %v113 = vpack.c.b16 %v87, %v85
  %v114 = vpack.c.b16 %v90, %v88
  %v115 = vpack.c.b16 %v91, %v89
  %v116 = vpack.c.b16 %v94, %v92
  %v117 = vpack.c.b16 %v95, %v93
  %v118 = vpack.c.b16 %v98, %v96
  %v119 = vpack.c.b16 %v99, %v97
  %v120 = vpack.c.b16 %v102, %v100
  %v121 = vpack.c.b16 %v103, %v101
  %v122 = vpack.c.b16 %v106, %v104
  %v123 = vpack.c.b16 %v107, %v105
  %140 = vmatprep.subr.bf16.mxu0 %v123
  %141 = vmatpush1.bf16.msra.mxu0 %v122
  %142 = vmatprep.subr.bf16.mxu0 %v121
  %143 = vmatpush1.bf16.msra.mxu0 %v120
  %144 = vmatprep.subr.bf16.mxu0 %v119
  %145 = vmatpush1.bf16.msra.mxu0 %v118
  %146 = vmatprep.subr.bf16.mxu0 %v117
  %147 = vmatpush1.bf16.msra.mxu0 %v116
  %148 = vmatprep.subr.bf16.mxu0 %v115
  %149 = vmatpush1.bf16.msra.mxu0 %v114
  %150 = vmatprep.subr.bf16.mxu0 %v113
  %151 = vmatpush1.bf16.msra.mxu0 %v112
  %152 = vmatprep.subr.bf16.mxu0 %v111
  %153 = vmatpush1.bf16.msra.mxu0 %v110
  %154 = vmatprep.subr.bf16.mxu0 %v109
  %155 = vmatpush1.bf16.msra.mxu0 %v108
  %156 = vmatprep.subr.bf16.mxu0 0
  %157 = vmatpush2.bf16.msra.mxu0 0
  %158 = vmatprep.subr.bf16.mxu0 0
  %159 = vmatpush2.bf16.msra.mxu0 0
  %160 = vmatprep.subr.bf16.mxu0 0
  %161 = vmatpush2.bf16.msra.mxu0 0
  %162 = vmatprep.subr.bf16.mxu0 0
  %163 = vmatpush2.bf16.msra.mxu0 0
  %164 = vmatprep.subr.bf16.mxu0 0
  %165 = vmatpush2.bf16.msra.mxu0 0
  %166 = vmatprep.subr.bf16.mxu0 0
  %167 = vmatpush2.bf16.msra.mxu0 0
  %168 = vmatprep.subr.bf16.mxu0 0
  %169 = vmatpush2.bf16.msra.mxu0 0
  %170 = vmatprep.subr.bf16.mxu0 0
  %171 = vmatpush2.bf16.msra.mxu0 0
  %172 = vmatprep.mubr.bf16.mxu0 0
  %173 = vmatmul.mubr.bf16.gmra.mxu0 %v43
  %v174 = vpop.f32.mrf.mxu0
  %v175 = vadd.f32 0.0, %v174
  %v176 = vpop.f32.mrf.mxu0
  %v177 = vadd.f32 0.0, %v176
  %v178 = vpop.f32.mrf.mxu0
  %v179 = vpop.f32.mrf.mxu0
  %180 = vdwg.mxu0
  %181 = vrot.lane.b32.xlu0 %v175, 16
  %v182 = vpop.permute.xlu0 %181
  %183 = vrot.lane.b32.xlu0 %v177, 16
  %v184 = vpop.permute.xlu0 %183
  %v185 = vlaneseq
  %v186 = vand.u32 %v185, 127
  %vm187 = vcmp.lt.s32.totalorder %v186, 16
  %v188 = vsel %vm187, %v182, %v184
  %v189 = vsel %vm187, %v184, %v182
  %190 = vrot.lane.b32.xlu0 %v175, 112
  %v191 = vpop.permute.xlu0 %190
  %192 = vrot.lane.b32.xlu0 %v177, 112
  %v193 = vpop.permute.xlu0 %192
  %vm194 = vcmp.lt.s32.totalorder %v186, 112
  %v195 = vsel %vm194, %v191, %v193
  %v196 = vsel %vm194, %v193, %v191
  %v197 = vadd.s32 %v186, 128
  %vm198 = vcmp.lt.s32.totalorder %v186, 0
  %v199 = vsub.s32 0, %v186
  %v200 = vsel %vm198, %v199, %v186
  %v201 = vshrl.u32 %v200, 5
  %v202 = vand.u32 %v200, 31
  %v203 = vsub.s32 0, %v202
  %v204 = vsel %vm198, %v203, %v202
  %vm205 = vcmp.lt.s32.totalorder %v197, 0
  %v206 = vsub.s32 0, %v197
  %v207 = vsel %vm205, %v206, %v197
  %v208 = vshrl.u32 %v207, 5
  %v209 = vand.u32 %v207, 31
  %v210 = vsub.s32 0, %v209
  %v211 = vsel %vm205, %v210, %v209
  %vm212 = vcmp.ne.s32.totalorder %v204, 0
  %vm213 = vcmp.ne.s32.totalorder %v211, 0
  %vm214 = vcmp.lt.s32.totalorder %v204, 0
  %vm215 = vcmp.lt.s32.totalorder %v211, 0
  %vm216 = vmand %vm214, %vm212
  %vm217 = vmand %vm215, %vm213
  %v218 = vadd.s32 %v204, 32
  %v219 = vadd.s32 %v211, 32
  %v220 = vsel %vm216, %v218, %v204
  %v221 = vsel %vm217, %v219, %v211
  %vm222 = vcmp.lt.s32.totalorder %v220, 16
  %vm223 = vcmp.lt.s32.totalorder %v221, 16
  %v224 = vsel %vm222, %v195, %v189
  %v225 = vsel %vm223, %v196, %v188
  %v226 = vld [vmem:[%s3] sm:$0xf]
  %v229 = vunpack.c.l.s4 1983009808
  %v230 = vunpack.c.0.s8 %v229
  %v231 = vlaneseq
  %v232 = vshrl.u32 %v231, 7
  %v233 = vsub.s32 %v230, %v232
  %v234 = vrot.slane %v226, %v233
  %v235 = vcombine.high %v234, %v234
  %v238 = vmul.f32 %v175, %v234
  %v239 = vmul.f32 %v177, %v235
  %v240 = vld [vmem:[%s4] sm:$0xf]
  %v243 = vunpack.c.l.s4 1983009808
  %v244 = vunpack.c.0.s8 %v243
  %v245 = vlaneseq
  %v246 = vshrl.u32 %v245, 7
  %v247 = vsub.s32 %v244, %v246
  %v248 = vrot.slane %v240, %v247
  %v249 = vcombine.high %v248, %v248
  %v252 = vmul.f32 %v224, %v248
  %v253 = vmul.f32 %v225, %v249
  %v254 = vadd.f32 %v238, %v252
  %v255 = vadd.f32 %v239, %v253
  %v256 = vpack.c.bf16 %v254, %v254
  %257 = vst [vmem:[%s5] sm:$0x1] %v256
  %v258 = vpack.c.bf16 %v255, %v255
  %259 = vst [vmem:[%s6] sm:$0x1] %v258
  // Predicated region
  $region22: #{closed_call.109} parent=0 // pred_check
    _
  $region23: #{closed_call.109} parent=0 // pred_check_branch
    %261 = sbr.rel (0) target = $region25
  $region24: #{closed_call.109} parent=0 // pred_region
    _
  $region25: #{closed_call.109} parent=0 // pred_fallthru
    _
  // Predicated region
  $region26: #{closed_call.109} parent=0 // pred_check
    _
  $region27: #{closed_call.109} parent=0 // pred_check_branch
    %263 = sbr.rel (0) target = $region29
  $region28: #{closed_call.109} parent=0 // pred_region
    _
  $region29: #{closed_call.109} parent=0 // pred_fallthru
    _
  // Predicated region
  $region30: #{closed_call.109} parent=0 // pred_check
    _
  $region31: #{closed_call.109} parent=0 // pred_check_branch
    %265 = sbr.rel (0) target = $region33
  $region32: #{closed_call.109} parent=0 // pred_region
    _
  $region33: #{closed_call.109} parent=0 // pred_fallthru
    _
  // Predicated region
  $region34: #{closed_call.109} parent=0 // pred_check
    _
  $region35: #{closed_call.109} parent=0 // pred_check_branch
    %267 = sbr.rel (0) target = $region37
  $region36: #{closed_call.109} parent=0 // pred_region
    _
  $region37: #{closed_call.109} parent=0 // pred_fallthru
    _

// kernel: closed_call.111
$region0: #{closed_call.111}
  #allocation0 [shape = 'u32[]', space=smem, size = 0x4, offset = 0x4, fixed_abs, tag = 'smem constant byte address 0x4 - core index']
  #allocation1 [shape = 'u32[144,128]{1,0:T(1,128)}', space=vmem, size = 0x12000, scoped, tag = 'internal scratch']
  %s0 = inlined_call_operand.vmem [shape: bf16[2,128], index: 0, kind: input, shape index: {}]
  %s1 = inlined_call_operand.vmem [shape: f32[1,128], index: 1, kind: input, shape index: {}]
  %s2 = inlined_call_operand.vmem [shape: bf16[128,256], index: 2, kind: input, shape index: {}]
  %s3 = inlined_call_operand.vmem [shape: bf16[128,256], index: 3, kind: input, shape index: {}]
  %s4 = inlined_call_operand.vmem [shape: bf16[256,128], index: 4, kind: input, shape index: {}]
  %s5 = inlined_call_operand.vmem [shape: bf16[2,128], index: 5, kind: output, shape index: {}]
  %s6 = sld [smem:[#allocation0]]
  $region30: #{closed_call.111} parent=0
    _
  %s8 = ssub.s32 1, %s6
  %s9 = scalar_select 0, %s8, %s6
  // Predicated region
  $region2: #{closed_call.111} parent=0 // pred_check
    _
  $region3: #{closed_call.111} parent=0 // pred_check_branch
    %11 = sbr.rel (0) target = $region5
  $region4: #{closed_call.111} parent=0 // pred_region
    _
  $region5: #{closed_call.111} parent=0 // pred_fallthru
    _
  // Predicated region
  $region6: #{closed_call.111} parent=0 // pred_check
    _
  $region7: #{closed_call.111} parent=0 // pred_check_branch
    %13 = sbr.rel (0) target = $region9
  $region8: #{closed_call.111} parent=0 // pred_region
    _
  $region9: #{closed_call.111} parent=0 // pred_fallthru
    _
  // Predicated region
  $region10: #{closed_call.111} parent=0 // pred_check
    _
  $region11: #{closed_call.111} parent=0 // pred_check_branch
    %15 = sbr.rel (0) target = $region13
  $region12: #{closed_call.111} parent=0 // pred_region
    _
  $region13: #{closed_call.111} parent=0 // pred_fallthru
    _
  // Predicated region
  $region14: #{closed_call.111} parent=0 // pred_check
    _
  $region15: #{closed_call.111} parent=0 // pred_check_branch
    %17 = sbr.rel (0) target = $region17
  $region16: #{closed_call.111} parent=0 // pred_region
    _
  $region17: #{closed_call.111} parent=0 // pred_fallthru
    _
  // Predicated region
  $region18: #{closed_call.111} parent=0 // pred_check
    _
  $region19: #{closed_call.111} parent=0 // pred_check_branch
    %19 = sbr.rel (0) target = $region21
  $region20: #{closed_call.111} parent=0 // pred_region
    _
  $region21: #{closed_call.111} parent=0 // pred_fallthru
    _
  %v21 = vld [vmem:[%s0] sm:$0x1]
  %v22 = vunpack.c.l.bf16 %v21
  %v23 = vmul.f32 %v22, %v22
  %vm24 = vcmask 1041408
  %v25 = vsel %vm24, %v23, 0.0
  %26 = vadd.xlane.f32.xlu0 %v25
  %v27 = vpop.xlane.xlu0 %26
  %v28 = vrcp.pop 128.0
  %v29 = vmul.f32 %v27, %v28
  %v30 = vadd.f32 %v29, 1e-05
  %v31 = vrsqrt.pop %v30
  %v32 = vmul.f32 %v22, %v31
  %v33 = vld [vmem:[%s1] sm:$0x1]
  %v35 = vlaneseq
  %v36 = vshrl.u32 %v35, 7
  %v37 = vsub.s32 0, %v36
  %v38 = vrot.slane %v33, %v37
  %v40 = vmul.f32 %v32, %v38
  %v41 = vpack.c.bf16 %v40, %v40
  %v42 = vld [vmem:[%s2] sm:$0xff]
  %v43 = vld [vmem:[%s2 + $0x8] sm:$0xff]
  %v44 = vld [vmem:[%s2 + $0x10] sm:$0xff]
  %v45 = vld [vmem:[%s2 + $0x18] sm:$0xff]
  %v46 = vld [vmem:[%s2 + $0x20] sm:$0xff]
  %v47 = vld [vmem:[%s2 + $0x28] sm:$0xff]
  %v48 = vld [vmem:[%s2 + $0x30] sm:$0xff]
  %v49 = vld [vmem:[%s2 + $0x38] sm:$0xff]
  %v50 = vld [vmem:[%s2 + $0x40] sm:$0xff]
  %v51 = vld [vmem:[%s2 + $0x48] sm:$0xff]
  %v52 = vld [vmem:[%s2 + $0x50] sm:$0xff]
  %v53 = vld [vmem:[%s2 + $0x58] sm:$0xff]
  %v54 = vld [vmem:[%s2 + $0x60] sm:$0xff]
  %v55 = vld [vmem:[%s2 + $0x68] sm:$0xff]
  %v56 = vld [vmem:[%s2 + $0x70] sm:$0xff]
  %v57 = vld [vmem:[%s2 + $0x78] sm:$0xff]
  %v74 = vunpack.c.l.b16 %v42
  %v75 = vunpack.c.h.b16 %v42
  %v76 = vunpack.c.l.b16 %v43
  %v77 = vunpack.c.h.b16 %v43
  %v78 = vunpack.c.l.b16 %v44
  %v79 = vunpack.c.h.b16 %v44
  %v80 = vunpack.c.l.b16 %v45
  %v81 = vunpack.c.h.b16 %v45
  %v82 = vunpack.c.l.b16 %v46
  %v83 = vunpack.c.h.b16 %v46
  %v84 = vunpack.c.l.b16 %v47
  %v85 = vunpack.c.h.b16 %v47
  %v86 = vunpack.c.l.b16 %v48
  %v87 = vunpack.c.h.b16 %v48
  %v88 = vunpack.c.l.b16 %v49
  %v89 = vunpack.c.h.b16 %v49
  %v90 = vunpack.c.l.b16 %v50
  %v91 = vunpack.c.h.b16 %v50
  %v92 = vunpack.c.l.b16 %v51
  %v93 = vunpack.c.h.b16 %v51
  %v94 = vunpack.c.l.b16 %v52
  %v95 = vunpack.c.h.b16 %v52
  %v96 = vunpack.c.l.b16 %v53
  %v97 = vunpack.c.h.b16 %v53
  %v98 = vunpack.c.l.b16 %v54
  %v99 = vunpack.c.h.b16 %v54
  %v100 = vunpack.c.l.b16 %v55
  %v101 = vunpack.c.h.b16 %v55
  %v102 = vunpack.c.l.b16 %v56
  %v103 = vunpack.c.h.b16 %v56
  %v104 = vunpack.c.l.b16 %v57
  %v105 = vunpack.c.h.b16 %v57
  %v106 = vpack.c.b16 %v76, %v74
  %v107 = vpack.c.b16 %v77, %v75
  %v108 = vpack.c.b16 %v80, %v78
  %v109 = vpack.c.b16 %v81, %v79
  %v110 = vpack.c.b16 %v84, %v82
  %v111 = vpack.c.b16 %v85, %v83
  %v112 = vpack.c.b16 %v88, %v86
  %v113 = vpack.c.b16 %v89, %v87
  %v114 = vpack.c.b16 %v92, %v90
  %v115 = vpack.c.b16 %v93, %v91
  %v116 = vpack.c.b16 %v96, %v94
  %v117 = vpack.c.b16 %v97, %v95
  %v118 = vpack.c.b16 %v100, %v98
  %v119 = vpack.c.b16 %v101, %v99
  %v120 = vpack.c.b16 %v104, %v102
  %v121 = vpack.c.b16 %v105, %v103
  %138 = vmatprep.subr.bf16.mxu0 %v121
  %139 = vmatpush1.bf16.msra.mxu0 %v120
  %140 = vmatprep.subr.bf16.mxu0 %v119
  %141 = vmatpush1.bf16.msra.mxu0 %v118
  %142 = vmatprep.subr.bf16.mxu0 %v117
  %143 = vmatpush1.bf16.msra.mxu0 %v116
  %144 = vmatprep.subr.bf16.mxu0 %v115
  %145 = vmatpush1.bf16.msra.mxu0 %v114
  %146 = vmatprep.subr.bf16.mxu0 %v113
  %147 = vmatpush1.bf16.msra.mxu0 %v112
  %148 = vmatprep.subr.bf16.mxu0 %v111
  %149 = vmatpush1.bf16.msra.mxu0 %v110
  %150 = vmatprep.subr.bf16.mxu0 %v109
  %151 = vmatpush1.bf16.msra.mxu0 %v108
  %152 = vmatprep.subr.bf16.mxu0 %v107
  %153 = vmatpush1.bf16.msra.mxu0 %v106
  %154 = vmatprep.subr.bf16.mxu0 0
  %155 = vmatpush2.bf16.msra.mxu0 0
  %156 = vmatprep.subr.bf16.mxu0 0
  %157 = vmatpush2.bf16.msra.mxu0 0
  %158 = vmatprep.subr.bf16.mxu0 0
  %159 = vmatpush2.bf16.msra.mxu0 0
  %160 = vmatprep.subr.bf16.mxu0 0
  %161 = vmatpush2.bf16.msra.mxu0 0
  %162 = vmatprep.subr.bf16.mxu0 0
  %163 = vmatpush2.bf16.msra.mxu0 0
  %164 = vmatprep.subr.bf16.mxu0 0
  %165 = vmatpush2.bf16.msra.mxu0 0
  %166 = vmatprep.subr.bf16.mxu0 0
  %167 = vmatpush2.bf16.msra.mxu0 0
  %168 = vmatprep.subr.bf16.mxu0 0
  %169 = vmatpush2.bf16.msra.mxu0 0
  %170 = vmatprep.mubr.bf16.mxu0 0
  %171 = vmatmul.mubr.bf16.gmra.mxu0 %v41
  %v172 = vpop.f32.mrf.mxu0
  %v173 = vadd.f32 0.0, %v172
  %v174 = vpop.f32.mrf.mxu0
  %v175 = vadd.f32 0.0, %v174
  %v176 = vpop.f32.mrf.mxu0
  %v177 = vpop.f32.mrf.mxu0
  %178 = vdwg.mxu0
  %v179 = vld [vmem:[%s3] sm:$0xff]
  %v180 = vld [vmem:[%s3 + $0x8] sm:$0xff]
  %v181 = vld [vmem:[%s3 + $0x10] sm:$0xff]
  %v182 = vld [vmem:[%s3 + $0x18] sm:$0xff]
  %v183 = vld [vmem:[%s3 + $0x20] sm:$0xff]
  %v184 = vld [vmem:[%s3 + $0x28] sm:$0xff]
  %v185 = vld [vmem:[%s3 + $0x30] sm:$0xff]
  %v186 = vld [vmem:[%s3 + $0x38] sm:$0xff]
  %v187 = vld [vmem:[%s3 + $0x40] sm:$0xff]
  %v188 = vld [vmem:[%s3 + $0x48] sm:$0xff]
  %v189 = vld [vmem:[%s3 + $0x50] sm:$0xff]
  %v190 = vld [vmem:[%s3 + $0x58] sm:$0xff]
  %v191 = vld [vmem:[%s3 + $0x60] sm:$0xff]
  %v192 = vld [vmem:[%s3 + $0x68] sm:$0xff]
  %v193 = vld [vmem:[%s3 + $0x70] sm:$0xff]
  %v194 = vld [vmem:[%s3 + $0x78] sm:$0xff]
  %v211 = vunpack.c.l.b16 %v179
  %v212 = vunpack.c.h.b16 %v179
  %v213 = vunpack.c.l.b16 %v180
  %v214 = vunpack.c.h.b16 %v180
  %v215 = vunpack.c.l.b16 %v181
  %v216 = vunpack.c.h.b16 %v181
  %v217 = vunpack.c.l.b16 %v182
  %v218 = vunpack.c.h.b16 %v182
  %v219 = vunpack.c.l.b16 %v183
  %v220 = vunpack.c.h.b16 %v183
  %v221 = vunpack.c.l.b16 %v184
  %v222 = vunpack.c.h.b16 %v184
  %v223 = vunpack.c.l.b16 %v185
  %v224 = vunpack.c.h.b16 %v185
  %v225 = vunpack.c.l.b16 %v186
  %v226 = vunpack.c.h.b16 %v186
  %v227 = vunpack.c.l.b16 %v187
  %v228 = vunpack.c.h.b16 %v187
  %v229 = vunpack.c.l.b16 %v188
  %v230 = vunpack.c.h.b16 %v188
  %v231 = vunpack.c.l.b16 %v189
  %v232 = vunpack.c.h.b16 %v189
  %v233 = vunpack.c.l.b16 %v190
  %v234 = vunpack.c.h.b16 %v190
  %v235 = vunpack.c.l.b16 %v191
  %v236 = vunpack.c.h.b16 %v191
  %v237 = vunpack.c.l.b16 %v192
  %v238 = vunpack.c.h.b16 %v192
  %v239 = vunpack.c.l.b16 %v193
  %v240 = vunpack.c.h.b16 %v193
  %v241 = vunpack.c.l.b16 %v194
  %v242 = vunpack.c.h.b16 %v194
  %v243 = vpack.c.b16 %v213, %v211
  %v244 = vpack.c.b16 %v214, %v212
  %v245 = vpack.c.b16 %v217, %v215
  %v246 = vpack.c.b16 %v218, %v216
  %v247 = vpack.c.b16 %v221, %v219
  %v248 = vpack.c.b16 %v222, %v220
  %v249 = vpack.c.b16 %v225, %v223
  %v250 = vpack.c.b16 %v226, %v224
  %v251 = vpack.c.b16 %v229, %v227
  %v252 = vpack.c.b16 %v230, %v228
  %v253 = vpack.c.b16 %v233, %v231
  %v254 = vpack.c.b16 %v234, %v232
  %v255 = vpack.c.b16 %v237, %v235
  %v256 = vpack.c.b16 %v238, %v236
  %v257 = vpack.c.b16 %v241, %v239
  %v258 = vpack.c.b16 %v242, %v240
  %275 = vmatprep.subr.bf16.mxu0 %v258
  %276 = vmatpush1.bf16.msra.mxu0 %v257
  %277 = vmatprep.subr.bf16.mxu0 %v256
  %278 = vmatpush1.bf16.msra.mxu0 %v255
  %279 = vmatprep.subr.bf16.mxu0 %v254
  %280 = vmatpush1.bf16.msra.mxu0 %v253
  %281 = vmatprep.subr.bf16.mxu0 %v252
  %282 = vmatpush1.bf16.msra.mxu0 %v251
  %283 = vmatprep.subr.bf16.mxu0 %v250
  %284 = vmatpush1.bf16.msra.mxu0 %v249
  %285 = vmatprep.subr.bf16.mxu0 %v248
  %286 = vmatpush1.bf16.msra.mxu0 %v247
  %287 = vmatprep.subr.bf16.mxu0 %v246
  %288 = vmatpush1.bf16.msra.mxu0 %v245
  %289 = vmatprep.subr.bf16.mxu0 %v244
  %290 = vmatpush1.bf16.msra.mxu0 %v243
  %291 = vmatprep.subr.bf16.mxu0 0
  %292 = vmatpush2.bf16.msra.mxu0 0
  %293 = vmatprep.subr.bf16.mxu0 0
  %294 = vmatpush2.bf16.msra.mxu0 0
  %295 = vmatprep.subr.bf16.mxu0 0
  %296 = vmatpush2.bf16.msra.mxu0 0
  %297 = vmatprep.subr.bf16.mxu0 0
  %298 = vmatpush2.bf16.msra.mxu0 0
  %299 = vmatprep.subr.bf16.mxu0 0
  %300 = vmatpush2.bf16.msra.mxu0 0
  %301 = vmatprep.subr.bf16.mxu0 0
  %302 = vmatpush2.bf16.msra.mxu0 0
  %303 = vmatprep.subr.bf16.mxu0 0
  %304 = vmatpush2.bf16.msra.mxu0 0
  %305 = vmatprep.subr.bf16.mxu0 0
  %306 = vmatpush2.bf16.msra.mxu0 0
  %307 = vmatprep.mubr.bf16.mxu0 0
  %308 = vmatmul.mubr.bf16.gmra.mxu0 %v41
  %v309 = vpop.f32.mrf.mxu0
  %v310 = vadd.f32 0.0, %v309
  %v311 = vpop.f32.mrf.mxu0
  %v312 = vadd.f32 0.0, %v311
  %v313 = vpop.f32.mrf.mxu0
  %v314 = vpop.f32.mrf.mxu0
  %315 = vdwg.mxu0
  %v316 = vxor.u32 %v173, 2147483648
  %v317 = vxor.u32 %v175, 2147483648
  %v318 = vmul.f32 %v316, 1.442695
  %v319 = vpow.pop %v318
  %v320 = vmul.f32 %v317, 1.442695
  %v321 = vpow.pop %v320
  %v322 = vadd.f32 %v319, 1.0
  %v323 = vadd.f32 %v321, 1.0
  %v324 = vrcp.pop %v322
  %v325 = vmul.f32 1.0, %v324
  %v326 = vrcp.pop %v323
  %v327 = vmul.f32 1.0, %v326
  %v328 = vmul.f32 %v173, %v325
  %v329 = vmul.f32 %v175, %v327
  %v330 = vmul.f32 %v328, %v310
  %v331 = vmul.f32 %v329, %v312
  %v332 = vpack.c.bf16 %v330, %v330
  %v333 = vpack.c.bf16 %v331, %v331
  %v334 = vld [vmem:[%s4] sm:$0xf]
  %v335 = vld [vmem:[%s4 + $0x4] sm:$0xf]
  %v336 = vld [vmem:[%s4 + $0x8] sm:$0xf]
  %v337 = vld [vmem:[%s4 + $0xc] sm:$0xf]
  %v338 = vld [vmem:[%s4 + $0x10] sm:$0xf]
  %v339 = vld [vmem:[%s4 + $0x14] sm:$0xf]
  %v340 = vld [vmem:[%s4 + $0x18] sm:$0xf]
  %v341 = vld [vmem:[%s4 + $0x1c] sm:$0xf]
  %v342 = vld [vmem:[%s4 + $0x20] sm:$0xf]
  %v343 = vld [vmem:[%s4 + $0x24] sm:$0xf]
  %v344 = vld [vmem:[%s4 + $0x28] sm:$0xf]
  %v345 = vld [vmem:[%s4 + $0x2c] sm:$0xf]
  %v346 = vld [vmem:[%s4 + $0x30] sm:$0xf]
  %v347 = vld [vmem:[%s4 + $0x34] sm:$0xf]
  %v348 = vld [vmem:[%s4 + $0x38] sm:$0xf]
  %v349 = vld [vmem:[%s4 + $0x3c] sm:$0xf]
  %v350 = vld [vmem:[%s4 + $0x40] sm:$0xf]
  %v351 = vld [vmem:[%s4 + $0x44] sm:$0xf]
  %v352 = vld [vmem:[%s4 + $0x48] sm:$0xf]
  %v353 = vld [vmem:[%s4 + $0x4c] sm:$0xf]
  %v354 = vld [vmem:[%s4 + $0x50] sm:$0xf]
  %v355 = vld [vmem:[%s4 + $0x54] sm:$0xf]
  %v356 = vld [vmem:[%s4 + $0x58] sm:$0xf]
  %v357 = vld [vmem:[%s4 + $0x5c] sm:$0xf]
  %v358 = vld [vmem:[%s4 + $0x60] sm:$0xf]
  %v359 = vld [vmem:[%s4 + $0x64] sm:$0xf]
  %v360 = vld [vmem:[%s4 + $0x68] sm:$0xf]
  %v361 = vld [vmem:[%s4 + $0x6c] sm:$0xf]
  %v362 = vld [vmem:[%s4 + $0x70] sm:$0xf]
  %v363 = vld [vmem:[%s4 + $0x74] sm:$0xf]
  %v364 = vld [vmem:[%s4 + $0x78] sm:$0xf]
  %v365 = vld [vmem:[%s4 + $0x7c] sm:$0xf]
  %v398 = vunpack.c.l.b16 %v334
  %v399 = vunpack.c.l.b16 %v335
  %v400 = vunpack.c.l.b16 %v336
  %v401 = vunpack.c.l.b16 %v337
  %v402 = vunpack.c.l.b16 %v338
  %v403 = vunpack.c.l.b16 %v339
  %v404 = vunpack.c.l.b16 %v340
  %v405 = vunpack.c.l.b16 %v341
  %v406 = vunpack.c.l.b16 %v342
  %v407 = vunpack.c.l.b16 %v343
  %v408 = vunpack.c.l.b16 %v344
  %v409 = vunpack.c.l.b16 %v345
  %v410 = vunpack.c.l.b16 %v346
  %v411 = vunpack.c.l.b16 %v347
  %v412 = vunpack.c.l.b16 %v348
  %v413 = vunpack.c.l.b16 %v349
  %v414 = vunpack.c.l.b16 %v350
  %v415 = vunpack.c.l.b16 %v351
  %v416 = vunpack.c.l.b16 %v352
  %v417 = vunpack.c.l.b16 %v353
  %v418 = vunpack.c.l.b16 %v354
  %v419 = vunpack.c.l.b16 %v355
  %v420 = vunpack.c.l.b16 %v356
  %v421 = vunpack.c.l.b16 %v357
  %v422 = vunpack.c.l.b16 %v358
  %v423 = vunpack.c.l.b16 %v359
  %v424 = vunpack.c.l.b16 %v360
  %v425 = vunpack.c.l.b16 %v361
  %v426 = vunpack.c.l.b16 %v362
  %v427 = vunpack.c.l.b16 %v363
  %v428 = vunpack.c.l.b16 %v364
  %v429 = vunpack.c.l.b16 %v365
  %v430 = vpack.c.b16 %v399, %v398
  %v431 = vpack.c.b16 %v401, %v400
  %v432 = vpack.c.b16 %v403, %v402
  %v433 = vpack.c.b16 %v405, %v404
  %v434 = vpack.c.b16 %v407, %v406
  %v435 = vpack.c.b16 %v409, %v408
  %v436 = vpack.c.b16 %v411, %v410
  %v437 = vpack.c.b16 %v413, %v412
  %v438 = vpack.c.b16 %v415, %v414
  %v439 = vpack.c.b16 %v417, %v416
  %v440 = vpack.c.b16 %v419, %v418
  %v441 = vpack.c.b16 %v421, %v420
  %v442 = vpack.c.b16 %v423, %v422
  %v443 = vpack.c.b16 %v425, %v424
  %v444 = vpack.c.b16 %v427, %v426
  %v445 = vpack.c.b16 %v429, %v428
  %462 = vmatprep.subr.bf16.mxu0 0
  %463 = vmatpush1.bf16.msra.mxu0 %v437
  %464 = vmatprep.subr.bf16.mxu0 0
  %465 = vmatpush1.bf16.msra.mxu0 %v436
  %466 = vmatprep.subr.bf16.mxu0 0
  %467 = vmatpush1.bf16.msra.mxu0 %v435
  %468 = vmatprep.subr.bf16.mxu0 0
  %469 = vmatpush1.bf16.msra.mxu0 %v434
  %470 = vmatprep.subr.bf16.mxu0 0
  %471 = vmatpush1.bf16.msra.mxu0 %v433
  %472 = vmatprep.subr.bf16.mxu0 0
  %473 = vmatpush1.bf16.msra.mxu0 %v432
  %474 = vmatprep.subr.bf16.mxu0 0
  %475 = vmatpush1.bf16.msra.mxu0 %v431
  %476 = vmatprep.subr.bf16.mxu0 0
  %477 = vmatpush1.bf16.msra.mxu0 %v430
  %478 = vmatprep.subr.bf16.mxu0 0
  %479 = vmatpush2.bf16.msra.mxu0 %v445
  %480 = vmatprep.subr.bf16.mxu0 0
  %481 = vmatpush2.bf16.msra.mxu0 %v444
  %482 = vmatprep.subr.bf16.mxu0 0
  %483 = vmatpush2.bf16.msra.mxu0 %v443
  %484 = vmatprep.subr.bf16.mxu0 0
  %485 = vmatpush2.bf16.msra.mxu0 %v442
  %486 = vmatprep.subr.bf16.mxu0 0
  %487 = vmatpush2.bf16.msra.mxu0 %v441
  %488 = vmatprep.subr.bf16.mxu0 0
  %489 = vmatpush2.bf16.msra.mxu0 %v440
  %490 = vmatprep.subr.bf16.mxu0 0
  %491 = vmatpush2.bf16.msra.mxu0 %v439
  %492 = vmatprep.subr.bf16.mxu0 0
  %493 = vmatpush2.bf16.msra.mxu0 %v438
  %494 = vmatprep.mubr.bf16.mxu0 %v333
  %495 = vmatmul.mubr.bf16.gmra.mxu0 %v332
  %v496 = vpop.f32.mrf.mxu0
  %v497 = vadd.f32 0.0, %v496
  %v498 = vpop.f32.mrf.mxu0
  %v499 = vpop.f32.mrf.mxu0
  %v500 = vpop.f32.mrf.mxu0
  %501 = vdwg.mxu0
  %v502 = vadd.f32 %v22, %v497
  %v503 = vpack.c.bf16 %v502, %v502
  %504 = vst [vmem:[%s5] sm:$0x1] %v503
  // Predicated region
  $region22: #{closed_call.111} parent=0 // pred_check
    _
  $region23: #{closed_call.111} parent=0 // pred_check_branch
    %506 = sbr.rel (0) target = $region25
  $region24: #{closed_call.111} parent=0 // pred_region
    _
  $region25: #{closed_call.111} parent=0 // pred_fallthru
    _
  // Predicated region
  $region26: #{closed_call.111} parent=0 // pred_check
    _
  $region27: #{closed_call.111} parent=0 // pred_check_branch
    %508 = sbr.rel (0) target = $region29
  $region28: #{closed_call.111} parent=0 // pred_region
    _
  $region29: #{closed_call.111} parent=0 // pred_fallthru
    _

// kernel: closed_call.110
$region0: #{closed_call.110}
  #allocation0 [shape = 'u32[]', space=smem, size = 0x4, offset = 0x4, fixed_abs, tag = 'smem constant byte address 0x4 - core index']
  #allocation1 [shape = 'u32[144,128]{1,0:T(1,128)}', space=vmem, size = 0x12000, scoped, tag = 'internal scratch']
  #allocation2 [shape = 's32[1]{0}', space=sflag, size = 0x4, scoped, tag = 'scoped memory for closed_call.110']
  #allocation3 [shape = 's32[1]{0:T(128)S(6)}', space=smem, size = 0x200, scoped, tag = 'prefetched SMEM operand 0']
  %s0 = inlined_call_operand.<no memory space> [shape: s32[1], index: 0, kind: input, shape index: {}]
  %s1 = inlined_call_operand.vmem [shape: bf16[2,1,128], index: 1, kind: input, shape index: {}]
  %s2 = inlined_call_operand.vmem [shape: bf16[2,16,128], index: 2, kind: input, shape index: {}]
  %s3 = inlined_call_operand.vmem [shape: bf16[128,128], index: 3, kind: input, shape index: {}]
  %s4 = inlined_call_operand.vmem [shape: bf16[2,1,128], index: 4, kind: input, shape index: {}]
  %s5 = inlined_call_operand.vmem [shape: bf16[2,1,128], index: 5, kind: output, shape index: {}]
  %s6 = sld [smem:[#allocation0]]
  $region49: #{closed_call.110} parent=0
    _
  %s8 = ssub.s32 1, %s6
  %s9 = scalar_select 0, %s8, %s6
  %10 = sst [smem:[#allocation3]] %s0
  loop: start=0, step=1, limit=4
  $region2: #{closed_call.110} parent=0 // loop_pre_header
    _
  $region3: #{closed_call.110} parent=0 // loop_header
    %s12 = sphi 0, %s16
    %p13 = scmp.ge.s32.totalorder %s12, 4
    %s22 = sphi 0, %s24
    %s25 = sphi 0, %s22
    %s26 = sphi 0, %s25
    %s42 = sphi 0, %s26
    %s48 = sphi 0, %s50
    %s51 = sphi 0, %s48
    %s52 = sphi 0, %s51
    %s68 = sphi 0, %s52
    %s72 = sphi 0, %s72
    %s74 = sphi 0, %s72
    %s75 = sphi 0, %s74
    %s89 = sphi 0, %s75
    %s95 = sphi 0, %s97
    %s98 = sphi 0, %s95
    %s99 = sphi 0, %s98
    %s115 = sphi 0, %s99
    %s121 = sphi 0, %s123
    %s124 = sphi 0, %s121
    %s125 = sphi 0, %s124
    %s141 = sphi 0, %s125
  $region4: #{closed_call.110} parent=0 // loop_header_branch
    %15 = sbr.rel (%p13) target = $region8
  $region5: #{closed_call.110} parent=0 // loop_body
    %s17 = ssub.s32 %s12, 1
    %s18 = ssub.s32 %s12, 2
    %s19 = sadd.s32 %s12, 1
    %s20 = ssub.s32 %s12, %s19
    %p21 = scmp.eq.s32.totalorder %s20, 0
    %s23 = sadd.s32 %s22, 1
    %s24 = scalar_select %p21, %s22, %s23
    %p27 = pneg %p21
    %p28 = scmp.eq.s32.totalorder %s12, 1
    %p29 = por %p27, %p28
    %p30 = scmp.ne.s32.totalorder %s22, %s25
    %p31 = scmp.eq.s32.totalorder %s12, 0
    %p32 = por %p30, %p31
    %p33 = scmp.ne.s32.totalorder %s22, %s25
    %p34 = scmp.eq.s32.totalorder %s17, 1
    %p35 = por %p33, %p34
    %p36 = scmp.ne.s32.totalorder %s25, %s26
    %p37 = scmp.eq.s32.totalorder %s17, 0
    %p38 = por %p36, %p37
    %p39 = scmp.ne.s32.totalorder %s25, %s26
    %p40 = scmp.eq.s32.totalorder %s18, 1
    %p41 = por %p39, %p40
    %p43 = scmp.ne.s32.totalorder %s26, %s42
    %p44 = scmp.eq.s32.totalorder %s18, 0
    %p45 = por %p43, %p44
    %s46 = ssub.s32 %s12, %s19
    %p47 = scmp.eq.s32.totalorder %s46, 0
    %s49 = sadd.s32 %s48, 1
    %s50 = scalar_select %p47, %s48, %s49
    %p53 = pneg %p47
    %p54 = scmp.eq.s32.totalorder %s12, 1
    %p55 = por %p53, %p54
    %p56 = scmp.ne.s32.totalorder %s48, %s51
    %p57 = scmp.eq.s32.totalorder %s12, 0
    %p58 = por %p56, %p57
    %p59 = scmp.ne.s32.totalorder %s48, %s51
    %p60 = scmp.eq.s32.totalorder %s17, 1
    %p61 = por %p59, %p60
    %p62 = scmp.ne.s32.totalorder %s51, %s52
    %p63 = scmp.eq.s32.totalorder %s17, 0
    %p64 = por %p62, %p63
    %p65 = scmp.ne.s32.totalorder %s51, %s52
    %p66 = scmp.eq.s32.totalorder %s18, 1
    %p67 = por %p65, %p66
    %p69 = scmp.ne.s32.totalorder %s52, %s68
    %p70 = scmp.eq.s32.totalorder %s18, 0
    %p71 = por %p69, %p70
    %s73 = sadd.s32 %s72, 1
    %p76 = scmp.eq.s32.totalorder %s12, 1
    %p77 = scmp.ne.s32.totalorder %s72, %s74
    %p78 = scmp.eq.s32.totalorder %s12, 0
    %p79 = por %p77, %p78
    %p80 = scmp.ne.s32.totalorder %s72, %s74
    %p81 = scmp.eq.s32.totalorder %s17, 1
    %p82 = por %p80, %p81
    %p83 = scmp.ne.s32.totalorder %s74, %s75
    %p84 = scmp.eq.s32.totalorder %s17, 0
    %p85 = por %p83, %p84
    %p86 = scmp.ne.s32.totalorder %s74, %s75
    %p87 = scmp.eq.s32.totalorder %s18, 1
    %p88 = por %p86, %p87
    %p90 = scmp.ne.s32.totalorder %s75, %s89
    %p91 = scmp.eq.s32.totalorder %s18, 0
    %p92 = por %p90, %p91
    %s93 = ssub.s32 %s12, %s19
    %p94 = scmp.eq.s32.totalorder %s93, 0
    %s96 = sadd.s32 %s95, 1
    %s97 = scalar_select %p94, %s95, %s96
    %p100 = pneg %p94
    %p101 = scmp.eq.s32.totalorder %s12, 1
    %p102 = por %p100, %p101
    %p103 = scmp.ne.s32.totalorder %s95, %s98
    %p104 = scmp.eq.s32.totalorder %s12, 0
    %p105 = por %p103, %p104
    %p106 = scmp.ne.s32.totalorder %s95, %s98
    %p107 = scmp.eq.s32.totalorder %s17, 1
    %p108 = por %p106, %p107
    %p109 = scmp.ne.s32.totalorder %s98, %s99
    %p110 = scmp.eq.s32.totalorder %s17, 0
    %p111 = por %p109, %p110
    %p112 = scmp.ne.s32.totalorder %s98, %s99
    %p113 = scmp.eq.s32.totalorder %s18, 1
    %p114 = por %p112, %p113
    %p116 = scmp.ne.s32.totalorder %s99, %s115
    %p117 = scmp.eq.s32.totalorder %s18, 0
    %p118 = por %p116, %p117
    %s119 = ssub.s32 %s12, %s19
    %p120 = scmp.eq.s32.totalorder %s119, 0
    %s122 = sadd.s32 %s121, 1
    %s123 = scalar_select %p120, %s121, %s122
    %p126 = pneg %p120
    %p127 = scmp.eq.s32.totalorder %s12, 1
    %p128 = por %p126, %p127
    %p129 = scmp.ne.s32.totalorder %s121, %s124
    %p130 = scmp.eq.s32.totalorder %s12, 0
    %p131 = por %p129, %p130
    %p132 = scmp.ne.s32.totalorder %s121, %s124
    %p133 = scmp.eq.s32.totalorder %s17, 1
    %p134 = por %p132, %p133
    %p135 = scmp.ne.s32.totalorder %s124, %s125
    %p136 = scmp.eq.s32.totalorder %s17, 0
    %p137 = por %p135, %p136
    %p138 = scmp.ne.s32.totalorder %s124, %s125
    %p139 = scmp.eq.s32.totalorder %s18, 1
    %p140 = por %p138, %p139
    %p142 = scmp.ne.s32.totalorder %s125, %s141
    %p143 = scmp.eq.s32.totalorder %s18, 0
    %p144 = por %p142, %p143
    %p145 = scmp.le.s32.totalorder 1, %s12
    %p146 = scmp.lt.s32.totalorder %s12, 3
    %p147 = pnand %p145, %p146
    %p148 = pneg %p147
    // Predicated region
    $region9: #{closed_call.110} parent=5 // pred_check
      _
    $region10: #{closed_call.110} parent=5 // pred_check_branch
      %150 = sbr.rel (%p147) target = $region12
    $region11: #{closed_call.110} parent=5 // pred_region
      %s151 = ssub.s32 %s12, 1
      // Predicated region
      $region13: #{closed_call.110} parent=11 // pred_check
        %p152 = pneg %p85
      $region14: #{closed_call.110} parent=11 // pred_check_branch
        %154 = sbr.rel (%p152) target = $region16
      $region15: #{closed_call.110} parent=11 // pred_region
        _
      $region16: #{closed_call.110} parent=11 // pred_fallthru
        _
    $region12: #{closed_call.110} parent=5 // pred_fallthru
      _
    %p155 = scmp.lt.s32.totalorder %s12, 2
    // Predicated region
    $region17: #{closed_call.110} parent=5 // pred_check
      %p156 = pneg %p155
    $region18: #{closed_call.110} parent=5 // pred_check_branch
      %158 = sbr.rel (%p156) target = $region20
    $region19: #{closed_call.110} parent=5 // pred_region
      // Predicated region
      $region21: #{closed_call.110} parent=19 // pred_check
        %p159 = pneg %p32
      $region22: #{closed_call.110} parent=19 // pred_check_branch
        %161 = sbr.rel (%p159) target = $region24
      $region23: #{closed_call.110} parent=19 // pred_region
        %p162 = scmp.lt.s32.totalorder %s12, 1
        %s163 = scalar_select %p162, %s12, 1
        %s164 = scalar_lea.vmem %s1, %s163
      $region24: #{closed_call.110} parent=19 // pred_fallthru
        _
      // Predicated region
      $region25: #{closed_call.110} parent=19 // pred_check
        %p165 = pneg %p58
      $region26: #{closed_call.110} parent=19 // pred_check_branch
        %167 = sbr.rel (%p165) target = $region28
      $region27: #{closed_call.110} parent=19 // pred_region
        %p168 = scmp.lt.s32.totalorder %s12, 1
        %s169 = scalar_select %p168, %s12, 1
        %s170 = smul.addr %s169, 2
        %s171 = smul.addr %s170, 4
        %s172 = scalar_lea.vmem %s2, %s171
      $region28: #{closed_call.110} parent=19 // pred_fallthru
        _
      // Predicated region
      $region29: #{closed_call.110} parent=19 // pred_check
        %p173 = pneg %p105
      $region30: #{closed_call.110} parent=19 // pred_check_branch
        %175 = sbr.rel (%p173) target = $region32
      $region31: #{closed_call.110} parent=19 // pred_region
        %p176 = scmp.lt.s32.totalorder %s12, 1
        %s177 = scalar_select %p176, %s12, 1
        %s178 = scalar_lea.vmem %s4, %s177
      $region32: #{closed_call.110} parent=19 // pred_fallthru
        _
    $region20: #{closed_call.110} parent=5 // pred_fallthru
      _
    %p179 = scmp.le.s32.totalorder 1, %s12
    %p180 = scmp.lt.s32.totalorder %s12, 3
    %p181 = pnand %p179, %p180
    %p182 = pneg %p181
    // Predicated region
    $region33: #{closed_call.110} parent=5 // pred_check
      _
    $region34: #{closed_call.110} parent=5 // pred_check_branch
      %184 = sbr.rel (%p181) target = $region36
    $region35: #{closed_call.110} parent=5 // pred_region
      %s185 = ssub.s32 %s12, 1
      %p186 = scmp.lt.s32.totalorder %s17, 1
      %s187 = scalar_select %p186, %s17, 1
      %s188 = scalar_lea.vmem %s1, %s187
      %p189 = pneg %p38
      %p190 = pneg %p35
      %p191 = scmp.lt.s32.totalorder %s17, 1
      %s192 = scalar_select %p191, %s17, 1
      %s193 = smul.addr %s192, 2
      %s194 = smul.addr %s193, 4
      %s195 = scalar_lea.vmem %s2, %s194
      %p196 = pneg %p64
      %p197 = pneg %p61
      %p198 = pneg %p85
      %p199 = pneg %p82
      %p200 = scmp.lt.s32.totalorder %s17, 1
      %s201 = scalar_select %p200, %s17, 1
      %s202 = scalar_lea.vmem %s4, %s201
      %p203 = pneg %p111
      %p204 = pneg %p108
      %p205 = pneg %p137
      %p206 = pneg %p134
      %p207 = scmp.lt.s32.totalorder %s17, 1
      %s208 = scalar_select %p207, %s17, 1
      %s209 = scalar_lea.vmem %s5, %s208
      %p210 = scmp.lt.s32.totalorder %s17, 1
      %s211 = scalar_select %p210, %s17, 1
      %s212 = scalar_lea.vmem %s1, %s211
      %p213 = scmp.lt.s32.totalorder %s17, 1
      %s214 = scalar_select %p213, %s17, 1
      %s215 = smul.addr %s214, 2
      %s216 = smul.addr %s215, 4
      %s217 = scalar_lea.vmem %s2, %s216
      %p218 = scmp.lt.s32.totalorder %s17, 1
      %s219 = scalar_select %p218, %s17, 1
      %s220 = scalar_lea.vmem %s4, %s219
      %p221 = scmp.lt.s32.totalorder %s17, 1
      %s222 = scalar_select %p221, %s17, 1
      %s223 = scalar_lea.vmem %s5, %s222
      %v225 = vld [vmem:[%s212] sm:$0x1]
      %v226 = vld [vmem:[%s217] sm:$0xf]
      %v227 = vld [vmem:[%s217 + $0x4] sm:$0xf]
      %229 = vrot.lane.b32.xlu0 %v225, 96
      %v230 = vpop.permute.xlu0 %229
      %231 = vrot.lane.b32.xlu0 %v225, 64
      %v232 = vpop.permute.xlu0 %231
      %233 = vrot.lane.b32.xlu0 %v225, 32
      %v234 = vpop.permute.xlu0 %233
      %v237 = vpack.i.b16 %v230, %v225
      %v240 = vpack.i.b16 %v234, %v232
      %v243 = vpack.i.b16 0, %v237
      %v244 = vshrl.u32 %v237, 16
      %v245 = vshrl.u32 0, 16
      %v246 = vpack.i.b16 %v245, %v244
      %v248 = vpack.i.b16 0, %v240
      %v249 = vshrl.u32 %v240, 16
      %v250 = vpack.i.b16 %v245, %v249
      %253 = vrot.lane.b32.xlu0 %v226, 96
      %v254 = vpop.permute.xlu0 %253
      %255 = vrot.lane.b32.xlu0 %v227, 96
      %v256 = vpop.permute.xlu0 %255
      %257 = vrot.lane.b32.xlu0 %v226, 64
      %v258 = vpop.permute.xlu0 %257
      %259 = vrot.lane.b32.xlu0 %v227, 64
      %v260 = vpop.permute.xlu0 %259
      %261 = vrot.lane.b32.xlu0 %v226, 32
      %v262 = vpop.permute.xlu0 %261
      %263 = vrot.lane.b32.xlu0 %v227, 32
      %v264 = vpop.permute.xlu0 %263
      %v267 = vpack.i.b16 %v254, %v226
      %v268 = vshrl.u32 %v226, 16
      %v269 = vshrl.u32 %v254, 16
      %v270 = vpack.i.b16 %v269, %v268
      %v273 = vpack.i.b16 %v262, %v258
      %v274 = vshrl.u32 %v258, 16
      %v275 = vshrl.u32 %v262, 16
      %v276 = vpack.i.b16 %v275, %v274
      %v279 = vpack.i.b16 %v256, %v227
      %v280 = vshrl.u32 %v227, 16
      %v281 = vshrl.u32 %v256, 16
      %v282 = vpack.i.b16 %v281, %v280
      %v285 = vpack.i.b16 %v264, %v260
      %v286 = vshrl.u32 %v260, 16
      %v287 = vshrl.u32 %v264, 16
      %v288 = vpack.i.b16 %v287, %v286
      %v291 = vunpack.c.l.s4 1983009808
      %v292 = vunpack.c.0.s8 %v291
      %v293 = vlaneseq
      %v294 = vshrl.u32 %v293, 7
      %v295 = vsub.s32 %v292, %v294
      %v296 = vrot.slane %v267, %v295
      %v299 = vunpack.c.l.s4 1983009808
      %v300 = vunpack.c.0.s8 %v299
      %v301 = vlaneseq
      %v302 = vshrl.u32 %v301, 7
      %v303 = vsub.s32 %v300, %v302
      %v304 = vrot.slane %v273, %v303
      %v305 = vcombine.low %v296, %v304
      %v306 = vcombine.high %v296, %v304
      %v308 = vunpack.c.l.s4 1934713408
      %v309 = vunpack.c.0.s8 %v308
      %v310 = vlaneseq
      %v311 = vshrl.u32 %v310, 7
      %v312 = vsub.s32 %v309, %v311
      %v313 = vrot.slane %v305, %v312
      %v315 = vunpack.c.l.s4 1934713408
      %v316 = vunpack.c.0.s8 %v315
      %v317 = vlaneseq
      %v318 = vshrl.u32 %v317, 7
      %v319 = vsub.s32 %v316, %v318
      %v320 = vrot.slane %v306, %v319
      %v321 = vcombine.high %v313, 0
      %v322 = vcombine.high %v320, 0
      %v325 = vunpack.c.l.s4 1983009808
      %v326 = vunpack.c.0.s8 %v325
      %v327 = vlaneseq
      %v328 = vshrl.u32 %v327, 7
      %v329 = vsub.s32 %v326, %v328
      %v330 = vrot.slane %v270, %v329
      %v333 = vunpack.c.l.s4 1983009808
      %v334 = vunpack.c.0.s8 %v333
      %v335 = vlaneseq
      %v336 = vshrl.u32 %v335, 7
      %v337 = vsub.s32 %v334, %v336
      %v338 = vrot.slane %v276, %v337
      %v339 = vcombine.low %v330, %v338
      %v340 = vcombine.high %v330, %v338
      %v342 = vunpack.c.l.s4 1934713408
      %v343 = vunpack.c.0.s8 %v342
      %v344 = vlaneseq
      %v345 = vshrl.u32 %v344, 7
      %v346 = vsub.s32 %v343, %v345
      %v347 = vrot.slane %v339, %v346
      %v349 = vunpack.c.l.s4 1934713408
      %v350 = vunpack.c.0.s8 %v349
      %v351 = vlaneseq
      %v352 = vshrl.u32 %v351, 7
      %v353 = vsub.s32 %v350, %v352
      %v354 = vrot.slane %v340, %v353
      %v355 = vcombine.high %v347, 0
      %v356 = vcombine.high %v354, 0
      %v359 = vunpack.c.l.s4 1983009808
      %v360 = vunpack.c.0.s8 %v359
      %v361 = vlaneseq
      %v362 = vshrl.u32 %v361, 7
      %v363 = vsub.s32 %v360, %v362
      %v364 = vrot.slane %v279, %v363
      %v367 = vunpack.c.l.s4 1983009808
      %v368 = vunpack.c.0.s8 %v367
      %v369 = vlaneseq
      %v370 = vshrl.u32 %v369, 7
      %v371 = vsub.s32 %v368, %v370
      %v372 = vrot.slane %v285, %v371
      %v373 = vcombine.low %v364, %v372
      %v374 = vcombine.high %v364, %v372
      %v376 = vunpack.c.l.s4 1934713408
      %v377 = vunpack.c.0.s8 %v376
      %v378 = vlaneseq
      %v379 = vshrl.u32 %v378, 7
      %v380 = vsub.s32 %v377, %v379
      %v381 = vrot.slane %v373, %v380
      %v383 = vunpack.c.l.s4 1934713408
      %v384 = vunpack.c.0.s8 %v383
      %v385 = vlaneseq
      %v386 = vshrl.u32 %v385, 7
      %v387 = vsub.s32 %v384, %v386
      %v388 = vrot.slane %v374, %v387
      %v389 = vcombine.high %v381, 0
      %v390 = vcombine.high %v388, 0
      %v393 = vunpack.c.l.s4 1983009808
      %v394 = vunpack.c.0.s8 %v393
      %v395 = vlaneseq
      %v396 = vshrl.u32 %v395, 7
      %v397 = vsub.s32 %v394, %v396
      %v398 = vrot.slane %v282, %v397
      %v401 = vunpack.c.l.s4 1983009808
      %v402 = vunpack.c.0.s8 %v401
      %v403 = vlaneseq
      %v404 = vshrl.u32 %v403, 7
      %v405 = vsub.s32 %v402, %v404
      %v406 = vrot.slane %v288, %v405
      %v407 = vcombine.low %v398, %v406
      %v408 = vcombine.high %v398, %v406
      %v410 = vunpack.c.l.s4 1934713408
      %v411 = vunpack.c.0.s8 %v410
      %v412 = vlaneseq
      %v413 = vshrl.u32 %v412, 7
      %v414 = vsub.s32 %v411, %v413
      %v415 = vrot.slane %v407, %v414
      %v417 = vunpack.c.l.s4 1934713408
      %v418 = vunpack.c.0.s8 %v417
      %v419 = vlaneseq
      %v420 = vshrl.u32 %v419, 7
      %v421 = vsub.s32 %v418, %v420
      %v422 = vrot.slane %v408, %v421
      %v423 = vcombine.high %v415, 0
      %v424 = vcombine.high %v422, 0
      %v425 = vcombine.low %v313, %v320
      %v427 = vunpack.c.l.s4 1983009808
      %v428 = vunpack.c.0.s8 %v427
      %v429 = vlaneseq
      %v430 = vshrl.u32 %v429, 7
      %v431 = vsub.s32 %v428, %v430
      %v432 = vrot.slane %v425, %v431
      %v433 = vcombine.low %v321, %v322
      %v435 = vunpack.c.l.s4 1983009808
      %v436 = vunpack.c.0.s8 %v435
      %v437 = vlaneseq
      %v438 = vshrl.u32 %v437, 7
      %v439 = vsub.s32 %v436, %v438
      %v440 = vrot.slane %v433, %v439
      %v441 = vcombine.low %v432, %v440
      %v443 = vunpack.c.l.s4 1934713408
      %v444 = vunpack.c.0.s8 %v443
      %v445 = vlaneseq
      %v446 = vshrl.u32 %v445, 7
      %v447 = vsub.s32 %v444, %v446
      %v448 = vrot.slane %v441, %v447
      %v449 = vcombine.high %v448, 0
      %v450 = vcombine.low %v347, %v354
      %v452 = vunpack.c.l.s4 1983009808
      %v453 = vunpack.c.0.s8 %v452
      %v454 = vlaneseq
      %v455 = vshrl.u32 %v454, 7
      %v456 = vsub.s32 %v453, %v455
      %v457 = vrot.slane %v450, %v456
      %v458 = vcombine.low %v355, %v356
      %v460 = vunpack.c.l.s4 1983009808
      %v461 = vunpack.c.0.s8 %v460
      %v462 = vlaneseq
      %v463 = vshrl.u32 %v462, 7
      %v464 = vsub.s32 %v461, %v463
      %v465 = vrot.slane %v458, %v464
      %v466 = vcombine.low %v457, %v465
      %v468 = vunpack.c.l.s4 1934713408
      %v469 = vunpack.c.0.s8 %v468
      %v470 = vlaneseq
      %v471 = vshrl.u32 %v470, 7
      %v472 = vsub.s32 %v469, %v471
      %v473 = vrot.slane %v466, %v472
      %v474 = vcombine.high %v473, 0
      %v475 = vcombine.low %v381, %v388
      %v477 = vunpack.c.l.s4 1983009808
      %v478 = vunpack.c.0.s8 %v477
      %v479 = vlaneseq
      %v480 = vshrl.u32 %v479, 7
      %v481 = vsub.s32 %v478, %v480
      %v482 = vrot.slane %v475, %v481
      %v483 = vcombine.low %v389, %v390
      %v485 = vunpack.c.l.s4 1983009808
      %v486 = vunpack.c.0.s8 %v485
      %v487 = vlaneseq
      %v488 = vshrl.u32 %v487, 7
      %v489 = vsub.s32 %v486, %v488
      %v490 = vrot.slane %v483, %v489
      %v491 = vcombine.low %v482, %v490
      %v493 = vunpack.c.l.s4 1934713408
      %v494 = vunpack.c.0.s8 %v493
      %v495 = vlaneseq
      %v496 = vshrl.u32 %v495, 7
      %v497 = vsub.s32 %v494, %v496
      %v498 = vrot.slane %v491, %v497
      %v499 = vcombine.high %v498, 0
      %v500 = vcombine.low %v415, %v422
      %v502 = vunpack.c.l.s4 1983009808
      %v503 = vunpack.c.0.s8 %v502
      %v504 = vlaneseq
      %v505 = vshrl.u32 %v504, 7
      %v506 = vsub.s32 %v503, %v505
      %v507 = vrot.slane %v500, %v506
      %v508 = vcombine.low %v423, %v424
      %v510 = vunpack.c.l.s4 1983009808
      %v511 = vunpack.c.0.s8 %v510
      %v512 = vlaneseq
      %v513 = vshrl.u32 %v512, 7
      %v514 = vsub.s32 %v511, %v513
      %v515 = vrot.slane %v508, %v514
      %v516 = vcombine.low %v507, %v515
      %v518 = vunpack.c.l.s4 1934713408
      %v519 = vunpack.c.0.s8 %v518
      %v520 = vlaneseq
      %v521 = vshrl.u32 %v520, 7
      %v522 = vsub.s32 %v519, %v521
      %v523 = vrot.slane %v516, %v522
      %v524 = vcombine.high %v523, 0
      %v527 = vpack.i.b16 %v473, %v448
      %v528 = vshrl.u32 %v448, 16
      %v529 = vshrl.u32 %v473, 16
      %v530 = vpack.i.b16 %v529, %v528
      %v533 = vpack.i.b16 %v474, %v449
      %v534 = vshrl.u32 %v449, 16
      %v535 = vshrl.u32 %v474, 16
      %v536 = vpack.i.b16 %v535, %v534
      %v539 = vpack.i.b16 %v523, %v498
      %v540 = vshrl.u32 %v498, 16
      %v541 = vshrl.u32 %v523, 16
      %v542 = vpack.i.b16 %v541, %v540
      %v545 = vpack.i.b16 %v524, %v499
      %v546 = vshrl.u32 %v499, 16
      %v547 = vshrl.u32 %v524, 16
      %v548 = vpack.i.b16 %v547, %v546
      %v549 = vunpack.c.l.b16 %v527
      %v550 = vunpack.c.l.b16 %v539
      %v551 = vpack.c.b16 %v550, %v549
      %vm552 = vcmask 261120
      %v554 = vsel %vm552, %v243, 0
      %v557 = vsel %vm552, %v551, 0
      %559 = vmatprep.subr.bf16.mxu0 0
      %560 = vmatpush1.bf16.xpose.msra.mxu0 0
      %561 = vmatprep.subr.bf16.mxu0 0
      %562 = vmatpush1.bf16.xpose.msra.mxu0 0
      %563 = vmatprep.subr.bf16.mxu0 0
      %564 = vmatpush1.bf16.xpose.msra.mxu0 0
      %565 = vmatprep.subr.bf16.mxu0 0
      %566 = vmatpush1.bf16.xpose.msra.mxu0 0
      %567 = vmatprep.subr.bf16.mxu0 0
      %568 = vmatpush1.bf16.xpose.msra.mxu0 0
      %569 = vmatprep.subr.bf16.mxu0 0
      %570 = vmatpush1.bf16.xpose.msra.mxu0 0
      %571 = vmatprep.subr.bf16.mxu0 0
      %572 = vmatpush1.bf16.xpose.msra.mxu0 0
      %573 = vmatprep.subr.bf16.mxu0 0
      %574 = vmatpush1.bf16.xpose.msra.mxu0 %v557
      %575 = vmatprep.subr.bf16.mxu0 0
      %576 = vmatpush2.bf16.xpose.msra.mxu0 0
      %577 = vmatprep.subr.bf16.mxu0 0
      %578 = vmatpush2.bf16.xpose.msra.mxu0 0
      %579 = vmatprep.subr.bf16.mxu0 0
      %580 = vmatpush2.bf16.xpose.msra.mxu0 0
      %581 = vmatprep.subr.bf16.mxu0 0
      %582 = vmatpush2.bf16.xpose.msra.mxu0 0
      %583 = vmatprep.subr.bf16.mxu0 0
      %584 = vmatpush2.bf16.xpose.msra.mxu0 0
      %585 = vmatprep.subr.bf16.mxu0 0
      %586 = vmatpush2.bf16.xpose.msra.mxu0 0
      %587 = vmatprep.subr.bf16.mxu0 0
      %588 = vmatpush2.bf16.xpose.msra.mxu0 0
      %589 = vmatprep.subr.bf16.mxu0 0
      %590 = vmatpush2.bf16.xpose.msra.mxu0 0
      %591 = vmatprep.mubr.bf16.mxu0 0
      %592 = vmatmul.mubr.bf16.gmra.mxu0 %v554
      %v593 = vpop.f32.mrf.mxu0
      %v594 = vadd.f32 0.0, %v593
      %v595 = vpop.f32.mrf.mxu0
      %v596 = vpop.f32.mrf.mxu0
      %v597 = vpop.f32.mrf.mxu0
      %598 = vdwg.mxu0
      %v600 = vsel %vm552, %v246, 0
      %602 = vmatprep.subr.bf16.mxu0 0
      %603 = vmatpush1.bf16.xpose.msra.mxu0 0
      %604 = vmatprep.subr.bf16.mxu0 0
      %605 = vmatpush1.bf16.xpose.msra.mxu0 0
      %606 = vmatprep.subr.bf16.mxu0 0
      %607 = vmatpush1.bf16.xpose.msra.mxu0 0
      %608 = vmatprep.subr.bf16.mxu0 0
      %609 = vmatpush1.bf16.xpose.msra.mxu0 0
      %610 = vmatprep.subr.bf16.mxu0 0
      %611 = vmatpush1.bf16.xpose.msra.mxu0 0
      %612 = vmatprep.subr.bf16.mxu0 0
      %613 = vmatpush1.bf16.xpose.msra.mxu0 0
      %614 = vmatprep.subr.bf16.mxu0 0
      %615 = vmatpush1.bf16.xpose.msra.mxu0 0
      %616 = vmatprep.subr.bf16.mxu0 0
      %617 = vmatpush1.bf16.xpose.msra.mxu0 %v557
      %618 = vmatprep.subr.bf16.mxu0 0
      %619 = vmatpush2.bf16.xpose.msra.mxu0 0
      %620 = vmatprep.subr.bf16.mxu0 0
      %621 = vmatpush2.bf16.xpose.msra.mxu0 0
      %622 = vmatprep.subr.bf16.mxu0 0
      %623 = vmatpush2.bf16.xpose.msra.mxu0 0
      %624 = vmatprep.subr.bf16.mxu0 0
      %625 = vmatpush2.bf16.xpose.msra.mxu0 0
      %626 = vmatprep.subr.bf16.mxu0 0
      %627 = vmatpush2.bf16.xpose.msra.mxu0 0
      %628 = vmatprep.subr.bf16.mxu0 0
      %629 = vmatpush2.bf16.xpose.msra.mxu0 0
      %630 = vmatprep.subr.bf16.mxu0 0
      %631 = vmatpush2.bf16.xpose.msra.mxu0 0
      %632 = vmatprep.subr.bf16.mxu0 0
      %633 = vmatpush2.bf16.xpose.msra.mxu0 0
      %634 = vmatprep.mubr.bf16.mxu0 0
      %635 = vmatmul.mubr.bf16.gmra.mxu0 %v600
      %v636 = vpop.f32.mrf.mxu0
      %v637 = vadd.f32 0.0, %v636
      %v638 = vpop.f32.mrf.mxu0
      %v639 = vpop.f32.mrf.mxu0
      %v640 = vpop.f32.mrf.mxu0
      %641 = vdwg.mxu0
      %v642 = vunpack.c.l.b16 %v530
      %v643 = vunpack.c.l.b16 %v542
      %v644 = vpack.c.b16 %v643, %v642
      %v646 = vsel %vm552, %v248, 0
      %v649 = vsel %vm552, %v644, 0
      %651 = vmatprep.subr.bf16.mxu0 0
      %652 = vmatpush1.bf16.xpose.msra.mxu0 0
      %653 = vmatprep.subr.bf16.mxu0 0
      %654 = vmatpush1.bf16.xpose.msra.mxu0 0
      %655 = vmatprep.subr.bf16.mxu0 0
      %656 = vmatpush1.bf16.xpose.msra.mxu0 0
      %657 = vmatprep.subr.bf16.mxu0 0
      %658 = vmatpush1.bf16.xpose.msra.mxu0 0
      %659 = vmatprep.subr.bf16.mxu0 0
      %660 = vmatpush1.bf16.xpose.msra.mxu0 0
      %661 = vmatprep.subr.bf16.mxu0 0
      %662 = vmatpush1.bf16.xpose.msra.mxu0 0
      %663 = vmatprep.subr.bf16.mxu0 0
      %664 = vmatpush1.bf16.xpose.msra.mxu0 0
      %665 = vmatprep.subr.bf16.mxu0 0
      %666 = vmatpush1.bf16.xpose.msra.mxu0 %v649
      %667 = vmatprep.subr.bf16.mxu0 0
      %668 = vmatpush2.bf16.xpose.msra.mxu0 0
      %669 = vmatprep.subr.bf16.mxu0 0
      %670 = vmatpush2.bf16.xpose.msra.mxu0 0
      %671 = vmatprep.subr.bf16.mxu0 0
      %672 = vmatpush2.bf16.xpose.msra.mxu0 0
      %673 = vmatprep.subr.bf16.mxu0 0
      %674 = vmatpush2.bf16.xpose.msra.mxu0 0
      %675 = vmatprep.subr.bf16.mxu0 0
      %676 = vmatpush2.bf16.xpose.msra.mxu0 0
      %677 = vmatprep.subr.bf16.mxu0 0
      %678 = vmatpush2.bf16.xpose.msra.mxu0 0
      %679 = vmatprep.subr.bf16.mxu0 0
      %680 = vmatpush2.bf16.xpose.msra.mxu0 0
      %681 = vmatprep.subr.bf16.mxu0 0
      %682 = vmatpush2.bf16.xpose.msra.mxu0 0
      %683 = vmatprep.mubr.bf16.mxu0 0
      %684 = vmatmul.mubr.bf16.gmra.mxu0 %v646
      %v685 = vpop.f32.mrf.mxu0
      %v686 = vadd.f32 0.0, %v685
      %v687 = vpop.f32.mrf.mxu0
      %v688 = vpop.f32.mrf.mxu0
      %v689 = vpop.f32.mrf.mxu0
      %690 = vdwg.mxu0
      %v692 = vsel %vm552, %v250, 0
      %694 = vmatprep.subr.bf16.mxu0 0
      %695 = vmatpush1.bf16.xpose.msra.mxu0 0
      %696 = vmatprep.subr.bf16.mxu0 0
      %697 = vmatpush1.bf16.xpose.msra.mxu0 0
      %698 = vmatprep.subr.bf16.mxu0 0
      %699 = vmatpush1.bf16.xpose.msra.mxu0 0
      %700 = vmatprep.subr.bf16.mxu0 0
      %701 = vmatpush1.bf16.xpose.msra.mxu0 0
      %702 = vmatprep.subr.bf16.mxu0 0
      %703 = vmatpush1.bf16.xpose.msra.mxu0 0
      %704 = vmatprep.subr.bf16.mxu0 0
      %705 = vmatpush1.bf16.xpose.msra.mxu0 0
      %706 = vmatprep.subr.bf16.mxu0 0
      %707 = vmatpush1.bf16.xpose.msra.mxu0 0
      %708 = vmatprep.subr.bf16.mxu0 0
      %709 = vmatpush1.bf16.xpose.msra.mxu0 %v649
      %710 = vmatprep.subr.bf16.mxu0 0
      %711 = vmatpush2.bf16.xpose.msra.mxu0 0
      %712 = vmatprep.subr.bf16.mxu0 0
      %713 = vmatpush2.bf16.xpose.msra.mxu0 0
      %714 = vmatprep.subr.bf16.mxu0 0
      %715 = vmatpush2.bf16.xpose.msra.mxu0 0
      %716 = vmatprep.subr.bf16.mxu0 0
      %717 = vmatpush2.bf16.xpose.msra.mxu0 0
      %718 = vmatprep.subr.bf16.mxu0 0
      %719 = vmatpush2.bf16.xpose.msra.mxu0 0
      %720 = vmatprep.subr.bf16.mxu0 0
      %721 = vmatpush2.bf16.xpose.msra.mxu0 0
      %722 = vmatprep.subr.bf16.mxu0 0
      %723 = vmatpush2.bf16.xpose.msra.mxu0 0
      %724 = vmatprep.subr.bf16.mxu0 0
      %725 = vmatpush2.bf16.xpose.msra.mxu0 0
      %726 = vmatprep.mubr.bf16.mxu0 0
      %727 = vmatmul.mubr.bf16.gmra.mxu0 %v692
      %v728 = vpop.f32.mrf.mxu0
      %v729 = vadd.f32 0.0, %v728
      %v730 = vpop.f32.mrf.mxu0
      %v731 = vpop.f32.mrf.mxu0
      %v732 = vpop.f32.mrf.mxu0
      %733 = vdwg.mxu0
      %v734 = vmul.f32 %v594, 0.17677669
      %v735 = vmul.f32 %v637, 0.17677669
      %v736 = vmul.f32 %v686, 0.17677669
      %v737 = vmul.f32 %v729, 0.17677669
      %v738 = vlaneseq
      %v739 = vshrl.u32 %v738, 7
      %s740 = sld [smem:[#allocation3]]
      %v741 = vstv %s740
      %v742 = vadd.s32 %v739, %v741
      %v743 = vlaneseq
      %v744 = vand.u32 %v743, 127
      %vm745 = vcmp.le.s32.totalorder %v744, %v742
      %v746 = vsel %vm745, 1, 0
      %vm747 = vcmp.eq.s32.totalorder %v746, 1
      %v748 = vsel %vm747, %v734, -1e+30
      %v749 = vsel %vm747, %v735, -1e+30
      %v750 = vsel %vm747, %v736, -1e+30
      %v751 = vsel %vm747, %v737, -1e+30
      %vm752 = vcmask 122880
      %v753 = vsel %vm752, %v748, -inf
      %754 = vmax.xlane.f32.xlu0 %v753
      %v755 = vpop.xlane.xlu0 %754
      %v756 = vsel %vm752, %v749, -inf
      %757 = vmax.xlane.f32.xlu0 %v756
      %v758 = vpop.xlane.xlu0 %757
      %v759 = vsel %vm752, %v750, -inf
      %760 = vmax.xlane.f32.xlu0 %v759
      %v761 = vpop.xlane.xlu0 %760
      %v762 = vsel %vm752, %v751, -inf
      %763 = vmax.xlane.f32.xlu0 %v762
      %v764 = vpop.xlane.xlu0 %763
      %v765 = vsub.f32 %v748, %v755
      %v766 = vsub.f32 %v749, %v758
      %v767 = vsub.f32 %v750, %v761
      %v768 = vsub.f32 %v751, %v764
      %v769 = vmul.f32 %v765, 1.442695
      %v770 = vpow.pop %v769
      %v771 = vmul.f32 %v766, 1.442695
      %v772 = vpow.pop %v771
      %v773 = vmul.f32 %v767, 1.442695
      %v774 = vpow.pop %v773
      %v775 = vmul.f32 %v768, 1.442695
      %v776 = vpow.pop %v775
      %v777 = vsel %vm752, %v770, 0.0
      %778 = vadd.xlane.f32.xlu0 %v777
      %v779 = vpop.xlane.xlu0 %778
      %v780 = vsel %vm752, %v772, 0.0
      %781 = vadd.xlane.f32.xlu0 %v780
      %v782 = vpop.xlane.xlu0 %781
      %v783 = vsel %vm752, %v774, 0.0
      %784 = vadd.xlane.f32.xlu0 %v783
      %v785 = vpop.xlane.xlu0 %784
      %v786 = vsel %vm752, %v776, 0.0
      %787 = vadd.xlane.f32.xlu0 %v786
      %v788 = vpop.xlane.xlu0 %787
      %v789 = vpack.c.bf16 %v770, %v770
      %v790 = vpack.c.bf16 %v772, %v772
      %v791 = vpack.c.bf16 %v774, %v774
      %v792 = vpack.c.bf16 %v776, %v776
      %v793 = vunpack.c.l.b16 %v533
      %v794 = vunpack.c.l.b16 %v545
      %v795 = vpack.c.b16 %v794, %v793
      %vm797 = vcmask 130048
      %v799 = vsel %vm797, %v789, 0
      %801 = vmatprep.subr.bf16.mxu0 0
      %802 = vmatpush1.bf16.msra.mxu0 0
      %803 = vmatprep.subr.bf16.mxu0 0
      %804 = vmatpush1.bf16.msra.mxu0 0
      %805 = vmatprep.subr.bf16.mxu0 0
      %806 = vmatpush1.bf16.msra.mxu0 0
      %807 = vmatprep.subr.bf16.mxu0 0
      %808 = vmatpush1.bf16.msra.mxu0 0
      %809 = vmatprep.subr.bf16.mxu0 0
      %810 = vmatpush1.bf16.msra.mxu0 0
      %811 = vmatprep.subr.bf16.mxu0 0
      %812 = vmatpush1.bf16.msra.mxu0 0
      %813 = vmatprep.subr.bf16.mxu0 0
      %814 = vmatpush1.bf16.msra.mxu0 0
      %815 = vmatprep.subr.bf16.mxu0 0
      %816 = vmatpush1.bf16.msra.mxu0 %v795
      %817 = vmatprep.subr.bf16.mxu0 0
      %818 = vmatpush2.bf16.msra.mxu0 0
      %819 = vmatprep.subr.bf16.mxu0 0
      %820 = vmatpush2.bf16.msra.mxu0 0
      %821 = vmatprep.subr.bf16.mxu0 0
      %822 = vmatpush2.bf16.msra.mxu0 0
      %823 = vmatprep.subr.bf16.mxu0 0
      %824 = vmatpush2.bf16.msra.mxu0 0
      %825 = vmatprep.subr.bf16.mxu0 0
      %826 = vmatpush2.bf16.msra.mxu0 0
      %827 = vmatprep.subr.bf16.mxu0 0
      %828 = vmatpush2.bf16.msra.mxu0 0
      %829 = vmatprep.subr.bf16.mxu0 0
      %830 = vmatpush2.bf16.msra.mxu0 0
      %831 = vmatprep.subr.bf16.mxu0 0
      %832 = vmatpush2.bf16.msra.mxu0 0
      %833 = vmatprep.mubr.bf16.mxu0 0
      %834 = vmatmul.mubr.bf16.gmra.mxu0 %v799
      %v835 = vpop.f32.mrf.mxu0
      %v836 = vadd.f32 0.0, %v835
      %v837 = vpop.f32.mrf.mxu0
      %v838 = vpop.f32.mrf.mxu0
      %v839 = vpop.f32.mrf.mxu0
      %840 = vdwg.mxu0
      %v842 = vsel %vm797, %v790, 0
      %844 = vmatprep.subr.bf16.mxu0 0
      %845 = vmatpush1.bf16.msra.mxu0 0
      %846 = vmatprep.subr.bf16.mxu0 0
      %847 = vmatpush1.bf16.msra.mxu0 0
      %848 = vmatprep.subr.bf16.mxu0 0
      %849 = vmatpush1.bf16.msra.mxu0 0
      %850 = vmatprep.subr.bf16.mxu0 0
      %851 = vmatpush1.bf16.msra.mxu0 0
      %852 = vmatprep.subr.bf16.mxu0 0
      %853 = vmatpush1.bf16.msra.mxu0 0
      %854 = vmatprep.subr.bf16.mxu0 0
      %855 = vmatpush1.bf16.msra.mxu0 0
      %856 = vmatprep.subr.bf16.mxu0 0
      %857 = vmatpush1.bf16.msra.mxu0 0
      %858 = vmatprep.subr.bf16.mxu0 0
      %859 = vmatpush1.bf16.msra.mxu0 %v795
      %860 = vmatprep.subr.bf16.mxu0 0
      %861 = vmatpush2.bf16.msra.mxu0 0
      %862 = vmatprep.subr.bf16.mxu0 0
      %863 = vmatpush2.bf16.msra.mxu0 0
      %864 = vmatprep.subr.bf16.mxu0 0
      %865 = vmatpush2.bf16.msra.mxu0 0
      %866 = vmatprep.subr.bf16.mxu0 0
      %867 = vmatpush2.bf16.msra.mxu0 0
      %868 = vmatprep.subr.bf16.mxu0 0
      %869 = vmatpush2.bf16.msra.mxu0 0
      %870 = vmatprep.subr.bf16.mxu0 0
      %871 = vmatpush2.bf16.msra.mxu0 0
      %872 = vmatprep.subr.bf16.mxu0 0
      %873 = vmatpush2.bf16.msra.mxu0 0
      %874 = vmatprep.subr.bf16.mxu0 0
      %875 = vmatpush2.bf16.msra.mxu0 0
      %876 = vmatprep.mubr.bf16.mxu0 0
      %877 = vmatmul.mubr.bf16.gmra.mxu0 %v842
      %v878 = vpop.f32.mrf.mxu0
      %v879 = vadd.f32 0.0, %v878
      %v880 = vpop.f32.mrf.mxu0
      %v881 = vpop.f32.mrf.mxu0
      %v882 = vpop.f32.mrf.mxu0
      %883 = vdwg.mxu0
      %v884 = vunpack.c.l.b16 %v536
      %v885 = vunpack.c.l.b16 %v548
      %v886 = vpack.c.b16 %v885, %v884
      %v889 = vsel %vm797, %v791, 0
      %891 = vmatprep.subr.bf16.mxu0 0
      %892 = vmatpush1.bf16.msra.mxu0 0
      %893 = vmatprep.subr.bf16.mxu0 0
      %894 = vmatpush1.bf16.msra.mxu0 0
      %895 = vmatprep.subr.bf16.mxu0 0
      %896 = vmatpush1.bf16.msra.mxu0 0
      %897 = vmatprep.subr.bf16.mxu0 0
      %898 = vmatpush1.bf16.msra.mxu0 0
      %899 = vmatprep.subr.bf16.mxu0 0
      %900 = vmatpush1.bf16.msra.mxu0 0
      %901 = vmatprep.subr.bf16.mxu0 0
      %902 = vmatpush1.bf16.msra.mxu0 0
      %903 = vmatprep.subr.bf16.mxu0 0
      %904 = vmatpush1.bf16.msra.mxu0 0
      %905 = vmatprep.subr.bf16.mxu0 0
      %906 = vmatpush1.bf16.msra.mxu0 %v886
      %907 = vmatprep.subr.bf16.mxu0 0
      %908 = vmatpush2.bf16.msra.mxu0 0
      %909 = vmatprep.subr.bf16.mxu0 0
      %910 = vmatpush2.bf16.msra.mxu0 0
      %911 = vmatprep.subr.bf16.mxu0 0
      %912 = vmatpush2.bf16.msra.mxu0 0
      %913 = vmatprep.subr.bf16.mxu0 0
      %914 = vmatpush2.bf16.msra.mxu0 0
      %915 = vmatprep.subr.bf16.mxu0 0
      %916 = vmatpush2.bf16.msra.mxu0 0
      %917 = vmatprep.subr.bf16.mxu0 0
      %918 = vmatpush2.bf16.msra.mxu0 0
      %919 = vmatprep.subr.bf16.mxu0 0
      %920 = vmatpush2.bf16.msra.mxu0 0
      %921 = vmatprep.subr.bf16.mxu0 0
      %922 = vmatpush2.bf16.msra.mxu0 0
      %923 = vmatprep.mubr.bf16.mxu0 0
      %924 = vmatmul.mubr.bf16.gmra.mxu0 %v889
      %v925 = vpop.f32.mrf.mxu0
      %v926 = vadd.f32 0.0, %v925
      %v927 = vpop.f32.mrf.mxu0
      %v928 = vpop.f32.mrf.mxu0
      %v929 = vpop.f32.mrf.mxu0
      %930 = vdwg.mxu0
      %v932 = vsel %vm797, %v792, 0
      %934 = vmatprep.subr.bf16.mxu0 0
      %935 = vmatpush1.bf16.msra.mxu0 0
      %936 = vmatprep.subr.bf16.mxu0 0
      %937 = vmatpush1.bf16.msra.mxu0 0
      %938 = vmatprep.subr.bf16.mxu0 0
      %939 = vmatpush1.bf16.msra.mxu0 0
      %940 = vmatprep.subr.bf16.mxu0 0
      %941 = vmatpush1.bf16.msra.mxu0 0
      %942 = vmatprep.subr.bf16.mxu0 0
      %943 = vmatpush1.bf16.msra.mxu0 0
      %944 = vmatprep.subr.bf16.mxu0 0
      %945 = vmatpush1.bf16.msra.mxu0 0
      %946 = vmatprep.subr.bf16.mxu0 0
      %947 = vmatpush1.bf16.msra.mxu0 0
      %948 = vmatprep.subr.bf16.mxu0 0
      %949 = vmatpush1.bf16.msra.mxu0 %v886
      %950 = vmatprep.subr.bf16.mxu0 0
      %951 = vmatpush2.bf16.msra.mxu0 0
      %952 = vmatprep.subr.bf16.mxu0 0
      %953 = vmatpush2.bf16.msra.mxu0 0
      %954 = vmatprep.subr.bf16.mxu0 0
      %955 = vmatpush2.bf16.msra.mxu0 0
      %956 = vmatprep.subr.bf16.mxu0 0
      %957 = vmatpush2.bf16.msra.mxu0 0
      %958 = vmatprep.subr.bf16.mxu0 0
      %959 = vmatpush2.bf16.msra.mxu0 0
      %960 = vmatprep.subr.bf16.mxu0 0
      %961 = vmatpush2.bf16.msra.mxu0 0
      %962 = vmatprep.subr.bf16.mxu0 0
      %963 = vmatpush2.bf16.msra.mxu0 0
      %964 = vmatprep.subr.bf16.mxu0 0
      %965 = vmatpush2.bf16.msra.mxu0 0
      %966 = vmatprep.mubr.bf16.mxu0 0
      %967 = vmatmul.mubr.bf16.gmra.mxu0 %v932
      %v968 = vpop.f32.mrf.mxu0
      %v969 = vadd.f32 0.0, %v968
      %v970 = vpop.f32.mrf.mxu0
      %v971 = vpop.f32.mrf.mxu0
      %v972 = vpop.f32.mrf.mxu0
      %973 = vdwg.mxu0
      %v974 = vrcp.pop %v779
      %v975 = vmul.f32 %v836, %v974
      %v976 = vrcp.pop %v782
      %v977 = vmul.f32 %v879, %v976
      %v978 = vrcp.pop %v785
      %v979 = vmul.f32 %v926, %v978
      %v980 = vrcp.pop %v788
      %v981 = vmul.f32 %v969, %v980
      %v982 = vcombine.low %v975, %v979
      %v984 = vunpack.c.l.s4 1983009808
      %v985 = vunpack.c.0.s8 %v984
      %v986 = vlaneseq
      %v987 = vshrl.u32 %v986, 7
      %v988 = vsub.s32 %v985, %v987
      %v989 = vrot.slane %v982, %v988
      %v990 = vcombine.low %v977, %v981
      %v992 = vunpack.c.l.s4 1983009808
      %v993 = vunpack.c.0.s8 %v992
      %v994 = vlaneseq
      %v995 = vshrl.u32 %v994, 7
      %v996 = vsub.s32 %v993, %v995
      %v997 = vrot.slane %v990, %v996
      %v998 = vcombine.low %v989, %v997
      %v1000 = vunpack.c.l.s4 1934713408
      %v1001 = vunpack.c.0.s8 %v1000
      %v1002 = vlaneseq
      %v1003 = vshrl.u32 %v1002, 7
      %v1004 = vsub.s32 %v1001, %v1003
      %v1005 = vrot.slane %v998, %v1004
      %v1007 = vunpack.c.l.s4 1983009808
      %v1008 = vunpack.c.0.s8 %v1007
      %v1009 = vlaneseq
      %v1010 = vshrl.u32 %v1009, 7
      %v1011 = vsub.s32 %v1008, %v1010
      %v1012 = vrot.slane %v1005, %v1011
      %v1013 = vcombine.high %v1012, 0.0
      %v1015 = vunpack.c.l.s4 1934713408
      %v1016 = vunpack.c.0.s8 %v1015
      %v1017 = vlaneseq
      %v1018 = vshrl.u32 %v1017, 7
      %v1019 = vsub.s32 %v1016, %v1018
      %v1020 = vrot.slane %v1012, %v1019
      %v1022 = vunpack.c.l.s4 1934713408
      %v1023 = vunpack.c.0.s8 %v1022
      %v1024 = vlaneseq
      %v1025 = vshrl.u32 %v1024, 7
      %v1026 = vsub.s32 %v1023, %v1025
      %v1027 = vrot.slane %v1013, %v1026
      %v1028 = vcombine.high %v1020, 0.0
      %v1029 = vcombine.high %v1027, 0.0
      %1031 = vrot.lane.b32.xlu0 %v1028, 32
      %v1032 = vpop.permute.xlu0 %1031
      %1035 = vrot.lane.b32.xlu0 %v1027, 64
      %v1036 = vpop.permute.xlu0 %1035
      %1039 = vrot.lane.b32.xlu0 %v1029, 96
      %v1040 = vpop.permute.xlu0 %1039
      %v1042 = vsel %vm552, %v1020, %v1032
      %vm1043 = vcmask 523264
      %v1044 = vsel %vm1043, %v1042, %v1036
      %vm1045 = vcmask 785408
      %v1046 = vsel %vm1045, %v1044, %v1040
      %v1047 = vpack.c.bf16 %v1046, %v1046
      %v1048 = vld [vmem:[%s3] sm:$0xf]
      %v1049 = vld [vmem:[%s3 + $0x4] sm:$0xf]
      %v1050 = vld [vmem:[%s3 + $0x8] sm:$0xf]
      %v1051 = vld [vmem:[%s3 + $0xc] sm:$0xf]
      %v1052 = vld [vmem:[%s3 + $0x10] sm:$0xf]
      %v1053 = vld [vmem:[%s3 + $0x14] sm:$0xf]
      %v1054 = vld [vmem:[%s3 + $0x18] sm:$0xf]
      %v1055 = vld [vmem:[%s3 + $0x1c] sm:$0xf]
      %v1056 = vld [vmem:[%s3 + $0x20] sm:$0xf]
      %v1057 = vld [vmem:[%s3 + $0x24] sm:$0xf]
      %v1058 = vld [vmem:[%s3 + $0x28] sm:$0xf]
      %v1059 = vld [vmem:[%s3 + $0x2c] sm:$0xf]
      %v1060 = vld [vmem:[%s3 + $0x30] sm:$0xf]
      %v1061 = vld [vmem:[%s3 + $0x34] sm:$0xf]
      %v1062 = vld [vmem:[%s3 + $0x38] sm:$0xf]
      %v1063 = vld [vmem:[%s3 + $0x3c] sm:$0xf]
      %v1080 = vunpack.c.l.b16 %v1048
      %v1081 = vunpack.c.l.b16 %v1049
      %v1082 = vunpack.c.l.b16 %v1050
      %v1083 = vunpack.c.l.b16 %v1051
      %v1084 = vunpack.c.l.b16 %v1052
      %v1085 = vunpack.c.l.b16 %v1053
      %v1086 = vunpack.c.l.b16 %v1054
      %v1087 = vunpack.c.l.b16 %v1055
      %v1088 = vunpack.c.l.b16 %v1056
      %v1089 = vunpack.c.l.b16 %v1057
      %v1090 = vunpack.c.l.b16 %v1058
      %v1091 = vunpack.c.l.b16 %v1059
      %v1092 = vunpack.c.l.b16 %v1060
      %v1093 = vunpack.c.l.b16 %v1061
      %v1094 = vunpack.c.l.b16 %v1062
      %v1095 = vunpack.c.l.b16 %v1063
      %v1096 = vpack.c.b16 %v1081, %v1080
      %v1097 = vpack.c.b16 %v1083, %v1082
      %v1098 = vpack.c.b16 %v1085, %v1084
      %v1099 = vpack.c.b16 %v1087, %v1086
      %v1100 = vpack.c.b16 %v1089, %v1088
      %v1101 = vpack.c.b16 %v1091, %v1090
      %v1102 = vpack.c.b16 %v1093, %v1092
      %v1103 = vpack.c.b16 %v1095, %v1094
      %1112 = vmatprep.subr.bf16.mxu0 0
      %1113 = vmatpush1.bf16.msra.mxu0 %v1103
      %1114 = vmatprep.subr.bf16.mxu0 0
      %1115 = vmatpush1.bf16.msra.mxu0 %v1102
      %1116 = vmatprep.subr.bf16.mxu0 0
      %1117 = vmatpush1.bf16.msra.mxu0 %v1101
      %1118 = vmatprep.subr.bf16.mxu0 0
      %1119 = vmatpush1.bf16.msra.mxu0 %v1100
      %1120 = vmatprep.subr.bf16.mxu0 0
      %1121 = vmatpush1.bf16.msra.mxu0 %v1099
      %1122 = vmatprep.subr.bf16.mxu0 0
      %1123 = vmatpush1.bf16.msra.mxu0 %v1098
      %1124 = vmatprep.subr.bf16.mxu0 0
      %1125 = vmatpush1.bf16.msra.mxu0 %v1097
      %1126 = vmatprep.subr.bf16.mxu0 0
      %1127 = vmatpush1.bf16.msra.mxu0 %v1096
      %1128 = vmatprep.subr.bf16.mxu0 0
      %1129 = vmatpush2.bf16.msra.mxu0 0
      %1130 = vmatprep.subr.bf16.mxu0 0
      %1131 = vmatpush2.bf16.msra.mxu0 0
      %1132 = vmatprep.subr.bf16.mxu0 0
      %1133 = vmatpush2.bf16.msra.mxu0 0
      %1134 = vmatprep.subr.bf16.mxu0 0
      %1135 = vmatpush2.bf16.msra.mxu0 0
      %1136 = vmatprep.subr.bf16.mxu0 0
      %1137 = vmatpush2.bf16.msra.mxu0 0
      %1138 = vmatprep.subr.bf16.mxu0 0
      %1139 = vmatpush2.bf16.msra.mxu0 0
      %1140 = vmatprep.subr.bf16.mxu0 0
      %1141 = vmatpush2.bf16.msra.mxu0 0
      %1142 = vmatprep.subr.bf16.mxu0 0
      %1143 = vmatpush2.bf16.msra.mxu0 0
      %1144 = vmatprep.mubr.bf16.mxu0 0
      %1145 = vmatmul.mubr.bf16.gmra.mxu0 %v1047
      %v1146 = vpop.f32.mrf.mxu0
      %v1147 = vadd.f32 0.0, %v1146
      %v1148 = vpop.f32.mrf.mxu0
      %v1149 = vpop.f32.mrf.mxu0
      %v1150 = vpop.f32.mrf.mxu0
      %1151 = vdwg.mxu0
      %v1152 = vld [vmem:[%s220] sm:$0x1]
      %v1153 = vunpack.c.l.bf16 %v1152
      %v1154 = vadd.f32 %v1153, %v1147
      %v1155 = vpack.c.bf16 %v1154, %v1154
      %vm1156 = vcmask 1040384
      %vm1157 = vsmask.f32 256
      %vm1158 = vmand %vm1156, %vm1157
      %v1159 = vld [vmem:[%s223] sm:$0x1]
      %v1160 = vsel %vm1158, %v1155, %v1159
      %1161 = vst [vmem:[%s223] sm:$0x1] %v1160
      %p1162 = scmp.lt.s32.totalorder %s17, 1
      %s1163 = scalar_select %p1162, %s17, 1
      %s1164 = scalar_lea.vmem %s5, %s1163
      // Predicated region
      $region37: #{closed_call.110} parent=35 // pred_check
        %p1165 = pneg %p134
      $region38: #{closed_call.110} parent=35 // pred_check_branch
        %1167 = sbr.rel (%p1165) target = $region40
      $region39: #{closed_call.110} parent=35 // pred_region
        _
      $region40: #{closed_call.110} parent=35 // pred_fallthru
        _
    $region36: #{closed_call.110} parent=5 // pred_fallthru
      _
    %p1168 = scmp.le.s32.totalorder 2, %s12
    // Predicated region
    $region41: #{closed_call.110} parent=5 // pred_check
      %p1169 = pneg %p1168
    $region42: #{closed_call.110} parent=5 // pred_check_branch
      %1171 = sbr.rel (%p1169) target = $region44
    $region43: #{closed_call.110} parent=5 // pred_region
      %s1172 = ssub.s32 %s12, 2
      // Predicated region
      $region45: #{closed_call.110} parent=43 // pred_check
        %p1173 = pneg %p140
      $region46: #{closed_call.110} parent=43 // pred_check_branch
        %1175 = sbr.rel (%p1173) target = $region48
      $region47: #{closed_call.110} parent=43 // pred_region
        %p1176 = scmp.lt.s32.totalorder %s18, 1
        %s1177 = scalar_select %p1176, %s18, 1
        %s1178 = scalar_lea.vmem %s5, %s1177
      $region48: #{closed_call.110} parent=43 // pred_fallthru
        _
    $region44: #{closed_call.110} parent=5 // pred_fallthru
      _
  $region6: #{closed_call.110} parent=0 // loop_footer
    %s16 = sadd.s32 1, %s12
  $region7: #{closed_call.110} parent=0 // loop_footer_branch
    %11 = sbr.rel target = $region3
  $region8: #{closed_call.110} parent=0 // loop_exit
    _

</llo_original>
